<compile_context>
chip_gen: v7x
topology: tpu7x:2x2x1
jax: 0.10.0
libtpu: 0.0.40
codegen_flags: <defaults>
</compile_context>

<pallas_src>
import functools

import jax
import jax.numpy as jnp
from jax.experimental import pallas as pl
from jax.experimental.pallas import tpu as pltpu


LANE = 128  # lane width; classifier output is padded to a multiple of this


def _round_up(x, m):
    return (x + m - 1) // m * m


def _mlp_kernel(n_linear, *refs):
    """Fused MLP: (Linear -> ReLU) x (n_linear-1), then the final Linear.

    refs = (x_ref, W0, b0, W1, b1, ..., Wc, bc, out_ref)
    x streams in as f32 and is cast to bf16 in-kernel; weights are bf16 VMEM
    residents (constant index_map), biases f32, out f32.  All intermediates
    stay in VMEM/vregs — nothing but x, the params and the output touch HBM.
    """
    x_ref = refs[0]
    out_ref = refs[-1]
    wb = refs[1:-1]

    h = x_ref[...].astype(jnp.bfloat16)  # in-kernel cast: (TB, in) bf16
    for li in range(n_linear):
        w = wb[2 * li][...]        # bf16 (in, out)
        b = wb[2 * li + 1][...]    # f32  (1, out)
        acc = jnp.dot(h, w, preferred_element_type=jnp.float32) + b  # MXU, f32 acc
        if li < n_linear - 1:
            # ReLU in f32, back to bf16 for the next matmul (Dropout = identity at eval).
            h = jnp.maximum(acc, 0.0).astype(jnp.bfloat16)
        else:
            h = acc
    out_ref[...] = h.astype(out_ref.dtype)


def _make_specs(params, tb, in_size, padded_out, single_buffer_weights):
    """x/out tiled over the batch grid; weights/biases are loop-invariant residents."""
    in_specs = [pl.BlockSpec((tb, in_size), lambda i: (i, 0))]
    for (w, b) in params:
        if single_buffer_weights:
            # Constant index_map => never re-DMA'd; single-buffer to halve VMEM footprint.
            in_specs.append(pl.BlockSpec(w.shape, lambda i: (0, 0),
                                         pipeline_mode=pl.Buffered(1)))
            in_specs.append(pl.BlockSpec(b.shape, lambda i: (0, 0),
                                         pipeline_mode=pl.Buffered(1)))
        else:
            in_specs.append(pl.BlockSpec(w.shape, lambda i: (0, 0)))
            in_specs.append(pl.BlockSpec(b.shape, lambda i: (0, 0)))
    out_specs = pl.BlockSpec((tb, padded_out), lambda i: (i, 0))
    return in_specs, out_specs


def mlp_forward(x, params, num_classes, *, tb=256):
    """Run the fused MLP.

    x:       (batch, input_size) float32.
    params:  list of (W, b); W bf16 (in, out), b f32 (1, out).  The last
             (classifier) pair must be zero-padded to a multiple of 128 columns.
    Returns (batch, num_classes) float32.
    """
    n_linear = len(params)
    batch, in_size = x.shape
    padded_out = params[-1][0].shape[1]
    assert padded_out % LANE == 0 and padded_out >= num_classes, (
        "classifier weights must be lane-padded (see init_params)")
    assert params[0][0].shape[0] == in_size, "input_size mismatch with fc0 weights"

    # Tile selection: big enough to fill the 256-wide MXU / amortize grid-step
    # overhead, but clamped for small batches (don't pad 8 rows up to 256).
    tb = max(16, min(_round_up(tb, 16), _round_up(batch, 16)))
    batch_p = _round_up(batch, tb)

    x_p = x if batch_p == batch else jnp.pad(x, ((0, batch_p - batch), (0, 0)))

    flat_args = [x_p]
    for (w, b) in params:
        flat_args += [w, b]

    # VMEM budget: single-buffered params + double-buffered x/out tiles.
    bytes_resident = sum(w.size * w.dtype.itemsize + b.size * b.dtype.itemsize
                         for (w, b) in params)
    bytes_stream = 2 * (tb * in_size * x_p.dtype.itemsize + tb * padded_out * 4)
    vmem_limit = int(min(60 * 1024 * 1024,
                         max(32 * 1024 * 1024, 2 * (bytes_resident + bytes_stream))))

    # Advisory cost estimate so XLA can overlap the pad/slice with the kernel.
    flops = sum(2 * batch_p * w.shape[0] * w.shape[1] + batch_p * w.shape[1]
                for (w, _) in params)
    bytes_accessed = (x_p.size * x_p.dtype.itemsize
                      + bytes_resident
                      + batch_p * padded_out * 4)
    cost = pl.CostEstimate(flops=flops, transcendentals=0,
                           bytes_accessed=bytes_accessed)

    kernel = functools.partial(_mlp_kernel, n_linear)
    out_shape = jax.ShapeDtypeStruct((batch_p, padded_out), jnp.float32)
    compiler_params = pltpu.CompilerParams(
        dimension_semantics=("parallel",),   # batch tiles shard across TCs (v7x)
        vmem_limit_bytes=vmem_limit,
    )

    def _run(single_buffer_weights):
        in_specs, out_specs = _make_specs(params, tb, in_size, padded_out,
                                          single_buffer_weights)
        return pl.pallas_call(
            kernel,
            out_shape=out_shape,
            grid_spec=pl.GridSpec(
                grid=(batch_p // tb,),
                in_specs=in_specs,
                out_specs=out_specs,
            ),
            compiler_params=compiler_params,
            cost_estimate=cost,
        )(*flat_args)

    try:
        out = _run(single_buffer_weights=True)
    except Exception:
        # Fallback for Pallas versions that reject Buffered(1) on inputs; any
        # unrelated error re-surfaces from this path too.
        out = _run(single_buffer_weights=False)

    return out[:batch, :num_classes]


def init_params(key, input_size, hidden_size, hidden_layers, num_classes):
    """kaiming_normal_(mode='fan_out', relu): std = sqrt(2 / out_features); bias = 0.

    Weights stored pre-transposed (in, out) in bf16; biases f32.  The classifier
    is zero-padded from num_classes to round_up(num_classes, 128) output columns
    so the kernel's output store is lane-dense.
    """
    dims = [input_size] + [hidden_size] * hidden_layers
    params = []
    for li in range(hidden_layers):
        key, sub = jax.random.split(key)
        fan_in, fan_out = dims[li], dims[li + 1]
        std = (2.0 / fan_out) ** 0.5
        w = std * jax.random.normal(sub, (fan_in, fan_out), dtype=jnp.float32)
        params.append((w.astype(jnp.bfloat16), jnp.zeros((1, fan_out), jnp.float32)))

    # classifier: nn.Linear(512, num_classes) -- 512 hard-coded in the module.
    key, sub = jax.random.split(key)
    std = (2.0 / num_classes) ** 0.5
    wc = std * jax.random.normal(sub, (512, num_classes), dtype=jnp.float32)
    padded = _round_up(num_classes, LANE)
    wc_padded = jnp.zeros((512, padded), jnp.float32).at[:, :num_classes].set(wc)
    bc_padded = jnp.zeros((1, padded), jnp.float32)
    params.append((wc_padded.astype(jnp.bfloat16), bc_padded))
    return params


def reference_forward(x, params, num_classes):
    """Pure-JAX reference with identical bf16/f32 mixed precision."""
    h = x.astype(jnp.bfloat16)
    n = len(params)
    for li, (w, b) in enumerate(params):
        acc = jnp.dot(h, w, preferred_element_type=jnp.float32) + b
        if li < n - 1:
            h = jnp.maximum(acc, 0.0).astype(jnp.bfloat16)
        else:
            h = acc
    return h[:, :num_classes]


if __name__ == "__main__":
    # Small shapes consistent with the module: hidden_size must be 512 because
    # the classifier is hard-coded to nn.Linear(512, num_classes).
    batch = 8
    input_size = 256
    hidden_size = 512
    hidden_layers = 2
    num_classes = 2

    key = jax.random.PRNGKey(0)
    key, xkey = jax.random.split(key)
    x = jax.random.normal(xkey, (batch, input_size), dtype=jnp.float32)

    params = init_params(key, input_size, hidden_size, hidden_layers, num_classes)

    out = mlp_forward(x, params, num_classes)
    out = jax.block_until_ready(out)

    ref = reference_forward(x, params, num_classes)
    assert out.shape == (batch, num_classes), out.shape
    assert jnp.allclose(out, ref, atol=2e-2, rtol=2e-2), "mismatch vs reference"

    print("KERNEL_OK")
</pallas_src>

<mosaic_0001>
module attributes {stable_mosaic.version = 11 : i64} {
  func.func @_mlp_kernel(%arg0: i32, %arg1: memref<16x256xf32, #tpu.memory_space<vmem>>, %arg2: memref<256x512xbf16, #tpu.memory_space<vmem>>, %arg3: memref<1x512xf32, #tpu.memory_space<vmem>>, %arg4: memref<512x512xbf16, #tpu.memory_space<vmem>>, %arg5: memref<1x512xf32, #tpu.memory_space<vmem>>, %arg6: memref<512x128xbf16, #tpu.memory_space<vmem>>, %arg7: memref<1x128xf32, #tpu.memory_space<vmem>>, %arg8: memref<16x128xf32, #tpu.memory_space<vmem>>) attributes {dimension_semantics = [#tpu.dimension_semantics<parallel>], iteration_bounds = array<i64: 1>, scalar_prefetch = 0 : i64, scratch_operands = 0 : i64, tpu.core_type = #tpu.core_type<tc>, window_params = [{transform_indices = @transform_0, window_bounds = array<i64: 16, 256>}, {pipeline_mode = #tpu.pipeline_mode<synchronous>, transform_indices = @transform_1, window_bounds = array<i64: 256, 512>}, {pipeline_mode = #tpu.pipeline_mode<synchronous>, transform_indices = @transform_2, window_bounds = array<i64: 1, 512>}, {pipeline_mode = #tpu.pipeline_mode<synchronous>, transform_indices = @transform_3, window_bounds = array<i64: 512, 512>}, {pipeline_mode = #tpu.pipeline_mode<synchronous>, transform_indices = @transform_4, window_bounds = array<i64: 1, 512>}, {pipeline_mode = #tpu.pipeline_mode<synchronous>, transform_indices = @transform_5, window_bounds = array<i64: 512, 128>}, {pipeline_mode = #tpu.pipeline_mode<synchronous>, transform_indices = @transform_6, window_bounds = array<i64: 1, 128>}, {transform_indices = @transform_7, window_bounds = array<i64: 16, 128>}]} {
    %c0 = arith.constant 0 : index
    %c0_0 = arith.constant 0 : index
    %0 = vector.load %arg1[%c0, %c0_0] : memref<16x256xf32, #tpu.memory_space<vmem>>, vector<16x256xf32>
    %1 = arith.truncf %0 : vector<16x256xf32> to vector<16x256xbf16>
    %c0_1 = arith.constant 0 : index
    %c0_2 = arith.constant 0 : index
    %2 = vector.load %arg2[%c0_1, %c0_2] : memref<256x512xbf16, #tpu.memory_space<vmem>>, vector<256x512xbf16>
    %c0_3 = arith.constant 0 : index
    %c0_4 = arith.constant 0 : index
    %3 = vector.load %arg3[%c0_3, %c0_4] : memref<1x512xf32, #tpu.memory_space<vmem>>, vector<1x512xf32>
    %cst = arith.constant dense<0.000000e+00> : vector<16x512xf32>
    %4 = tpu.matmul %1, %2, %cst {dimension_numbers = #tpu.dot_dimension_numbers<[1], [0], [0], [1], [0, 0, 1, 1], [], []>} : vector<16x256xbf16>, vector<256x512xbf16>, vector<16x512xf32> -> vector<16x512xf32>
    %5 = vector.broadcast %3 : vector<1x512xf32> to vector<16x512xf32>
    %6 = arith.addf %4, %5 : vector<16x512xf32>
    %cst_5 = arith.constant 0.000000e+00 : f32
    %7 = vector.broadcast %cst_5 : f32 to vector<16x512xf32>
    %8 = arith.maximumf %6, %7 : vector<16x512xf32>
    %9 = arith.truncf %8 : vector<16x512xf32> to vector<16x512xbf16>
    %c0_6 = arith.constant 0 : index
    %c0_7 = arith.constant 0 : index
    %10 = vector.load %arg4[%c0_6, %c0_7] : memref<512x512xbf16, #tpu.memory_space<vmem>>, vector<512x512xbf16>
    %c0_8 = arith.constant 0 : index
    %c0_9 = arith.constant 0 : index
    %11 = vector.load %arg5[%c0_8, %c0_9] : memref<1x512xf32, #tpu.memory_space<vmem>>, vector<1x512xf32>
    %cst_10 = arith.constant dense<0.000000e+00> : vector<16x512xf32>
    %12 = tpu.matmul %9, %10, %cst_10 {dimension_numbers = #tpu.dot_dimension_numbers<[1], [0], [0], [1], [0, 0, 1, 1], [], []>} : vector<16x512xbf16>, vector<512x512xbf16>, vector<16x512xf32> -> vector<16x512xf32>
    %13 = vector.broadcast %11 : vector<1x512xf32> to vector<16x512xf32>
    %14 = arith.addf %12, %13 : vector<16x512xf32>
    %cst_11 = arith.constant 0.000000e+00 : f32
    %15 = vector.broadcast %cst_11 : f32 to vector<16x512xf32>
    %16 = arith.maximumf %14, %15 : vector<16x512xf32>
    %17 = arith.truncf %16 : vector<16x512xf32> to vector<16x512xbf16>
    %c0_12 = arith.constant 0 : index
    %c0_13 = arith.constant 0 : index
    %18 = vector.load %arg6[%c0_12, %c0_13] : memref<512x128xbf16, #tpu.memory_space<vmem>>, vector<512x128xbf16>
    %c0_14 = arith.constant 0 : index
    %c0_15 = arith.constant 0 : index
    %19 = vector.load %arg7[%c0_14, %c0_15] : memref<1x128xf32, #tpu.memory_space<vmem>>, vector<1x128xf32>
    %cst_16 = arith.constant dense<0.000000e+00> : vector<16x128xf32>
    %20 = tpu.matmul %17, %18, %cst_16 {dimension_numbers = #tpu.dot_dimension_numbers<[1], [0], [0], [1], [0, 0, 1, 1], [], []>} : vector<16x512xbf16>, vector<512x128xbf16>, vector<16x128xf32> -> vector<16x128xf32>
    %21 = vector.broadcast %19 : vector<1x128xf32> to vector<16x128xf32>
    %22 = arith.addf %20, %21 : vector<16x128xf32>
    %c0_17 = arith.constant 0 : index
    %c0_18 = arith.constant 0 : index
    %23 = vector.load %arg8[%c0_17, %c0_18] : memref<16x128xf32, #tpu.memory_space<vmem>>, vector<16x128xf32>
    tpu.vector_store %arg8[%c0_17, %c0_18], %22 {strides = array<i32>} : memref<16x128xf32, #tpu.memory_space<vmem>>, vector<16x128xf32>,
    return
  }
  func.func @transform_0(%arg0: i32) -> (i32, i32) {
    %c0_i32 = arith.constant 0 : i32
    %c0_i32_0 = arith.constant 0 : i32
    return %arg0, %c0_i32 : i32, i32
  }
  func.func @transform_1(%arg0: i32) -> (i32, i32) {
    %c0_i32 = arith.constant 0 : i32
    %c0_i32_0 = arith.constant 0 : i32
    %c0_i32_1 = arith.constant 0 : i32
    return %c0_i32, %c0_i32_0 : i32, i32
  }
  func.func @transform_2(%arg0: i32) -> (i32, i32) {
    %c0_i32 = arith.constant 0 : i32
    %c0_i32_0 = arith.constant 0 : i32
    %c0_i32_1 = arith.constant 0 : i32
    return %c0_i32, %c0_i32_0 : i32, i32
  }
  func.func @transform_3(%arg0: i32) -> (i32, i32) {
    %c0_i32 = arith.constant 0 : i32
    %c0_i32_0 = arith.constant 0 : i32
    %c0_i32_1 = arith.constant 0 : i32
    return %c0_i32, %c0_i32_0 : i32, i32
  }
  func.func @transform_4(%arg0: i32) -> (i32, i32) {
    %c0_i32 = arith.constant 0 : i32
    %c0_i32_0 = arith.constant 0 : i32
    %c0_i32_1 = arith.constant 0 : i32
    return %c0_i32, %c0_i32_0 : i32, i32
  }
  func.func @transform_5(%arg0: i32) -> (i32, i32) {
    %c0_i32 = arith.constant 0 : i32
    %c0_i32_0 = arith.constant 0 : i32
    %c0_i32_1 = arith.constant 0 : i32
    return %c0_i32, %c0_i32_0 : i32, i32
  }
  func.func @transform_6(%arg0: i32) -> (i32, i32) {
    %c0_i32 = arith.constant 0 : i32
    %c0_i32_0 = arith.constant 0 : i32
    %c0_i32_1 = arith.constant 0 : i32
    return %c0_i32, %c0_i32_0 : i32, i32
  }
  func.func @transform_7(%arg0: i32) -> (i32, i32) {
    %c0_i32 = arith.constant 0 : i32
    %c0_i32_0 = arith.constant 0 : i32
    return %arg0, %c0_i32 : i32, i32
  }
}

module attributes {stable_mosaic.version = 11 : i64} {
  func.func @_mlp_kernel(%arg0: i32, %arg1: memref<16x256xf32, #tpu.memory_space<vmem>>, %arg2: memref<256x512xbf16, #tpu.memory_space<vmem>>, %arg3: memref<1x512xf32, #tpu.memory_space<vmem>>, %arg4: memref<512x512xbf16, #tpu.memory_space<vmem>>, %arg5: memref<1x512xf32, #tpu.memory_space<vmem>>, %arg6: memref<512x128xbf16, #tpu.memory_space<vmem>>, %arg7: memref<1x128xf32, #tpu.memory_space<vmem>>, %arg8: memref<16x128xf32, #tpu.memory_space<vmem>>) attributes {dimension_semantics = [#tpu.dimension_semantics<parallel>], iteration_bounds = array<i64: 1>, scalar_prefetch = 0 : i64, scratch_operands = 0 : i64, tpu.core_type = #tpu.core_type<tc>, window_params = [{transform_indices = @transform_0, window_bounds = array<i64: 16, 256>}, {pipeline_mode = #tpu.pipeline_mode<synchronous>, transform_indices = @transform_1, window_bounds = array<i64: 256, 512>}, {pipeline_mode = #tpu.pipeline_mode<synchronous>, transform_indices = @transform_2, window_bounds = array<i64: 1, 512>}, {pipeline_mode = #tpu.pipeline_mode<synchronous>, transform_indices = @transform_3, window_bounds = array<i64: 512, 512>}, {pipeline_mode = #tpu.pipeline_mode<synchronous>, transform_indices = @transform_4, window_bounds = array<i64: 1, 512>}, {pipeline_mode = #tpu.pipeline_mode<synchronous>, transform_indices = @transform_5, window_bounds = array<i64: 512, 128>}, {pipeline_mode = #tpu.pipeline_mode<synchronous>, transform_indices = @transform_6, window_bounds = array<i64: 1, 128>}, {transform_indices = @transform_7, window_bounds = array<i64: 16, 128>}]} {
    %c0 = arith.constant 0 : index
    %c0_0 = arith.constant 0 : index
    %0 = vector.load %arg1[%c0, %c0_0] : memref<16x256xf32, #tpu.memory_space<vmem>>, vector<16x256xf32>
    %1 = arith.truncf %0 : vector<16x256xf32> to vector<16x256xbf16>
    %c0_1 = arith.constant 0 : index
    %c0_2 = arith.constant 0 : index
    %2 = vector.load %arg2[%c0_1, %c0_2] : memref<256x512xbf16, #tpu.memory_space<vmem>>, vector<256x512xbf16>
    %c0_3 = arith.constant 0 : index
    %c0_4 = arith.constant 0 : index
    %3 = vector.load %arg3[%c0_3, %c0_4] : memref<1x512xf32, #tpu.memory_space<vmem>>, vector<1x512xf32>
    %cst = arith.constant dense<0.000000e+00> : vector<16x512xf32>
    %4 = tpu.matmul %1, %2, %cst {dimension_numbers = #tpu.dot_dimension_numbers<[1], [0], [0], [1], [0, 0, 1, 1], [], []>} : vector<16x256xbf16>, vector<256x512xbf16>, vector<16x512xf32> -> vector<16x512xf32>
    %5 = vector.broadcast %3 : vector<1x512xf32> to vector<16x512xf32>
    %6 = arith.addf %4, %5 : vector<16x512xf32>
    %cst_5 = arith.constant 0.000000e+00 : f32
    %7 = vector.broadcast %cst_5 : f32 to vector<16x512xf32>
    %8 = arith.maximumf %6, %7 : vector<16x512xf32>
    %9 = arith.truncf %8 : vector<16x512xf32> to vector<16x512xbf16>
    %c0_6 = arith.constant 0 : index
    %c0_7 = arith.constant 0 : index
    %10 = vector.load %arg4[%c0_6, %c0_7] : memref<512x512xbf16, #tpu.memory_space<vmem>>, vector<512x512xbf16>
    %c0_8 = arith.constant 0 : index
    %c0_9 = arith.constant 0 : index
    %11 = vector.load %arg5[%c0_8, %c0_9] : memref<1x512xf32, #tpu.memory_space<vmem>>, vector<1x512xf32>
    %cst_10 = arith.constant dense<0.000000e+00> : vector<16x512xf32>
    %12 = tpu.matmul %9, %10, %cst_10 {dimension_numbers = #tpu.dot_dimension_numbers<[1], [0], [0], [1], [0, 0, 1, 1], [], []>} : vector<16x512xbf16>, vector<512x512xbf16>, vector<16x512xf32> -> vector<16x512xf32>
    %13 = vector.broadcast %11 : vector<1x512xf32> to vector<16x512xf32>
    %14 = arith.addf %12, %13 : vector<16x512xf32>
    %cst_11 = arith.constant 0.000000e+00 : f32
    %15 = vector.broadcast %cst_11 : f32 to vector<16x512xf32>
    %16 = arith.maximumf %14, %15 : vector<16x512xf32>
    %17 = arith.truncf %16 : vector<16x512xf32> to vector<16x512xbf16>
    %c0_12 = arith.constant 0 : index
    %c0_13 = arith.constant 0 : index
    %18 = vector.load %arg6[%c0_12, %c0_13] : memref<512x128xbf16, #tpu.memory_space<vmem>>, vector<512x128xbf16>
    %c0_14 = arith.constant 0 : index
    %c0_15 = arith.constant 0 : index
    %19 = vector.load %arg7[%c0_14, %c0_15] : memref<1x128xf32, #tpu.memory_space<vmem>>, vector<1x128xf32>
    %cst_16 = arith.constant dense<0.000000e+00> : vector<16x128xf32>
    %20 = tpu.matmul %17, %18, %cst_16 {dimension_numbers = #tpu.dot_dimension_numbers<[1], [0], [0], [1], [0, 0, 1, 1], [], []>} : vector<16x512xbf16>, vector<512x128xbf16>, vector<16x128xf32> -> vector<16x128xf32>
    %21 = vector.broadcast %19 : vector<1x128xf32> to vector<16x128xf32>
    %22 = arith.addf %20, %21 : vector<16x128xf32>
    %c0_17 = arith.constant 0 : index
    %c0_18 = arith.constant 0 : index
    %23 = vector.load %arg8[%c0_17, %c0_18] : memref<16x128xf32, #tpu.memory_space<vmem>>, vector<16x128xf32>
    tpu.vector_store %arg8[%c0_17, %c0_18], %22 {strides = array<i32>} : memref<16x128xf32, #tpu.memory_space<vmem>>, vector<16x128xf32>,
    return
  }
  func.func @transform_0(%arg0: i32) -> (i32, i32) {
    %c0_i32 = arith.constant 0 : i32
    %c0_i32_0 = arith.constant 0 : i32
    return %arg0, %c0_i32 : i32, i32
  }
  func.func @transform_1(%arg0: i32) -> (i32, i32) {
    %c0_i32 = arith.constant 0 : i32
    %c0_i32_0 = arith.constant 0 : i32
    %c0_i32_1 = arith.constant 0 : i32
    return %c0_i32, %c0_i32_0 : i32, i32
  }
  func.func @transform_2(%arg0: i32) -> (i32, i32) {
    %c0_i32 = arith.constant 0 : i32
    %c0_i32_0 = arith.constant 0 : i32
    %c0_i32_1 = arith.constant 0 : i32
    return %c0_i32, %c0_i32_0 : i32, i32
  }
  func.func @transform_3(%arg0: i32) -> (i32, i32) {
    %c0_i32 = arith.constant 0 : i32
    %c0_i32_0 = arith.constant 0 : i32
    %c0_i32_1 = arith.constant 0 : i32
    return %c0_i32, %c0_i32_0 : i32, i32
  }
  func.func @transform_4(%arg0: i32) -> (i32, i32) {
    %c0_i32 = arith.constant 0 : i32
    %c0_i32_0 = arith.constant 0 : i32
    %c0_i32_1 = arith.constant 0 : i32
    return %c0_i32, %c0_i32_0 : i32, i32
  }
  func.func @transform_5(%arg0: i32) -> (i32, i32) {
    %c0_i32 = arith.constant 0 : i32
    %c0_i32_0 = arith.constant 0 : i32
    %c0_i32_1 = arith.constant 0 : i32
    return %c0_i32, %c0_i32_0 : i32, i32
  }
  func.func @transform_6(%arg0: i32) -> (i32, i32) {
    %c0_i32 = arith.constant 0 : i32
    %c0_i32_0 = arith.constant 0 : i32
    %c0_i32_1 = arith.constant 0 : i32
    return %c0_i32, %c0_i32_0 : i32, i32
  }
  func.func @transform_7(%arg0: i32) -> (i32, i32) {
    %c0_i32 = arith.constant 0 : i32
    %c0_i32_0 = arith.constant 0 : i32
    return %arg0, %c0_i32 : i32, i32
  }
}

</mosaic_0001>

<llo_original>
// kernel: tpu_custom_call.1
$region0: #{tpu_custom_call.1}
  #allocation0 [shape = 'u32[]', space=smem, size = 0x4, offset = 0x4, fixed_abs, tag = 'smem constant byte address 0x4 - core index']
  #allocation1 [shape = 'u32[144,128]{1,0:T(1,128)}', space=vmem, size = 0x12000, scoped, tag = 'internal scratch']
  %s0 = inlined_call_operand.hbm [shape: f32[16,256], index: 0, kind: input, shape index: {}]
  %s1 = inlined_call_operand.hbm [shape: bf16[256,512], index: 1, kind: input, shape index: {}]
  %s2 = inlined_call_operand.vmem [shape: f32[1,512], index: 2, kind: input, shape index: {}]
  %s3 = inlined_call_operand.hbm [shape: bf16[512,512], index: 3, kind: input, shape index: {}]
  %s4 = inlined_call_operand.vmem [shape: f32[1,512], index: 4, kind: input, shape index: {}]
  %s5 = inlined_call_operand.hbm [shape: bf16[512,128], index: 5, kind: input, shape index: {}]
  %s6 = inlined_call_operand.vmem [shape: f32[1,128], index: 6, kind: input, shape index: {}]
  %s7 = inlined_call_operand.hbm [shape: f32[16,128], index: 7, kind: output, shape index: {}]
  %s8 = sld [smem:[#allocation0]]
  $region54: #{tpu_custom_call.1} parent=0
    _
  %s10 = ssub.s32 1, %s8
  %s11 = scalar_select 0, %s10, %s8
  $region1: #{tpu_custom_call.1} parent=0
    #allocation2 [shape = 'u8[16384]{0}', space=vmem, size = 0x4000, scoped, tag = 'input window, operand 0, single buffered']
    #allocation3 [shape = 's32[1]{0}', space=sflag, size = 0x4, scoped, tag = 'scoped memory for tpu_custom_call.1']
    #allocation4 [shape = 's32[1]{0}', space=sflag, size = 0x4, scoped, tag = 'scoped memory for tpu_custom_call.1']
    #allocation5 [shape = 'u8[262144]{0}', space=vmem, size = 0x40000, scoped, tag = 'input window, operand 1, single buffered']
    #allocation6 [shape = 's32[1]{0}', space=sflag, size = 0x4, scoped, tag = 'scoped memory for tpu_custom_call.1']
    #allocation7 [shape = 'u8[524288]{0}', space=vmem, size = 0x80000, scoped, tag = 'input window, operand 3, single buffered']
    #allocation8 [shape = 'u8[131072]{0}', space=vmem, size = 0x20000, scoped, tag = 'input window, operand 5, single buffered']
    #allocation9 [shape = 's32[1]{0}', space=sflag, size = 0x4, scoped, tag = 'scoped memory for tpu_custom_call.1']
    #allocation10 [shape = 'u8[8192]{0}', space=vmem, size = 0x2000, scoped, tag = 'output window, operand 0, single buffered']
    %12 = vsyncpa [#allocation3], 0
    %13 = vsyncpa [#allocation6], 0
    %14 = vsyncpa [#allocation9], 0
    %15 = vsyncpa [#allocation4], 0
    // Predicated region
    $region2: #{tpu_custom_call.1} parent=1 // pred_check
      _
    $region3: #{tpu_custom_call.1} parent=1 // pred_check_branch
      %17 = sbr.rel (0) target = $region5
    $region4: #{tpu_custom_call.1} parent=1 // pred_region
      %s19 = ssub.s32 512, 512
      %20 = vsyncadd [#allocation3], %s19
      %s21 = sshll.u32 [#allocation2], 4
      %s22 = int_to_ptr.vmem [resolvable:$true] %s21
      %27 = dma.hbm_to_vmem [thread:$0]  %s0, 512, %s22, [#allocation3], 256, 256, 16
    $region5: #{tpu_custom_call.1} parent=1 // pred_fallthru
      _
    // Predicated region
    $region6: #{tpu_custom_call.1} parent=1 // pred_check
      _
    $region7: #{tpu_custom_call.1} parent=1 // pred_check_branch
      %29 = sbr.rel (0) target = $region9
    $region8: #{tpu_custom_call.1} parent=1 // pred_region
      %s31 = ssub.s32 8192, 8192
      %32 = vsyncadd [#allocation6], %s31
      %s33 = sshll.u32 [#allocation5], 4
      %s34 = int_to_ptr.vmem [resolvable:$true] %s33
      %39 = dma.hbm_to_vmem [thread:$0]  %s1, 8192, %s34, [#allocation6], 256, 256, 16
    $region9: #{tpu_custom_call.1} parent=1 // pred_fallthru
      _
    // Predicated region
    $region10: #{tpu_custom_call.1} parent=1 // pred_check
      _
    $region11: #{tpu_custom_call.1} parent=1 // pred_check_branch
      %41 = sbr.rel (0) target = $region13
    $region12: #{tpu_custom_call.1} parent=1 // pred_region
      _
    $region13: #{tpu_custom_call.1} parent=1 // pred_fallthru
      _
    // Predicated region
    $region14: #{tpu_custom_call.1} parent=1 // pred_check
      _
    $region15: #{tpu_custom_call.1} parent=1 // pred_check_branch
      %43 = sbr.rel (0) target = $region17
    $region16: #{tpu_custom_call.1} parent=1 // pred_region
      %s45 = ssub.s32 16384, 16384
      %46 = vsyncadd [#allocation6], %s45
      %s47 = sshll.u32 [#allocation7], 4
      %s48 = int_to_ptr.vmem [resolvable:$true] %s47
      %53 = dma.hbm_to_vmem [thread:$0]  %s3, 16384, %s48, [#allocation6], 256, 256, 16
    $region17: #{tpu_custom_call.1} parent=1 // pred_fallthru
      _
    // Predicated region
    $region18: #{tpu_custom_call.1} parent=1 // pred_check
      _
    $region19: #{tpu_custom_call.1} parent=1 // pred_check_branch
      %55 = sbr.rel (0) target = $region21
    $region20: #{tpu_custom_call.1} parent=1 // pred_region
      _
    $region21: #{tpu_custom_call.1} parent=1 // pred_fallthru
      _
    // Predicated region
    $region22: #{tpu_custom_call.1} parent=1 // pred_check
      _
    $region23: #{tpu_custom_call.1} parent=1 // pred_check_branch
      %57 = sbr.rel (0) target = $region25
    $region24: #{tpu_custom_call.1} parent=1 // pred_region
      %s59 = ssub.s32 4096, 4096
      %60 = vsyncadd [#allocation9], %s59
      %s61 = sshll.u32 [#allocation8], 4
      %s62 = int_to_ptr.vmem [resolvable:$true] %s61
      %67 = dma.hbm_to_vmem [thread:$0]  %s5, 4096, %s62, [#allocation9], 64, 64, 4
    $region25: #{tpu_custom_call.1} parent=1 // pred_fallthru
      _
    // Predicated region
    $region26: #{tpu_custom_call.1} parent=1 // pred_check
      _
    $region27: #{tpu_custom_call.1} parent=1 // pred_check_branch
      %69 = sbr.rel (0) target = $region29
    $region28: #{tpu_custom_call.1} parent=1 // pred_region
      _
    $region29: #{tpu_custom_call.1} parent=1 // pred_fallthru
      _
    // Predicated region
    $region30: #{tpu_custom_call.1} parent=1 // pred_check
      _
    $region31: #{tpu_custom_call.1} parent=1 // pred_check_branch
      %71 = sbr.rel (0) target = $region33
    $region32: #{tpu_custom_call.1} parent=1 // pred_region
      %72 = dma.done [#allocation3], 512
    $region33: #{tpu_custom_call.1} parent=1 // pred_fallthru
      _
    // Predicated region
    $region34: #{tpu_custom_call.1} parent=1 // pred_check
      _
    $region35: #{tpu_custom_call.1} parent=1 // pred_check_branch
      %74 = sbr.rel (0) target = $region37
    $region36: #{tpu_custom_call.1} parent=1 // pred_region
      %75 = dma.done [#allocation6], 8192
    $region37: #{tpu_custom_call.1} parent=1 // pred_fallthru
      _
    // Predicated region
    $region38: #{tpu_custom_call.1} parent=1 // pred_check
      _
    $region39: #{tpu_custom_call.1} parent=1 // pred_check_branch
      %77 = sbr.rel (0) target = $region41
    $region40: #{tpu_custom_call.1} parent=1 // pred_region
      %78 = dma.done [#allocation6], 16384
    $region41: #{tpu_custom_call.1} parent=1 // pred_fallthru
      _
    // Predicated region
    $region42: #{tpu_custom_call.1} parent=1 // pred_check
      _
    $region43: #{tpu_custom_call.1} parent=1 // pred_check_branch
      %80 = sbr.rel (0) target = $region45
    $region44: #{tpu_custom_call.1} parent=1 // pred_region
      %81 = dma.done [#allocation9], 4096
    $region45: #{tpu_custom_call.1} parent=1 // pred_fallthru
      _
    %v83 = vld [vmem:[#allocation2] sm:$0xff]
    %v84 = vld [vmem:[#allocation2 + $0x8] sm:$0xff]
    %v85 = vld [vmem:[#allocation2 + $0x10] sm:$0xff]
    %v86 = vld [vmem:[#allocation2 + $0x18] sm:$0xff]
    %v87 = vpack.c.bf16 %v85, %v83
    %v88 = vpack.c.bf16 %v86, %v84
    %v89 = vld [vmem:[#allocation5] sm:$0xff]
    %v90 = vld [vmem:[#allocation5 + $0x8] sm:$0xff]
    %v91 = vld [vmem:[#allocation5 + $0x10] sm:$0xff]
    %v92 = vld [vmem:[#allocation5 + $0x18] sm:$0xff]
    %v93 = vld [vmem:[#allocation5 + $0x20] sm:$0xff]
    %v94 = vld [vmem:[#allocation5 + $0x28] sm:$0xff]
    %v95 = vld [vmem:[#allocation5 + $0x30] sm:$0xff]
    %v96 = vld [vmem:[#allocation5 + $0x38] sm:$0xff]
    %v97 = vld [vmem:[#allocation5 + $0x40] sm:$0xff]
    %v98 = vld [vmem:[#allocation5 + $0x48] sm:$0xff]
    %v99 = vld [vmem:[#allocation5 + $0x50] sm:$0xff]
    %v100 = vld [vmem:[#allocation5 + $0x58] sm:$0xff]
    %v101 = vld [vmem:[#allocation5 + $0x60] sm:$0xff]
    %v102 = vld [vmem:[#allocation5 + $0x68] sm:$0xff]
    %v103 = vld [vmem:[#allocation5 + $0x70] sm:$0xff]
    %v104 = vld [vmem:[#allocation5 + $0x78] sm:$0xff]
    %v105 = vld [vmem:[#allocation5 + $0x80] sm:$0xff]
    %v106 = vld [vmem:[#allocation5 + $0x88] sm:$0xff]
    %v107 = vld [vmem:[#allocation5 + $0x90] sm:$0xff]
    %v108 = vld [vmem:[#allocation5 + $0x98] sm:$0xff]
    %v109 = vld [vmem:[#allocation5 + $0xa0] sm:$0xff]
    %v110 = vld [vmem:[#allocation5 + $0xa8] sm:$0xff]
    %v111 = vld [vmem:[#allocation5 + $0xb0] sm:$0xff]
    %v112 = vld [vmem:[#allocation5 + $0xb8] sm:$0xff]
    %v113 = vld [vmem:[#allocation5 + $0xc0] sm:$0xff]
    %v114 = vld [vmem:[#allocation5 + $0xc8] sm:$0xff]
    %v115 = vld [vmem:[#allocation5 + $0xd0] sm:$0xff]
    %v116 = vld [vmem:[#allocation5 + $0xd8] sm:$0xff]
    %v117 = vld [vmem:[#allocation5 + $0xe0] sm:$0xff]
    %v118 = vld [vmem:[#allocation5 + $0xe8] sm:$0xff]
    %v119 = vld [vmem:[#allocation5 + $0xf0] sm:$0xff]
    %v120 = vld [vmem:[#allocation5 + $0xf8] sm:$0xff]
    %v121 = vld [vmem:[#allocation5 + $0x100] sm:$0xff]
    %v122 = vld [vmem:[#allocation5 + $0x108] sm:$0xff]
    %v123 = vld [vmem:[#allocation5 + $0x110] sm:$0xff]
    %v124 = vld [vmem:[#allocation5 + $0x118] sm:$0xff]
    %v125 = vld [vmem:[#allocation5 + $0x120] sm:$0xff]
    %v126 = vld [vmem:[#allocation5 + $0x128] sm:$0xff]
    %v127 = vld [vmem:[#allocation5 + $0x130] sm:$0xff]
    %v128 = vld [vmem:[#allocation5 + $0x138] sm:$0xff]
    %v129 = vld [vmem:[#allocation5 + $0x140] sm:$0xff]
    %v130 = vld [vmem:[#allocation5 + $0x148] sm:$0xff]
    %v131 = vld [vmem:[#allocation5 + $0x150] sm:$0xff]
    %v132 = vld [vmem:[#allocation5 + $0x158] sm:$0xff]
    %v133 = vld [vmem:[#allocation5 + $0x160] sm:$0xff]
    %v134 = vld [vmem:[#allocation5 + $0x168] sm:$0xff]
    %v135 = vld [vmem:[#allocation5 + $0x170] sm:$0xff]
    %v136 = vld [vmem:[#allocation5 + $0x178] sm:$0xff]
    %v137 = vld [vmem:[#allocation5 + $0x180] sm:$0xff]
    %v138 = vld [vmem:[#allocation5 + $0x188] sm:$0xff]
    %v139 = vld [vmem:[#allocation5 + $0x190] sm:$0xff]
    %v140 = vld [vmem:[#allocation5 + $0x198] sm:$0xff]
    %v141 = vld [vmem:[#allocation5 + $0x1a0] sm:$0xff]
    %v142 = vld [vmem:[#allocation5 + $0x1a8] sm:$0xff]
    %v143 = vld [vmem:[#allocation5 + $0x1b0] sm:$0xff]
    %v144 = vld [vmem:[#allocation5 + $0x1b8] sm:$0xff]
    %v145 = vld [vmem:[#allocation5 + $0x1c0] sm:$0xff]
    %v146 = vld [vmem:[#allocation5 + $0x1c8] sm:$0xff]
    %v147 = vld [vmem:[#allocation5 + $0x1d0] sm:$0xff]
    %v148 = vld [vmem:[#allocation5 + $0x1d8] sm:$0xff]
    %v149 = vld [vmem:[#allocation5 + $0x1e0] sm:$0xff]
    %v150 = vld [vmem:[#allocation5 + $0x1e8] sm:$0xff]
    %v151 = vld [vmem:[#allocation5 + $0x1f0] sm:$0xff]
    %v152 = vld [vmem:[#allocation5 + $0x1f8] sm:$0xff]
    %v153 = vld [vmem:[%s2] sm:$0xf]
    %v155 = vlaneseq
    %v156 = vshrl.u32 %v155, 7
    %v157 = vsub.s32 0, %v156
    %v158 = vrot.slane %v153, %v157
    %v159 = vlaneseq
    %v160 = vshrl.u32 %v159, 7
    %v161 = vsub.s32 1, %v160
    %v162 = vrot.slane %v153, %v161
    %v163 = vlaneseq
    %v164 = vshrl.u32 %v163, 7
    %v165 = vsub.s32 2, %v164
    %v166 = vrot.slane %v153, %v165
    %v167 = vlaneseq
    %v168 = vshrl.u32 %v167, 7
    %v169 = vsub.s32 3, %v168
    %v170 = vrot.slane %v153, %v169
    %v239 = vunpack.c.l.b16 %v89
    %v240 = vunpack.c.h.b16 %v89
    %v241 = vunpack.c.l.b16 %v90
    %v242 = vunpack.c.h.b16 %v90
    %v243 = vunpack.c.l.b16 %v91
    %v244 = vunpack.c.h.b16 %v91
    %v245 = vunpack.c.l.b16 %v92
    %v246 = vunpack.c.h.b16 %v92
    %v247 = vunpack.c.l.b16 %v93
    %v248 = vunpack.c.h.b16 %v93
    %v249 = vunpack.c.l.b16 %v94
    %v250 = vunpack.c.h.b16 %v94
    %v251 = vunpack.c.l.b16 %v95
    %v252 = vunpack.c.h.b16 %v95
    %v253 = vunpack.c.l.b16 %v96
    %v254 = vunpack.c.h.b16 %v96
    %v255 = vunpack.c.l.b16 %v97
    %v256 = vunpack.c.h.b16 %v97
    %v257 = vunpack.c.l.b16 %v98
    %v258 = vunpack.c.h.b16 %v98
    %v259 = vunpack.c.l.b16 %v99
    %v260 = vunpack.c.h.b16 %v99
    %v261 = vunpack.c.l.b16 %v100
    %v262 = vunpack.c.h.b16 %v100
    %v263 = vunpack.c.l.b16 %v101
    %v264 = vunpack.c.h.b16 %v101
    %v265 = vunpack.c.l.b16 %v102
    %v266 = vunpack.c.h.b16 %v102
    %v267 = vunpack.c.l.b16 %v103
    %v268 = vunpack.c.h.b16 %v103
    %v269 = vunpack.c.l.b16 %v104
    %v270 = vunpack.c.h.b16 %v104
    %v271 = vunpack.c.l.b16 %v105
    %v272 = vunpack.c.h.b16 %v105
    %v273 = vunpack.c.l.b16 %v106
    %v274 = vunpack.c.h.b16 %v106
    %v275 = vunpack.c.l.b16 %v107
    %v276 = vunpack.c.h.b16 %v107
    %v277 = vunpack.c.l.b16 %v108
    %v278 = vunpack.c.h.b16 %v108
    %v279 = vunpack.c.l.b16 %v109
    %v280 = vunpack.c.h.b16 %v109
    %v281 = vunpack.c.l.b16 %v110
    %v282 = vunpack.c.h.b16 %v110
    %v283 = vunpack.c.l.b16 %v111
    %v284 = vunpack.c.h.b16 %v111
    %v285 = vunpack.c.l.b16 %v112
    %v286 = vunpack.c.h.b16 %v112
    %v287 = vunpack.c.l.b16 %v113
    %v288 = vunpack.c.h.b16 %v113
    %v289 = vunpack.c.l.b16 %v114
    %v290 = vunpack.c.h.b16 %v114
    %v291 = vunpack.c.l.b16 %v115
    %v292 = vunpack.c.h.b16 %v115
    %v293 = vunpack.c.l.b16 %v116
    %v294 = vunpack.c.h.b16 %v116
    %v295 = vunpack.c.l.b16 %v117
    %v296 = vunpack.c.h.b16 %v117
    %v297 = vunpack.c.l.b16 %v118
    %v298 = vunpack.c.h.b16 %v118
    %v299 = vunpack.c.l.b16 %v119
    %v300 = vunpack.c.h.b16 %v119
    %v301 = vunpack.c.l.b16 %v120
    %v302 = vunpack.c.h.b16 %v120
    %v303 = vunpack.c.l.b16 %v121
    %v304 = vunpack.c.h.b16 %v121
    %v305 = vunpack.c.l.b16 %v122
    %v306 = vunpack.c.h.b16 %v122
    %v307 = vunpack.c.l.b16 %v123
    %v308 = vunpack.c.h.b16 %v123
    %v309 = vunpack.c.l.b16 %v124
    %v310 = vunpack.c.h.b16 %v124
    %v311 = vunpack.c.l.b16 %v125
    %v312 = vunpack.c.h.b16 %v125
    %v313 = vunpack.c.l.b16 %v126
    %v314 = vunpack.c.h.b16 %v126
    %v315 = vunpack.c.l.b16 %v127
    %v316 = vunpack.c.h.b16 %v127
    %v317 = vunpack.c.l.b16 %v128
    %v318 = vunpack.c.h.b16 %v128
    %v319 = vunpack.c.l.b16 %v129
    %v320 = vunpack.c.h.b16 %v129
    %v321 = vunpack.c.l.b16 %v130
    %v322 = vunpack.c.h.b16 %v130
    %v323 = vunpack.c.l.b16 %v131
    %v324 = vunpack.c.h.b16 %v131
    %v325 = vunpack.c.l.b16 %v132
    %v326 = vunpack.c.h.b16 %v132
    %v327 = vunpack.c.l.b16 %v133
    %v328 = vunpack.c.h.b16 %v133
    %v329 = vunpack.c.l.b16 %v134
    %v330 = vunpack.c.h.b16 %v134
    %v331 = vunpack.c.l.b16 %v135
    %v332 = vunpack.c.h.b16 %v135
    %v333 = vunpack.c.l.b16 %v136
    %v334 = vunpack.c.h.b16 %v136
    %v335 = vunpack.c.l.b16 %v137
    %v336 = vunpack.c.h.b16 %v137
    %v337 = vunpack.c.l.b16 %v138
    %v338 = vunpack.c.h.b16 %v138
    %v339 = vunpack.c.l.b16 %v139
    %v340 = vunpack.c.h.b16 %v139
    %v341 = vunpack.c.l.b16 %v140
    %v342 = vunpack.c.h.b16 %v140
    %v343 = vunpack.c.l.b16 %v141
    %v344 = vunpack.c.h.b16 %v141
    %v345 = vunpack.c.l.b16 %v142
    %v346 = vunpack.c.h.b16 %v142
    %v347 = vunpack.c.l.b16 %v143
    %v348 = vunpack.c.h.b16 %v143
    %v349 = vunpack.c.l.b16 %v144
    %v350 = vunpack.c.h.b16 %v144
    %v351 = vunpack.c.l.b16 %v145
    %v352 = vunpack.c.h.b16 %v145
    %v353 = vunpack.c.l.b16 %v146
    %v354 = vunpack.c.h.b16 %v146
    %v355 = vunpack.c.l.b16 %v147
    %v356 = vunpack.c.h.b16 %v147
    %v357 = vunpack.c.l.b16 %v148
    %v358 = vunpack.c.h.b16 %v148
    %v359 = vunpack.c.l.b16 %v149
    %v360 = vunpack.c.h.b16 %v149
    %v361 = vunpack.c.l.b16 %v150
    %v362 = vunpack.c.h.b16 %v150
    %v363 = vunpack.c.l.b16 %v151
    %v364 = vunpack.c.h.b16 %v151
    %v365 = vunpack.c.l.b16 %v152
    %v366 = vunpack.c.h.b16 %v152
    %v367 = vpack.c.b16 %v243, %v239
    %v368 = vpack.c.b16 %v244, %v240
    %v369 = vpack.c.b16 %v245, %v241
    %v370 = vpack.c.b16 %v246, %v242
    %v371 = vpack.c.b16 %v251, %v247
    %v372 = vpack.c.b16 %v252, %v248
    %v373 = vpack.c.b16 %v253, %v249
    %v374 = vpack.c.b16 %v254, %v250
    %v375 = vpack.c.b16 %v259, %v255
    %v376 = vpack.c.b16 %v260, %v256
    %v377 = vpack.c.b16 %v261, %v257
    %v378 = vpack.c.b16 %v262, %v258
    %v379 = vpack.c.b16 %v267, %v263
    %v380 = vpack.c.b16 %v268, %v264
    %v381 = vpack.c.b16 %v269, %v265
    %v382 = vpack.c.b16 %v270, %v266
    %v383 = vpack.c.b16 %v275, %v271
    %v384 = vpack.c.b16 %v276, %v272
    %v385 = vpack.c.b16 %v277, %v273
    %v386 = vpack.c.b16 %v278, %v274
    %v387 = vpack.c.b16 %v283, %v279
    %v388 = vpack.c.b16 %v284, %v280
    %v389 = vpack.c.b16 %v285, %v281
    %v390 = vpack.c.b16 %v286, %v282
    %v391 = vpack.c.b16 %v291, %v287
    %v392 = vpack.c.b16 %v292, %v288
    %v393 = vpack.c.b16 %v293, %v289
    %v394 = vpack.c.b16 %v294, %v290
    %v395 = vpack.c.b16 %v299, %v295
    %v396 = vpack.c.b16 %v300, %v296
    %v397 = vpack.c.b16 %v301, %v297
    %v398 = vpack.c.b16 %v302, %v298
    %v399 = vpack.c.b16 %v307, %v303
    %v400 = vpack.c.b16 %v308, %v304
    %v401 = vpack.c.b16 %v309, %v305
    %v402 = vpack.c.b16 %v310, %v306
    %v403 = vpack.c.b16 %v315, %v311
    %v404 = vpack.c.b16 %v316, %v312
    %v405 = vpack.c.b16 %v317, %v313
    %v406 = vpack.c.b16 %v318, %v314
    %v407 = vpack.c.b16 %v323, %v319
    %v408 = vpack.c.b16 %v324, %v320
    %v409 = vpack.c.b16 %v325, %v321
    %v410 = vpack.c.b16 %v326, %v322
    %v411 = vpack.c.b16 %v331, %v327
    %v412 = vpack.c.b16 %v332, %v328
    %v413 = vpack.c.b16 %v333, %v329
    %v414 = vpack.c.b16 %v334, %v330
    %v415 = vpack.c.b16 %v339, %v335
    %v416 = vpack.c.b16 %v340, %v336
    %v417 = vpack.c.b16 %v341, %v337
    %v418 = vpack.c.b16 %v342, %v338
    %v419 = vpack.c.b16 %v347, %v343
    %v420 = vpack.c.b16 %v348, %v344
    %v421 = vpack.c.b16 %v349, %v345
    %v422 = vpack.c.b16 %v350, %v346
    %v423 = vpack.c.b16 %v355, %v351
    %v424 = vpack.c.b16 %v356, %v352
    %v425 = vpack.c.b16 %v357, %v353
    %v426 = vpack.c.b16 %v358, %v354
    %v427 = vpack.c.b16 %v363, %v359
    %v428 = vpack.c.b16 %v364, %v360
    %v429 = vpack.c.b16 %v365, %v361
    %v430 = vpack.c.b16 %v366, %v362
    %495 = vmatprep.subr.bf16.mxu0 %v368
    %496 = vmatpush1.bf16.msra.mxu0 %v367
    %497 = vmatprep.subr.bf16.mxu0 %v372
    %498 = vmatpush1.bf16.msra.mxu0 %v371
    %499 = vmatprep.subr.bf16.mxu0 %v376
    %500 = vmatpush1.bf16.msra.mxu0 %v375
    %501 = vmatprep.subr.bf16.mxu0 %v380
    %502 = vmatpush1.bf16.msra.mxu0 %v379
    %503 = vmatprep.subr.bf16.mxu0 %v384
    %504 = vmatpush1.bf16.msra.mxu0 %v383
    %505 = vmatprep.subr.bf16.mxu0 %v388
    %506 = vmatpush1.bf16.msra.mxu0 %v387
    %507 = vmatprep.subr.bf16.mxu0 %v392
    %508 = vmatpush1.bf16.msra.mxu0 %v391
    %509 = vmatprep.subr.bf16.mxu0 %v396
    %510 = vmatpush1.bf16.msra.mxu0 %v395
    %511 = vmatprep.subr.bf16.mxu0 %v400
    %512 = vmatpush1.bf16.msra.mxu0 %v399
    %513 = vmatprep.subr.bf16.mxu0 %v404
    %514 = vmatpush1.bf16.msra.mxu0 %v403
    %515 = vmatprep.subr.bf16.mxu0 %v408
    %516 = vmatpush1.bf16.msra.mxu0 %v407
    %517 = vmatprep.subr.bf16.mxu0 %v412
    %518 = vmatpush1.bf16.msra.mxu0 %v411
    %519 = vmatprep.subr.bf16.mxu0 %v416
    %520 = vmatpush1.bf16.msra.mxu0 %v415
    %521 = vmatprep.subr.bf16.mxu0 %v420
    %522 = vmatpush1.bf16.msra.mxu0 %v419
    %523 = vmatprep.subr.bf16.mxu0 %v424
    %524 = vmatpush1.bf16.msra.mxu0 %v423
    %525 = vmatprep.subr.bf16.mxu0 %v428
    %526 = vmatpush1.bf16.msra.mxu0 %v427
    %527 = vmatprep.mubr.bf16.mxu0 %v88
    %528 = vmatmul.mubr.bf16.gmra.mrb[0].mxu0 %v87
    %v529 = vpop.f32.mrb[0].mxu0
    %v530 = vadd.f32 %v158, %v529
    %v531 = vpop.f32.mrb[0].mxu0
    %v532 = vadd.f32 %v162, %v531
    %v533 = vpop.f32.mrb[0].mxu0
    %v534 = vadd.f32 %v158, %v533
    %v535 = vpop.f32.mrb[0].mxu0
    %v536 = vadd.f32 %v162, %v535
    %537 = vdwg.mxu0
    %538 = vmatprep.subr.bf16.mxu0 %v370
    %539 = vmatpush1.bf16.msra.mxu0 %v369
    %540 = vmatprep.subr.bf16.mxu0 %v374
    %541 = vmatpush1.bf16.msra.mxu0 %v373
    %542 = vmatprep.subr.bf16.mxu0 %v378
    %543 = vmatpush1.bf16.msra.mxu0 %v377
    %544 = vmatprep.subr.bf16.mxu0 %v382
    %545 = vmatpush1.bf16.msra.mxu0 %v381
    %546 = vmatprep.subr.bf16.mxu0 %v386
    %547 = vmatpush1.bf16.msra.mxu0 %v385
    %548 = vmatprep.subr.bf16.mxu0 %v390
    %549 = vmatpush1.bf16.msra.mxu0 %v389
    %550 = vmatprep.subr.bf16.mxu0 %v394
    %551 = vmatpush1.bf16.msra.mxu0 %v393
    %552 = vmatprep.subr.bf16.mxu0 %v398
    %553 = vmatpush1.bf16.msra.mxu0 %v397
    %554 = vmatprep.subr.bf16.mxu0 %v402
    %555 = vmatpush1.bf16.msra.mxu0 %v401
    %556 = vmatprep.subr.bf16.mxu0 %v406
    %557 = vmatpush1.bf16.msra.mxu0 %v405
    %558 = vmatprep.subr.bf16.mxu0 %v410
    %559 = vmatpush1.bf16.msra.mxu0 %v409
    %560 = vmatprep.subr.bf16.mxu0 %v414
    %561 = vmatpush1.bf16.msra.mxu0 %v413
    %562 = vmatprep.subr.bf16.mxu0 %v418
    %563 = vmatpush1.bf16.msra.mxu0 %v417
    %564 = vmatprep.subr.bf16.mxu0 %v422
    %565 = vmatpush1.bf16.msra.mxu0 %v421
    %566 = vmatprep.subr.bf16.mxu0 %v426
    %567 = vmatpush1.bf16.msra.mxu0 %v425
    %568 = vmatprep.subr.bf16.mxu0 %v430
    %569 = vmatpush1.bf16.msra.mxu0 %v429
    %570 = vmatprep.mubr.bf16.mxu0 %v88
    %571 = vmatmul.mubr.bf16.gmra.mrb[0].mxu0 %v87
    %v572 = vpop.f32.mrb[0].mxu0
    %v573 = vadd.f32 %v166, %v572
    %v574 = vpop.f32.mrb[0].mxu0
    %v575 = vadd.f32 %v170, %v574
    %v576 = vpop.f32.mrb[0].mxu0
    %v577 = vadd.f32 %v166, %v576
    %v578 = vpop.f32.mrb[0].mxu0
    %v579 = vadd.f32 %v170, %v578
    %580 = vdwg.mxu0
    %v581 = vmax.f32 %v530, 0.0
    %v582 = vmax.f32 %v532, 0.0
    %v583 = vmax.f32 %v573, 0.0
    %v584 = vmax.f32 %v575, 0.0
    %v585 = vmax.f32 %v534, 0.0
    %v586 = vmax.f32 %v536, 0.0
    %v587 = vmax.f32 %v577, 0.0
    %v588 = vmax.f32 %v579, 0.0
    %v589 = vpack.c.bf16 %v585, %v581
    %v590 = vpack.c.bf16 %v586, %v582
    %v591 = vpack.c.bf16 %v587, %v583
    %v592 = vpack.c.bf16 %v588, %v584
    %v593 = vld [vmem:[#allocation7] sm:$0xff]
    %v594 = vld [vmem:[#allocation7 + $0x8] sm:$0xff]
    %v595 = vld [vmem:[#allocation7 + $0x10] sm:$0xff]
    %v596 = vld [vmem:[#allocation7 + $0x18] sm:$0xff]
    %v597 = vld [vmem:[#allocation7 + $0x20] sm:$0xff]
    %v598 = vld [vmem:[#allocation7 + $0x28] sm:$0xff]
    %v599 = vld [vmem:[#allocation7 + $0x30] sm:$0xff]
    %v600 = vld [vmem:[#allocation7 + $0x38] sm:$0xff]
    %v601 = vld [vmem:[#allocation7 + $0x40] sm:$0xff]
    %v602 = vld [vmem:[#allocation7 + $0x48] sm:$0xff]
    %v603 = vld [vmem:[#allocation7 + $0x50] sm:$0xff]
    %v604 = vld [vmem:[#allocation7 + $0x58] sm:$0xff]
    %v605 = vld [vmem:[#allocation7 + $0x60] sm:$0xff]
    %v606 = vld [vmem:[#allocation7 + $0x68] sm:$0xff]
    %v607 = vld [vmem:[#allocation7 + $0x70] sm:$0xff]
    %v608 = vld [vmem:[#allocation7 + $0x78] sm:$0xff]
    %v609 = vld [vmem:[#allocation7 + $0x80] sm:$0xff]
    %v610 = vld [vmem:[#allocation7 + $0x88] sm:$0xff]
    %v611 = vld [vmem:[#allocation7 + $0x90] sm:$0xff]
    %v612 = vld [vmem:[#allocation7 + $0x98] sm:$0xff]
    %v613 = vld [vmem:[#allocation7 + $0xa0] sm:$0xff]
    %v614 = vld [vmem:[#allocation7 + $0xa8] sm:$0xff]
    %v615 = vld [vmem:[#allocation7 + $0xb0] sm:$0xff]
    %v616 = vld [vmem:[#allocation7 + $0xb8] sm:$0xff]
    %v617 = vld [vmem:[#allocation7 + $0xc0] sm:$0xff]
    %v618 = vld [vmem:[#allocation7 + $0xc8] sm:$0xff]
    %v619 = vld [vmem:[#allocation7 + $0xd0] sm:$0xff]
    %v620 = vld [vmem:[#allocation7 + $0xd8] sm:$0xff]
    %v621 = vld [vmem:[#allocation7 + $0xe0] sm:$0xff]
    %v622 = vld [vmem:[#allocation7 + $0xe8] sm:$0xff]
    %v623 = vld [vmem:[#allocation7 + $0xf0] sm:$0xff]
    %v624 = vld [vmem:[#allocation7 + $0xf8] sm:$0xff]
    %v625 = vld [vmem:[#allocation7 + $0x100] sm:$0xff]
    %v626 = vld [vmem:[#allocation7 + $0x108] sm:$0xff]
    %v627 = vld [vmem:[#allocation7 + $0x110] sm:$0xff]
    %v628 = vld [vmem:[#allocation7 + $0x118] sm:$0xff]
    %v629 = vld [vmem:[#allocation7 + $0x120] sm:$0xff]
    %v630 = vld [vmem:[#allocation7 + $0x128] sm:$0xff]
    %v631 = vld [vmem:[#allocation7 + $0x130] sm:$0xff]
    %v632 = vld [vmem:[#allocation7 + $0x138] sm:$0xff]
    %v633 = vld [vmem:[#allocation7 + $0x140] sm:$0xff]
    %v634 = vld [vmem:[#allocation7 + $0x148] sm:$0xff]
    %v635 = vld [vmem:[#allocation7 + $0x150] sm:$0xff]
    %v636 = vld [vmem:[#allocation7 + $0x158] sm:$0xff]
    %v637 = vld [vmem:[#allocation7 + $0x160] sm:$0xff]
    %v638 = vld [vmem:[#allocation7 + $0x168] sm:$0xff]
    %v639 = vld [vmem:[#allocation7 + $0x170] sm:$0xff]
    %v640 = vld [vmem:[#allocation7 + $0x178] sm:$0xff]
    %v641 = vld [vmem:[#allocation7 + $0x180] sm:$0xff]
    %v642 = vld [vmem:[#allocation7 + $0x188] sm:$0xff]
    %v643 = vld [vmem:[#allocation7 + $0x190] sm:$0xff]
    %v644 = vld [vmem:[#allocation7 + $0x198] sm:$0xff]
    %v645 = vld [vmem:[#allocation7 + $0x1a0] sm:$0xff]
    %v646 = vld [vmem:[#allocation7 + $0x1a8] sm:$0xff]
    %v647 = vld [vmem:[#allocation7 + $0x1b0] sm:$0xff]
    %v648 = vld [vmem:[#allocation7 + $0x1b8] sm:$0xff]
    %v649 = vld [vmem:[#allocation7 + $0x1c0] sm:$0xff]
    %v650 = vld [vmem:[#allocation7 + $0x1c8] sm:$0xff]
    %v651 = vld [vmem:[#allocation7 + $0x1d0] sm:$0xff]
    %v652 = vld [vmem:[#allocation7 + $0x1d8] sm:$0xff]
    %v653 = vld [vmem:[#allocation7 + $0x1e0] sm:$0xff]
    %v654 = vld [vmem:[#allocation7 + $0x1e8] sm:$0xff]
    %v655 = vld [vmem:[#allocation7 + $0x1f0] sm:$0xff]
    %v656 = vld [vmem:[#allocation7 + $0x1f8] sm:$0xff]
    %v657 = vld [vmem:[#allocation7 + $0x200] sm:$0xff]
    %v658 = vld [vmem:[#allocation7 + $0x208] sm:$0xff]
    %v659 = vld [vmem:[#allocation7 + $0x210] sm:$0xff]
    %v660 = vld [vmem:[#allocation7 + $0x218] sm:$0xff]
    %v661 = vld [vmem:[#allocation7 + $0x220] sm:$0xff]
    %v662 = vld [vmem:[#allocation7 + $0x228] sm:$0xff]
    %v663 = vld [vmem:[#allocation7 + $0x230] sm:$0xff]
    %v664 = vld [vmem:[#allocation7 + $0x238] sm:$0xff]
    %v665 = vld [vmem:[#allocation7 + $0x240] sm:$0xff]
    %v666 = vld [vmem:[#allocation7 + $0x248] sm:$0xff]
    %v667 = vld [vmem:[#allocation7 + $0x250] sm:$0xff]
    %v668 = vld [vmem:[#allocation7 + $0x258] sm:$0xff]
    %v669 = vld [vmem:[#allocation7 + $0x260] sm:$0xff]
    %v670 = vld [vmem:[#allocation7 + $0x268] sm:$0xff]
    %v671 = vld [vmem:[#allocation7 + $0x270] sm:$0xff]
    %v672 = vld [vmem:[#allocation7 + $0x278] sm:$0xff]
    %v673 = vld [vmem:[#allocation7 + $0x280] sm:$0xff]
    %v674 = vld [vmem:[#allocation7 + $0x288] sm:$0xff]
    %v675 = vld [vmem:[#allocation7 + $0x290] sm:$0xff]
    %v676 = vld [vmem:[#allocation7 + $0x298] sm:$0xff]
    %v677 = vld [vmem:[#allocation7 + $0x2a0] sm:$0xff]
    %v678 = vld [vmem:[#allocation7 + $0x2a8] sm:$0xff]
    %v679 = vld [vmem:[#allocation7 + $0x2b0] sm:$0xff]
    %v680 = vld [vmem:[#allocation7 + $0x2b8] sm:$0xff]
    %v681 = vld [vmem:[#allocation7 + $0x2c0] sm:$0xff]
    %v682 = vld [vmem:[#allocation7 + $0x2c8] sm:$0xff]
    %v683 = vld [vmem:[#allocation7 + $0x2d0] sm:$0xff]
    %v684 = vld [vmem:[#allocation7 + $0x2d8] sm:$0xff]
    %v685 = vld [vmem:[#allocation7 + $0x2e0] sm:$0xff]
    %v686 = vld [vmem:[#allocation7 + $0x2e8] sm:$0xff]
    %v687 = vld [vmem:[#allocation7 + $0x2f0] sm:$0xff]
    %v688 = vld [vmem:[#allocation7 + $0x2f8] sm:$0xff]
    %v689 = vld [vmem:[#allocation7 + $0x300] sm:$0xff]
    %v690 = vld [vmem:[#allocation7 + $0x308] sm:$0xff]
    %v691 = vld [vmem:[#allocation7 + $0x310] sm:$0xff]
    %v692 = vld [vmem:[#allocation7 + $0x318] sm:$0xff]
    %v693 = vld [vmem:[#allocation7 + $0x320] sm:$0xff]
    %v694 = vld [vmem:[#allocation7 + $0x328] sm:$0xff]
    %v695 = vld [vmem:[#allocation7 + $0x330] sm:$0xff]
    %v696 = vld [vmem:[#allocation7 + $0x338] sm:$0xff]
    %v697 = vld [vmem:[#allocation7 + $0x340] sm:$0xff]
    %v698 = vld [vmem:[#allocation7 + $0x348] sm:$0xff]
    %v699 = vld [vmem:[#allocation7 + $0x350] sm:$0xff]
    %v700 = vld [vmem:[#allocation7 + $0x358] sm:$0xff]
    %v701 = vld [vmem:[#allocation7 + $0x360] sm:$0xff]
    %v702 = vld [vmem:[#allocation7 + $0x368] sm:$0xff]
    %v703 = vld [vmem:[#allocation7 + $0x370] sm:$0xff]
    %v704 = vld [vmem:[#allocation7 + $0x378] sm:$0xff]
    %v705 = vld [vmem:[#allocation7 + $0x380] sm:$0xff]
    %v706 = vld [vmem:[#allocation7 + $0x388] sm:$0xff]
    %v707 = vld [vmem:[#allocation7 + $0x390] sm:$0xff]
    %v708 = vld [vmem:[#allocation7 + $0x398] sm:$0xff]
    %v709 = vld [vmem:[#allocation7 + $0x3a0] sm:$0xff]
    %v710 = vld [vmem:[#allocation7 + $0x3a8] sm:$0xff]
    %v711 = vld [vmem:[#allocation7 + $0x3b0] sm:$0xff]
    %v712 = vld [vmem:[#allocation7 + $0x3b8] sm:$0xff]
    %v713 = vld [vmem:[#allocation7 + $0x3c0] sm:$0xff]
    %v714 = vld [vmem:[#allocation7 + $0x3c8] sm:$0xff]
    %v715 = vld [vmem:[#allocation7 + $0x3d0] sm:$0xff]
    %v716 = vld [vmem:[#allocation7 + $0x3d8] sm:$0xff]
    %v717 = vld [vmem:[#allocation7 + $0x3e0] sm:$0xff]
    %v718 = vld [vmem:[#allocation7 + $0x3e8] sm:$0xff]
    %v719 = vld [vmem:[#allocation7 + $0x3f0] sm:$0xff]
    %v720 = vld [vmem:[#allocation7 + $0x3f8] sm:$0xff]
    %v721 = vld [vmem:[%s4] sm:$0xf]
    %v723 = vlaneseq
    %v724 = vshrl.u32 %v723, 7
    %v725 = vsub.s32 0, %v724
    %v726 = vrot.slane %v721, %v725
    %v727 = vlaneseq
    %v728 = vshrl.u32 %v727, 7
    %v729 = vsub.s32 1, %v728
    %v730 = vrot.slane %v721, %v729
    %v731 = vlaneseq
    %v732 = vshrl.u32 %v731, 7
    %v733 = vsub.s32 2, %v732
    %v734 = vrot.slane %v721, %v733
    %v735 = vlaneseq
    %v736 = vshrl.u32 %v735, 7
    %v737 = vsub.s32 3, %v736
    %v738 = vrot.slane %v721, %v737
    %v871 = vunpack.c.l.b16 %v593
    %v872 = vunpack.c.h.b16 %v593
    %v873 = vunpack.c.l.b16 %v594
    %v874 = vunpack.c.h.b16 %v594
    %v875 = vunpack.c.l.b16 %v595
    %v876 = vunpack.c.h.b16 %v595
    %v877 = vunpack.c.l.b16 %v596
    %v878 = vunpack.c.h.b16 %v596
    %v879 = vunpack.c.l.b16 %v597
    %v880 = vunpack.c.h.b16 %v597
    %v881 = vunpack.c.l.b16 %v598
    %v882 = vunpack.c.h.b16 %v598
    %v883 = vunpack.c.l.b16 %v599
    %v884 = vunpack.c.h.b16 %v599
    %v885 = vunpack.c.l.b16 %v600
    %v886 = vunpack.c.h.b16 %v600
    %v887 = vunpack.c.l.b16 %v601
    %v888 = vunpack.c.h.b16 %v601
    %v889 = vunpack.c.l.b16 %v602
    %v890 = vunpack.c.h.b16 %v602
    %v891 = vunpack.c.l.b16 %v603
    %v892 = vunpack.c.h.b16 %v603
    %v893 = vunpack.c.l.b16 %v604
    %v894 = vunpack.c.h.b16 %v604
    %v895 = vunpack.c.l.b16 %v605
    %v896 = vunpack.c.h.b16 %v605
    %v897 = vunpack.c.l.b16 %v606
    %v898 = vunpack.c.h.b16 %v606
    %v899 = vunpack.c.l.b16 %v607
    %v900 = vunpack.c.h.b16 %v607
    %v901 = vunpack.c.l.b16 %v608
    %v902 = vunpack.c.h.b16 %v608
    %v903 = vunpack.c.l.b16 %v609
    %v904 = vunpack.c.h.b16 %v609
    %v905 = vunpack.c.l.b16 %v610
    %v906 = vunpack.c.h.b16 %v610
    %v907 = vunpack.c.l.b16 %v611
    %v908 = vunpack.c.h.b16 %v611
    %v909 = vunpack.c.l.b16 %v612
    %v910 = vunpack.c.h.b16 %v612
    %v911 = vunpack.c.l.b16 %v613
    %v912 = vunpack.c.h.b16 %v613
    %v913 = vunpack.c.l.b16 %v614
    %v914 = vunpack.c.h.b16 %v614
    %v915 = vunpack.c.l.b16 %v615
    %v916 = vunpack.c.h.b16 %v615
    %v917 = vunpack.c.l.b16 %v616
    %v918 = vunpack.c.h.b16 %v616
    %v919 = vunpack.c.l.b16 %v617
    %v920 = vunpack.c.h.b16 %v617
    %v921 = vunpack.c.l.b16 %v618
    %v922 = vunpack.c.h.b16 %v618
    %v923 = vunpack.c.l.b16 %v619
    %v924 = vunpack.c.h.b16 %v619
    %v925 = vunpack.c.l.b16 %v620
    %v926 = vunpack.c.h.b16 %v620
    %v927 = vunpack.c.l.b16 %v621
    %v928 = vunpack.c.h.b16 %v621
    %v929 = vunpack.c.l.b16 %v622
    %v930 = vunpack.c.h.b16 %v622
    %v931 = vunpack.c.l.b16 %v623
    %v932 = vunpack.c.h.b16 %v623
    %v933 = vunpack.c.l.b16 %v624
    %v934 = vunpack.c.h.b16 %v624
    %v935 = vunpack.c.l.b16 %v625
    %v936 = vunpack.c.h.b16 %v625
    %v937 = vunpack.c.l.b16 %v626
    %v938 = vunpack.c.h.b16 %v626
    %v939 = vunpack.c.l.b16 %v627
    %v940 = vunpack.c.h.b16 %v627
    %v941 = vunpack.c.l.b16 %v628
    %v942 = vunpack.c.h.b16 %v628
    %v943 = vunpack.c.l.b16 %v629
    %v944 = vunpack.c.h.b16 %v629
    %v945 = vunpack.c.l.b16 %v630
    %v946 = vunpack.c.h.b16 %v630
    %v947 = vunpack.c.l.b16 %v631
    %v948 = vunpack.c.h.b16 %v631
    %v949 = vunpack.c.l.b16 %v632
    %v950 = vunpack.c.h.b16 %v632
    %v951 = vunpack.c.l.b16 %v633
    %v952 = vunpack.c.h.b16 %v633
    %v953 = vunpack.c.l.b16 %v634
    %v954 = vunpack.c.h.b16 %v634
    %v955 = vunpack.c.l.b16 %v635
    %v956 = vunpack.c.h.b16 %v635
    %v957 = vunpack.c.l.b16 %v636
    %v958 = vunpack.c.h.b16 %v636
    %v959 = vunpack.c.l.b16 %v637
    %v960 = vunpack.c.h.b16 %v637
    %v961 = vunpack.c.l.b16 %v638
    %v962 = vunpack.c.h.b16 %v638
    %v963 = vunpack.c.l.b16 %v639
    %v964 = vunpack.c.h.b16 %v639
    %v965 = vunpack.c.l.b16 %v640
    %v966 = vunpack.c.h.b16 %v640
    %v967 = vunpack.c.l.b16 %v641
    %v968 = vunpack.c.h.b16 %v641
    %v969 = vunpack.c.l.b16 %v642
    %v970 = vunpack.c.h.b16 %v642
    %v971 = vunpack.c.l.b16 %v643
    %v972 = vunpack.c.h.b16 %v643
    %v973 = vunpack.c.l.b16 %v644
    %v974 = vunpack.c.h.b16 %v644
    %v975 = vunpack.c.l.b16 %v645
    %v976 = vunpack.c.h.b16 %v645
    %v977 = vunpack.c.l.b16 %v646
    %v978 = vunpack.c.h.b16 %v646
    %v979 = vunpack.c.l.b16 %v647
    %v980 = vunpack.c.h.b16 %v647
    %v981 = vunpack.c.l.b16 %v648
    %v982 = vunpack.c.h.b16 %v648
    %v983 = vunpack.c.l.b16 %v649
    %v984 = vunpack.c.h.b16 %v649
    %v985 = vunpack.c.l.b16 %v650
    %v986 = vunpack.c.h.b16 %v650
    %v987 = vunpack.c.l.b16 %v651
    %v988 = vunpack.c.h.b16 %v651
    %v989 = vunpack.c.l.b16 %v652
    %v990 = vunpack.c.h.b16 %v652
    %v991 = vunpack.c.l.b16 %v653
    %v992 = vunpack.c.h.b16 %v653
    %v993 = vunpack.c.l.b16 %v654
    %v994 = vunpack.c.h.b16 %v654
    %v995 = vunpack.c.l.b16 %v655
    %v996 = vunpack.c.h.b16 %v655
    %v997 = vunpack.c.l.b16 %v656
    %v998 = vunpack.c.h.b16 %v656
    %v999 = vunpack.c.l.b16 %v657
    %v1000 = vunpack.c.h.b16 %v657
    %v1001 = vunpack.c.l.b16 %v658
    %v1002 = vunpack.c.h.b16 %v658
    %v1003 = vunpack.c.l.b16 %v659
    %v1004 = vunpack.c.h.b16 %v659
    %v1005 = vunpack.c.l.b16 %v660
    %v1006 = vunpack.c.h.b16 %v660
    %v1007 = vunpack.c.l.b16 %v661
    %v1008 = vunpack.c.h.b16 %v661
    %v1009 = vunpack.c.l.b16 %v662
    %v1010 = vunpack.c.h.b16 %v662
    %v1011 = vunpack.c.l.b16 %v663
    %v1012 = vunpack.c.h.b16 %v663
    %v1013 = vunpack.c.l.b16 %v664
    %v1014 = vunpack.c.h.b16 %v664
    %v1015 = vunpack.c.l.b16 %v665
    %v1016 = vunpack.c.h.b16 %v665
    %v1017 = vunpack.c.l.b16 %v666
    %v1018 = vunpack.c.h.b16 %v666
    %v1019 = vunpack.c.l.b16 %v667
    %v1020 = vunpack.c.h.b16 %v667
    %v1021 = vunpack.c.l.b16 %v668
    %v1022 = vunpack.c.h.b16 %v668
    %v1023 = vunpack.c.l.b16 %v669
    %v1024 = vunpack.c.h.b16 %v669
    %v1025 = vunpack.c.l.b16 %v670
    %v1026 = vunpack.c.h.b16 %v670
    %v1027 = vunpack.c.l.b16 %v671
    %v1028 = vunpack.c.h.b16 %v671
    %v1029 = vunpack.c.l.b16 %v672
    %v1030 = vunpack.c.h.b16 %v672
    %v1031 = vunpack.c.l.b16 %v673
    %v1032 = vunpack.c.h.b16 %v673
    %v1033 = vunpack.c.l.b16 %v674
    %v1034 = vunpack.c.h.b16 %v674
    %v1035 = vunpack.c.l.b16 %v675
    %v1036 = vunpack.c.h.b16 %v675
    %v1037 = vunpack.c.l.b16 %v676
    %v1038 = vunpack.c.h.b16 %v676
    %v1039 = vunpack.c.l.b16 %v677
    %v1040 = vunpack.c.h.b16 %v677
    %v1041 = vunpack.c.l.b16 %v678
    %v1042 = vunpack.c.h.b16 %v678
    %v1043 = vunpack.c.l.b16 %v679
    %v1044 = vunpack.c.h.b16 %v679
    %v1045 = vunpack.c.l.b16 %v680
    %v1046 = vunpack.c.h.b16 %v680
    %v1047 = vunpack.c.l.b16 %v681
    %v1048 = vunpack.c.h.b16 %v681
    %v1049 = vunpack.c.l.b16 %v682
    %v1050 = vunpack.c.h.b16 %v682
    %v1051 = vunpack.c.l.b16 %v683
    %v1052 = vunpack.c.h.b16 %v683
    %v1053 = vunpack.c.l.b16 %v684
    %v1054 = vunpack.c.h.b16 %v684
    %v1055 = vunpack.c.l.b16 %v685
    %v1056 = vunpack.c.h.b16 %v685
    %v1057 = vunpack.c.l.b16 %v686
    %v1058 = vunpack.c.h.b16 %v686
    %v1059 = vunpack.c.l.b16 %v687
    %v1060 = vunpack.c.h.b16 %v687
    %v1061 = vunpack.c.l.b16 %v688
    %v1062 = vunpack.c.h.b16 %v688
    %v1063 = vunpack.c.l.b16 %v689
    %v1064 = vunpack.c.h.b16 %v689
    %v1065 = vunpack.c.l.b16 %v690
    %v1066 = vunpack.c.h.b16 %v690
    %v1067 = vunpack.c.l.b16 %v691
    %v1068 = vunpack.c.h.b16 %v691
    %v1069 = vunpack.c.l.b16 %v692
    %v1070 = vunpack.c.h.b16 %v692
    %v1071 = vunpack.c.l.b16 %v693
    %v1072 = vunpack.c.h.b16 %v693
    %v1073 = vunpack.c.l.b16 %v694
    %v1074 = vunpack.c.h.b16 %v694
    %v1075 = vunpack.c.l.b16 %v695
    %v1076 = vunpack.c.h.b16 %v695
    %v1077 = vunpack.c.l.b16 %v696
    %v1078 = vunpack.c.h.b16 %v696
    %v1079 = vunpack.c.l.b16 %v697
    %v1080 = vunpack.c.h.b16 %v697
    %v1081 = vunpack.c.l.b16 %v698
    %v1082 = vunpack.c.h.b16 %v698
    %v1083 = vunpack.c.l.b16 %v699
    %v1084 = vunpack.c.h.b16 %v699
    %v1085 = vunpack.c.l.b16 %v700
    %v1086 = vunpack.c.h.b16 %v700
    %v1087 = vunpack.c.l.b16 %v701
    %v1088 = vunpack.c.h.b16 %v701
    %v1089 = vunpack.c.l.b16 %v702
    %v1090 = vunpack.c.h.b16 %v702
    %v1091 = vunpack.c.l.b16 %v703
    %v1092 = vunpack.c.h.b16 %v703
    %v1093 = vunpack.c.l.b16 %v704
    %v1094 = vunpack.c.h.b16 %v704
    %v1095 = vunpack.c.l.b16 %v705
    %v1096 = vunpack.c.h.b16 %v705
    %v1097 = vunpack.c.l.b16 %v706
    %v1098 = vunpack.c.h.b16 %v706
    %v1099 = vunpack.c.l.b16 %v707
    %v1100 = vunpack.c.h.b16 %v707
    %v1101 = vunpack.c.l.b16 %v708
    %v1102 = vunpack.c.h.b16 %v708
    %v1103 = vunpack.c.l.b16 %v709
    %v1104 = vunpack.c.h.b16 %v709
    %v1105 = vunpack.c.l.b16 %v710
    %v1106 = vunpack.c.h.b16 %v710
    %v1107 = vunpack.c.l.b16 %v711
    %v1108 = vunpack.c.h.b16 %v711
    %v1109 = vunpack.c.l.b16 %v712
    %v1110 = vunpack.c.h.b16 %v712
    %v1111 = vunpack.c.l.b16 %v713
    %v1112 = vunpack.c.h.b16 %v713
    %v1113 = vunpack.c.l.b16 %v714
    %v1114 = vunpack.c.h.b16 %v714
    %v1115 = vunpack.c.l.b16 %v715
    %v1116 = vunpack.c.h.b16 %v715
    %v1117 = vunpack.c.l.b16 %v716
    %v1118 = vunpack.c.h.b16 %v716
    %v1119 = vunpack.c.l.b16 %v717
    %v1120 = vunpack.c.h.b16 %v717
    %v1121 = vunpack.c.l.b16 %v718
    %v1122 = vunpack.c.h.b16 %v718
    %v1123 = vunpack.c.l.b16 %v719
    %v1124 = vunpack.c.h.b16 %v719
    %v1125 = vunpack.c.l.b16 %v720
    %v1126 = vunpack.c.h.b16 %v720
    %v1127 = vpack.c.b16 %v875, %v871
    %v1128 = vpack.c.b16 %v876, %v872
    %v1129 = vpack.c.b16 %v877, %v873
    %v1130 = vpack.c.b16 %v878, %v874
    %v1131 = vpack.c.b16 %v883, %v879
    %v1132 = vpack.c.b16 %v884, %v880
    %v1133 = vpack.c.b16 %v885, %v881
    %v1134 = vpack.c.b16 %v886, %v882
    %v1135 = vpack.c.b16 %v891, %v887
    %v1136 = vpack.c.b16 %v892, %v888
    %v1137 = vpack.c.b16 %v893, %v889
    %v1138 = vpack.c.b16 %v894, %v890
    %v1139 = vpack.c.b16 %v899, %v895
    %v1140 = vpack.c.b16 %v900, %v896
    %v1141 = vpack.c.b16 %v901, %v897
    %v1142 = vpack.c.b16 %v902, %v898
    %v1143 = vpack.c.b16 %v907, %v903
    %v1144 = vpack.c.b16 %v908, %v904
    %v1145 = vpack.c.b16 %v909, %v905
    %v1146 = vpack.c.b16 %v910, %v906
    %v1147 = vpack.c.b16 %v915, %v911
    %v1148 = vpack.c.b16 %v916, %v912
    %v1149 = vpack.c.b16 %v917, %v913
    %v1150 = vpack.c.b16 %v918, %v914
    %v1151 = vpack.c.b16 %v923, %v919
    %v1152 = vpack.c.b16 %v924, %v920
    %v1153 = vpack.c.b16 %v925, %v921
    %v1154 = vpack.c.b16 %v926, %v922
    %v1155 = vpack.c.b16 %v931, %v927
    %v1156 = vpack.c.b16 %v932, %v928
    %v1157 = vpack.c.b16 %v933, %v929
    %v1158 = vpack.c.b16 %v934, %v930
    %v1159 = vpack.c.b16 %v939, %v935
    %v1160 = vpack.c.b16 %v940, %v936
    %v1161 = vpack.c.b16 %v941, %v937
    %v1162 = vpack.c.b16 %v942, %v938
    %v1163 = vpack.c.b16 %v947, %v943
    %v1164 = vpack.c.b16 %v948, %v944
    %v1165 = vpack.c.b16 %v949, %v945
    %v1166 = vpack.c.b16 %v950, %v946
    %v1167 = vpack.c.b16 %v955, %v951
    %v1168 = vpack.c.b16 %v956, %v952
    %v1169 = vpack.c.b16 %v957, %v953
    %v1170 = vpack.c.b16 %v958, %v954
    %v1171 = vpack.c.b16 %v963, %v959
    %v1172 = vpack.c.b16 %v964, %v960
    %v1173 = vpack.c.b16 %v965, %v961
    %v1174 = vpack.c.b16 %v966, %v962
    %v1175 = vpack.c.b16 %v971, %v967
    %v1176 = vpack.c.b16 %v972, %v968
    %v1177 = vpack.c.b16 %v973, %v969
    %v1178 = vpack.c.b16 %v974, %v970
    %v1179 = vpack.c.b16 %v979, %v975
    %v1180 = vpack.c.b16 %v980, %v976
    %v1181 = vpack.c.b16 %v981, %v977
    %v1182 = vpack.c.b16 %v982, %v978
    %v1183 = vpack.c.b16 %v987, %v983
    %v1184 = vpack.c.b16 %v988, %v984
    %v1185 = vpack.c.b16 %v989, %v985
    %v1186 = vpack.c.b16 %v990, %v986
    %v1187 = vpack.c.b16 %v995, %v991
    %v1188 = vpack.c.b16 %v996, %v992
    %v1189 = vpack.c.b16 %v997, %v993
    %v1190 = vpack.c.b16 %v998, %v994
    %v1191 = vpack.c.b16 %v1003, %v999
    %v1192 = vpack.c.b16 %v1004, %v1000
    %v1193 = vpack.c.b16 %v1005, %v1001
    %v1194 = vpack.c.b16 %v1006, %v1002
    %v1195 = vpack.c.b16 %v1011, %v1007
    %v1196 = vpack.c.b16 %v1012, %v1008
    %v1197 = vpack.c.b16 %v1013, %v1009
    %v1198 = vpack.c.b16 %v1014, %v1010
    %v1199 = vpack.c.b16 %v1019, %v1015
    %v1200 = vpack.c.b16 %v1020, %v1016
    %v1201 = vpack.c.b16 %v1021, %v1017
    %v1202 = vpack.c.b16 %v1022, %v1018
    %v1203 = vpack.c.b16 %v1027, %v1023
    %v1204 = vpack.c.b16 %v1028, %v1024
    %v1205 = vpack.c.b16 %v1029, %v1025
    %v1206 = vpack.c.b16 %v1030, %v1026
    %v1207 = vpack.c.b16 %v1035, %v1031
    %v1208 = vpack.c.b16 %v1036, %v1032
    %v1209 = vpack.c.b16 %v1037, %v1033
    %v1210 = vpack.c.b16 %v1038, %v1034
    %v1211 = vpack.c.b16 %v1043, %v1039
    %v1212 = vpack.c.b16 %v1044, %v1040
    %v1213 = vpack.c.b16 %v1045, %v1041
    %v1214 = vpack.c.b16 %v1046, %v1042
    %v1215 = vpack.c.b16 %v1051, %v1047
    %v1216 = vpack.c.b16 %v1052, %v1048
    %v1217 = vpack.c.b16 %v1053, %v1049
    %v1218 = vpack.c.b16 %v1054, %v1050
    %v1219 = vpack.c.b16 %v1059, %v1055
    %v1220 = vpack.c.b16 %v1060, %v1056
    %v1221 = vpack.c.b16 %v1061, %v1057
    %v1222 = vpack.c.b16 %v1062, %v1058
    %v1223 = vpack.c.b16 %v1067, %v1063
    %v1224 = vpack.c.b16 %v1068, %v1064
    %v1225 = vpack.c.b16 %v1069, %v1065
    %v1226 = vpack.c.b16 %v1070, %v1066
    %v1227 = vpack.c.b16 %v1075, %v1071
    %v1228 = vpack.c.b16 %v1076, %v1072
    %v1229 = vpack.c.b16 %v1077, %v1073
    %v1230 = vpack.c.b16 %v1078, %v1074
    %v1231 = vpack.c.b16 %v1083, %v1079
    %v1232 = vpack.c.b16 %v1084, %v1080
    %v1233 = vpack.c.b16 %v1085, %v1081
    %v1234 = vpack.c.b16 %v1086, %v1082
    %v1235 = vpack.c.b16 %v1091, %v1087
    %v1236 = vpack.c.b16 %v1092, %v1088
    %v1237 = vpack.c.b16 %v1093, %v1089
    %v1238 = vpack.c.b16 %v1094, %v1090
    %v1239 = vpack.c.b16 %v1099, %v1095
    %v1240 = vpack.c.b16 %v1100, %v1096
    %v1241 = vpack.c.b16 %v1101, %v1097
    %v1242 = vpack.c.b16 %v1102, %v1098
    %v1243 = vpack.c.b16 %v1107, %v1103
    %v1244 = vpack.c.b16 %v1108, %v1104
    %v1245 = vpack.c.b16 %v1109, %v1105
    %v1246 = vpack.c.b16 %v1110, %v1106
    %v1247 = vpack.c.b16 %v1115, %v1111
    %v1248 = vpack.c.b16 %v1116, %v1112
    %v1249 = vpack.c.b16 %v1117, %v1113
    %v1250 = vpack.c.b16 %v1118, %v1114
    %v1251 = vpack.c.b16 %v1123, %v1119
    %v1252 = vpack.c.b16 %v1124, %v1120
    %v1253 = vpack.c.b16 %v1125, %v1121
    %v1254 = vpack.c.b16 %v1126, %v1122
    %1383 = vmatprep.subr.bf16.mxu0 %v1128
    %1384 = vmatpush1.bf16.msra.mxu0 %v1127
    %1385 = vmatprep.subr.bf16.mxu0 %v1132
    %1386 = vmatpush1.bf16.msra.mxu0 %v1131
    %1387 = vmatprep.subr.bf16.mxu0 %v1136
    %1388 = vmatpush1.bf16.msra.mxu0 %v1135
    %1389 = vmatprep.subr.bf16.mxu0 %v1140
    %1390 = vmatpush1.bf16.msra.mxu0 %v1139
    %1391 = vmatprep.subr.bf16.mxu0 %v1144
    %1392 = vmatpush1.bf16.msra.mxu0 %v1143
    %1393 = vmatprep.subr.bf16.mxu0 %v1148
    %1394 = vmatpush1.bf16.msra.mxu0 %v1147
    %1395 = vmatprep.subr.bf16.mxu0 %v1152
    %1396 = vmatpush1.bf16.msra.mxu0 %v1151
    %1397 = vmatprep.subr.bf16.mxu0 %v1156
    %1398 = vmatpush1.bf16.msra.mxu0 %v1155
    %1399 = vmatprep.subr.bf16.mxu0 %v1160
    %1400 = vmatpush1.bf16.msra.mxu0 %v1159
    %1401 = vmatprep.subr.bf16.mxu0 %v1164
    %1402 = vmatpush1.bf16.msra.mxu0 %v1163
    %1403 = vmatprep.subr.bf16.mxu0 %v1168
    %1404 = vmatpush1.bf16.msra.mxu0 %v1167
    %1405 = vmatprep.subr.bf16.mxu0 %v1172
    %1406 = vmatpush1.bf16.msra.mxu0 %v1171
    %1407 = vmatprep.subr.bf16.mxu0 %v1176
    %1408 = vmatpush1.bf16.msra.mxu0 %v1175
    %1409 = vmatprep.subr.bf16.mxu0 %v1180
    %1410 = vmatpush1.bf16.msra.mxu0 %v1179
    %1411 = vmatprep.subr.bf16.mxu0 %v1184
    %1412 = vmatpush1.bf16.msra.mxu0 %v1183
    %1413 = vmatprep.subr.bf16.mxu0 %v1188
    %1414 = vmatpush1.bf16.msra.mxu0 %v1187
    %1415 = vmatprep.mubr.bf16.mxu0 %v590
    %1416 = vmatmul.mubr.bf16.gmra.mrb[0].mxu0 %v589
    %v1417 = vpop.f32.mrb[0].mxu0
    %v1418 = vadd.f32 %v726, %v1417
    %v1419 = vpop.f32.mrb[0].mxu0
    %v1420 = vadd.f32 %v730, %v1419
    %v1421 = vpop.f32.mrb[0].mxu0
    %v1422 = vadd.f32 %v726, %v1421
    %v1423 = vpop.f32.mrb[0].mxu0
    %v1424 = vadd.f32 %v730, %v1423
    %1425 = vdwg.mxu0
    %1426 = vmatprep.subr.bf16.mxu0 %v1192
    %1427 = vmatpush1.bf16.msra.mxu0 %v1191
    %1428 = vmatprep.subr.bf16.mxu0 %v1196
    %1429 = vmatpush1.bf16.msra.mxu0 %v1195
    %1430 = vmatprep.subr.bf16.mxu0 %v1200
    %1431 = vmatpush1.bf16.msra.mxu0 %v1199
    %1432 = vmatprep.subr.bf16.mxu0 %v1204
    %1433 = vmatpush1.bf16.msra.mxu0 %v1203
    %1434 = vmatprep.subr.bf16.mxu0 %v1208
    %1435 = vmatpush1.bf16.msra.mxu0 %v1207
    %1436 = vmatprep.subr.bf16.mxu0 %v1212
    %1437 = vmatpush1.bf16.msra.mxu0 %v1211
    %1438 = vmatprep.subr.bf16.mxu0 %v1216
    %1439 = vmatpush1.bf16.msra.mxu0 %v1215
    %1440 = vmatprep.subr.bf16.mxu0 %v1220
    %1441 = vmatpush1.bf16.msra.mxu0 %v1219
    %1442 = vmatprep.subr.bf16.mxu0 %v1224
    %1443 = vmatpush1.bf16.msra.mxu0 %v1223
    %1444 = vmatprep.subr.bf16.mxu0 %v1228
    %1445 = vmatpush1.bf16.msra.mxu0 %v1227
    %1446 = vmatprep.subr.bf16.mxu0 %v1232
    %1447 = vmatpush1.bf16.msra.mxu0 %v1231
    %1448 = vmatprep.subr.bf16.mxu0 %v1236
    %1449 = vmatpush1.bf16.msra.mxu0 %v1235
    %1450 = vmatprep.subr.bf16.mxu0 %v1240
    %1451 = vmatpush1.bf16.msra.mxu0 %v1239
    %1452 = vmatprep.subr.bf16.mxu0 %v1244
    %1453 = vmatpush1.bf16.msra.mxu0 %v1243
    %1454 = vmatprep.subr.bf16.mxu0 %v1248
    %1455 = vmatpush1.bf16.msra.mxu0 %v1247
    %1456 = vmatprep.subr.bf16.mxu0 %v1252
    %1457 = vmatpush1.bf16.msra.mxu0 %v1251
    %1458 = vmatprep.mubr.bf16.mxu0 %v592
    %1459 = vmatmul.mubr.bf16.gmra.mrb[0].mxu0 %v591
    %v1460 = vpop.f32.mrb[0].mxu0
    %v1461 = vadd.f32 %v1418, %v1460
    %v1462 = vpop.f32.mrb[0].mxu0
    %v1463 = vadd.f32 %v1420, %v1462
    %v1464 = vpop.f32.mrb[0].mxu0
    %v1465 = vadd.f32 %v1422, %v1464
    %v1466 = vpop.f32.mrb[0].mxu0
    %v1467 = vadd.f32 %v1424, %v1466
    %1468 = vdwg.mxu0
    %1469 = vmatprep.subr.bf16.mxu0 %v1130
    %1470 = vmatpush1.bf16.msra.mxu0 %v1129
    %1471 = vmatprep.subr.bf16.mxu0 %v1134
    %1472 = vmatpush1.bf16.msra.mxu0 %v1133
    %1473 = vmatprep.subr.bf16.mxu0 %v1138
    %1474 = vmatpush1.bf16.msra.mxu0 %v1137
    %1475 = vmatprep.subr.bf16.mxu0 %v1142
    %1476 = vmatpush1.bf16.msra.mxu0 %v1141
    %1477 = vmatprep.subr.bf16.mxu0 %v1146
    %1478 = vmatpush1.bf16.msra.mxu0 %v1145
    %1479 = vmatprep.subr.bf16.mxu0 %v1150
    %1480 = vmatpush1.bf16.msra.mxu0 %v1149
    %1481 = vmatprep.subr.bf16.mxu0 %v1154
    %1482 = vmatpush1.bf16.msra.mxu0 %v1153
    %1483 = vmatprep.subr.bf16.mxu0 %v1158
    %1484 = vmatpush1.bf16.msra.mxu0 %v1157
    %1485 = vmatprep.subr.bf16.mxu0 %v1162
    %1486 = vmatpush1.bf16.msra.mxu0 %v1161
    %1487 = vmatprep.subr.bf16.mxu0 %v1166
    %1488 = vmatpush1.bf16.msra.mxu0 %v1165
    %1489 = vmatprep.subr.bf16.mxu0 %v1170
    %1490 = vmatpush1.bf16.msra.mxu0 %v1169
    %1491 = vmatprep.subr.bf16.mxu0 %v1174
    %1492 = vmatpush1.bf16.msra.mxu0 %v1173
    %1493 = vmatprep.subr.bf16.mxu0 %v1178
    %1494 = vmatpush1.bf16.msra.mxu0 %v1177
    %1495 = vmatprep.subr.bf16.mxu0 %v1182
    %1496 = vmatpush1.bf16.msra.mxu0 %v1181
    %1497 = vmatprep.subr.bf16.mxu0 %v1186
    %1498 = vmatpush1.bf16.msra.mxu0 %v1185
    %1499 = vmatprep.subr.bf16.mxu0 %v1190
    %1500 = vmatpush1.bf16.msra.mxu0 %v1189
    %1501 = vmatprep.mubr.bf16.mxu0 %v590
    %1502 = vmatmul.mubr.bf16.gmra.mrb[0].mxu0 %v589
    %v1503 = vpop.f32.mrb[0].mxu0
    %v1504 = vadd.f32 %v734, %v1503
    %v1505 = vpop.f32.mrb[0].mxu0
    %v1506 = vadd.f32 %v738, %v1505
    %v1507 = vpop.f32.mrb[0].mxu0
    %v1508 = vadd.f32 %v734, %v1507
    %v1509 = vpop.f32.mrb[0].mxu0
    %v1510 = vadd.f32 %v738, %v1509
    %1511 = vdwg.mxu0
    %1512 = vmatprep.subr.bf16.mxu0 %v1194
    %1513 = vmatpush1.bf16.msra.mxu0 %v1193
    %1514 = vmatprep.subr.bf16.mxu0 %v1198
    %1515 = vmatpush1.bf16.msra.mxu0 %v1197
    %1516 = vmatprep.subr.bf16.mxu0 %v1202
    %1517 = vmatpush1.bf16.msra.mxu0 %v1201
    %1518 = vmatprep.subr.bf16.mxu0 %v1206
    %1519 = vmatpush1.bf16.msra.mxu0 %v1205
    %1520 = vmatprep.subr.bf16.mxu0 %v1210
    %1521 = vmatpush1.bf16.msra.mxu0 %v1209
    %1522 = vmatprep.subr.bf16.mxu0 %v1214
    %1523 = vmatpush1.bf16.msra.mxu0 %v1213
    %1524 = vmatprep.subr.bf16.mxu0 %v1218
    %1525 = vmatpush1.bf16.msra.mxu0 %v1217
    %1526 = vmatprep.subr.bf16.mxu0 %v1222
    %1527 = vmatpush1.bf16.msra.mxu0 %v1221
    %1528 = vmatprep.subr.bf16.mxu0 %v1226
    %1529 = vmatpush1.bf16.msra.mxu0 %v1225
    %1530 = vmatprep.subr.bf16.mxu0 %v1230
    %1531 = vmatpush1.bf16.msra.mxu0 %v1229
    %1532 = vmatprep.subr.bf16.mxu0 %v1234
    %1533 = vmatpush1.bf16.msra.mxu0 %v1233
    %1534 = vmatprep.subr.bf16.mxu0 %v1238
    %1535 = vmatpush1.bf16.msra.mxu0 %v1237
    %1536 = vmatprep.subr.bf16.mxu0 %v1242
    %1537 = vmatpush1.bf16.msra.mxu0 %v1241
    %1538 = vmatprep.subr.bf16.mxu0 %v1246
    %1539 = vmatpush1.bf16.msra.mxu0 %v1245
    %1540 = vmatprep.subr.bf16.mxu0 %v1250
    %1541 = vmatpush1.bf16.msra.mxu0 %v1249
    %1542 = vmatprep.subr.bf16.mxu0 %v1254
    %1543 = vmatpush1.bf16.msra.mxu0 %v1253
    %1544 = vmatprep.mubr.bf16.mxu0 %v592
    %1545 = vmatmul.mubr.bf16.gmra.mrb[0].mxu0 %v591
    %v1546 = vpop.f32.mrb[0].mxu0
    %v1547 = vadd.f32 %v1504, %v1546
    %v1548 = vpop.f32.mrb[0].mxu0
    %v1549 = vadd.f32 %v1506, %v1548
    %v1550 = vpop.f32.mrb[0].mxu0
    %v1551 = vadd.f32 %v1508, %v1550
    %v1552 = vpop.f32.mrb[0].mxu0
    %v1553 = vadd.f32 %v1510, %v1552
    %1554 = vdwg.mxu0
    %v1555 = vmax.f32 %v1461, 0.0
    %v1556 = vmax.f32 %v1463, 0.0
    %v1557 = vmax.f32 %v1547, 0.0
    %v1558 = vmax.f32 %v1549, 0.0
    %v1559 = vmax.f32 %v1465, 0.0
    %v1560 = vmax.f32 %v1467, 0.0
    %v1561 = vmax.f32 %v1551, 0.0
    %v1562 = vmax.f32 %v1553, 0.0
    %v1563 = vpack.c.bf16 %v1559, %v1555
    %v1564 = vpack.c.bf16 %v1560, %v1556
    %v1565 = vpack.c.bf16 %v1561, %v1557
    %v1566 = vpack.c.bf16 %v1562, %v1558
    %v1567 = vld [vmem:[#allocation8] sm:$0xf]
    %v1568 = vld [vmem:[#allocation8 + $0x4] sm:$0xf]
    %v1569 = vld [vmem:[#allocation8 + $0x8] sm:$0xf]
    %v1570 = vld [vmem:[#allocation8 + $0xc] sm:$0xf]
    %v1571 = vld [vmem:[#allocation8 + $0x10] sm:$0xf]
    %v1572 = vld [vmem:[#allocation8 + $0x14] sm:$0xf]
    %v1573 = vld [vmem:[#allocation8 + $0x18] sm:$0xf]
    %v1574 = vld [vmem:[#allocation8 + $0x1c] sm:$0xf]
    %v1575 = vld [vmem:[#allocation8 + $0x20] sm:$0xf]
    %v1576 = vld [vmem:[#allocation8 + $0x24] sm:$0xf]
    %v1577 = vld [vmem:[#allocation8 + $0x28] sm:$0xf]
    %v1578 = vld [vmem:[#allocation8 + $0x2c] sm:$0xf]
    %v1579 = vld [vmem:[#allocation8 + $0x30] sm:$0xf]
    %v1580 = vld [vmem:[#allocation8 + $0x34] sm:$0xf]
    %v1581 = vld [vmem:[#allocation8 + $0x38] sm:$0xf]
    %v1582 = vld [vmem:[#allocation8 + $0x3c] sm:$0xf]
    %v1583 = vld [vmem:[#allocation8 + $0x40] sm:$0xf]
    %v1584 = vld [vmem:[#allocation8 + $0x44] sm:$0xf]
    %v1585 = vld [vmem:[#allocation8 + $0x48] sm:$0xf]
    %v1586 = vld [vmem:[#allocation8 + $0x4c] sm:$0xf]
    %v1587 = vld [vmem:[#allocation8 + $0x50] sm:$0xf]
    %v1588 = vld [vmem:[#allocation8 + $0x54] sm:$0xf]
    %v1589 = vld [vmem:[#allocation8 + $0x58] sm:$0xf]
    %v1590 = vld [vmem:[#allocation8 + $0x5c] sm:$0xf]
    %v1591 = vld [vmem:[#allocation8 + $0x60] sm:$0xf]
    %v1592 = vld [vmem:[#allocation8 + $0x64] sm:$0xf]
    %v1593 = vld [vmem:[#allocation8 + $0x68] sm:$0xf]
    %v1594 = vld [vmem:[#allocation8 + $0x6c] sm:$0xf]
    %v1595 = vld [vmem:[#allocation8 + $0x70] sm:$0xf]
    %v1596 = vld [vmem:[#allocation8 + $0x74] sm:$0xf]
    %v1597 = vld [vmem:[#allocation8 + $0x78] sm:$0xf]
    %v1598 = vld [vmem:[#allocation8 + $0x7c] sm:$0xf]
    %v1599 = vld [vmem:[#allocation8 + $0x80] sm:$0xf]
    %v1600 = vld [vmem:[#allocation8 + $0x84] sm:$0xf]
    %v1601 = vld [vmem:[#allocation8 + $0x88] sm:$0xf]
    %v1602 = vld [vmem:[#allocation8 + $0x8c] sm:$0xf]
    %v1603 = vld [vmem:[#allocation8 + $0x90] sm:$0xf]
    %v1604 = vld [vmem:[#allocation8 + $0x94] sm:$0xf]
    %v1605 = vld [vmem:[#allocation8 + $0x98] sm:$0xf]
    %v1606 = vld [vmem:[#allocation8 + $0x9c] sm:$0xf]
    %v1607 = vld [vmem:[#allocation8 + $0xa0] sm:$0xf]
    %v1608 = vld [vmem:[#allocation8 + $0xa4] sm:$0xf]
    %v1609 = vld [vmem:[#allocation8 + $0xa8] sm:$0xf]
    %v1610 = vld [vmem:[#allocation8 + $0xac] sm:$0xf]
    %v1611 = vld [vmem:[#allocation8 + $0xb0] sm:$0xf]
    %v1612 = vld [vmem:[#allocation8 + $0xb4] sm:$0xf]
    %v1613 = vld [vmem:[#allocation8 + $0xb8] sm:$0xf]
    %v1614 = vld [vmem:[#allocation8 + $0xbc] sm:$0xf]
    %v1615 = vld [vmem:[#allocation8 + $0xc0] sm:$0xf]
    %v1616 = vld [vmem:[#allocation8 + $0xc4] sm:$0xf]
    %v1617 = vld [vmem:[#allocation8 + $0xc8] sm:$0xf]
    %v1618 = vld [vmem:[#allocation8 + $0xcc] sm:$0xf]
    %v1619 = vld [vmem:[#allocation8 + $0xd0] sm:$0xf]
    %v1620 = vld [vmem:[#allocation8 + $0xd4] sm:$0xf]
    %v1621 = vld [vmem:[#allocation8 + $0xd8] sm:$0xf]
    %v1622 = vld [vmem:[#allocation8 + $0xdc] sm:$0xf]
    %v1623 = vld [vmem:[#allocation8 + $0xe0] sm:$0xf]
    %v1624 = vld [vmem:[#allocation8 + $0xe4] sm:$0xf]
    %v1625 = vld [vmem:[#allocation8 + $0xe8] sm:$0xf]
    %v1626 = vld [vmem:[#allocation8 + $0xec] sm:$0xf]
    %v1627 = vld [vmem:[#allocation8 + $0xf0] sm:$0xf]
    %v1628 = vld [vmem:[#allocation8 + $0xf4] sm:$0xf]
    %v1629 = vld [vmem:[#allocation8 + $0xf8] sm:$0xf]
    %v1630 = vld [vmem:[#allocation8 + $0xfc] sm:$0xf]
    %v1631 = vld [vmem:[%s6] sm:$0x1]
    %v1633 = vlaneseq
    %v1634 = vshrl.u32 %v1633, 7
    %v1635 = vsub.s32 0, %v1634
    %v1636 = vrot.slane %v1631, %v1635
    %v1702 = vunpack.c.l.b16 %v1567
    %v1703 = vunpack.c.l.b16 %v1568
    %v1704 = vunpack.c.l.b16 %v1569
    %v1705 = vunpack.c.l.b16 %v1570
    %v1706 = vunpack.c.l.b16 %v1571
    %v1707 = vunpack.c.l.b16 %v1572
    %v1708 = vunpack.c.l.b16 %v1573
    %v1709 = vunpack.c.l.b16 %v1574
    %v1710 = vunpack.c.l.b16 %v1575
    %v1711 = vunpack.c.l.b16 %v1576
    %v1712 = vunpack.c.l.b16 %v1577
    %v1713 = vunpack.c.l.b16 %v1578
    %v1714 = vunpack.c.l.b16 %v1579
    %v1715 = vunpack.c.l.b16 %v1580
    %v1716 = vunpack.c.l.b16 %v1581
    %v1717 = vunpack.c.l.b16 %v1582
    %v1718 = vunpack.c.l.b16 %v1583
    %v1719 = vunpack.c.l.b16 %v1584
    %v1720 = vunpack.c.l.b16 %v1585
    %v1721 = vunpack.c.l.b16 %v1586
    %v1722 = vunpack.c.l.b16 %v1587
    %v1723 = vunpack.c.l.b16 %v1588
    %v1724 = vunpack.c.l.b16 %v1589
    %v1725 = vunpack.c.l.b16 %v1590
    %v1726 = vunpack.c.l.b16 %v1591
    %v1727 = vunpack.c.l.b16 %v1592
    %v1728 = vunpack.c.l.b16 %v1593
    %v1729 = vunpack.c.l.b16 %v1594
    %v1730 = vunpack.c.l.b16 %v1595
    %v1731 = vunpack.c.l.b16 %v1596
    %v1732 = vunpack.c.l.b16 %v1597
    %v1733 = vunpack.c.l.b16 %v1598
    %v1734 = vunpack.c.l.b16 %v1599
    %v1735 = vunpack.c.l.b16 %v1600
    %v1736 = vunpack.c.l.b16 %v1601
    %v1737 = vunpack.c.l.b16 %v1602
    %v1738 = vunpack.c.l.b16 %v1603
    %v1739 = vunpack.c.l.b16 %v1604
    %v1740 = vunpack.c.l.b16 %v1605
    %v1741 = vunpack.c.l.b16 %v1606
    %v1742 = vunpack.c.l.b16 %v1607
    %v1743 = vunpack.c.l.b16 %v1608
    %v1744 = vunpack.c.l.b16 %v1609
    %v1745 = vunpack.c.l.b16 %v1610
    %v1746 = vunpack.c.l.b16 %v1611
    %v1747 = vunpack.c.l.b16 %v1612
    %v1748 = vunpack.c.l.b16 %v1613
    %v1749 = vunpack.c.l.b16 %v1614
    %v1750 = vunpack.c.l.b16 %v1615
    %v1751 = vunpack.c.l.b16 %v1616
    %v1752 = vunpack.c.l.b16 %v1617
    %v1753 = vunpack.c.l.b16 %v1618
    %v1754 = vunpack.c.l.b16 %v1619
    %v1755 = vunpack.c.l.b16 %v1620
    %v1756 = vunpack.c.l.b16 %v1621
    %v1757 = vunpack.c.l.b16 %v1622
    %v1758 = vunpack.c.l.b16 %v1623
    %v1759 = vunpack.c.l.b16 %v1624
    %v1760 = vunpack.c.l.b16 %v1625
    %v1761 = vunpack.c.l.b16 %v1626
    %v1762 = vunpack.c.l.b16 %v1627
    %v1763 = vunpack.c.l.b16 %v1628
    %v1764 = vunpack.c.l.b16 %v1629
    %v1765 = vunpack.c.l.b16 %v1630
    %v1766 = vpack.c.b16 %v1703, %v1702
    %v1767 = vpack.c.b16 %v1705, %v1704
    %v1768 = vpack.c.b16 %v1707, %v1706
    %v1769 = vpack.c.b16 %v1709, %v1708
    %v1770 = vpack.c.b16 %v1711, %v1710
    %v1771 = vpack.c.b16 %v1713, %v1712
    %v1772 = vpack.c.b16 %v1715, %v1714
    %v1773 = vpack.c.b16 %v1717, %v1716
    %v1774 = vpack.c.b16 %v1719, %v1718
    %v1775 = vpack.c.b16 %v1721, %v1720
    %v1776 = vpack.c.b16 %v1723, %v1722
    %v1777 = vpack.c.b16 %v1725, %v1724
    %v1778 = vpack.c.b16 %v1727, %v1726
    %v1779 = vpack.c.b16 %v1729, %v1728
    %v1780 = vpack.c.b16 %v1731, %v1730
    %v1781 = vpack.c.b16 %v1733, %v1732
    %v1782 = vpack.c.b16 %v1735, %v1734
    %v1783 = vpack.c.b16 %v1737, %v1736
    %v1784 = vpack.c.b16 %v1739, %v1738
    %v1785 = vpack.c.b16 %v1741, %v1740
    %v1786 = vpack.c.b16 %v1743, %v1742
    %v1787 = vpack.c.b16 %v1745, %v1744
    %v1788 = vpack.c.b16 %v1747, %v1746
    %v1789 = vpack.c.b16 %v1749, %v1748
    %v1790 = vpack.c.b16 %v1751, %v1750
    %v1791 = vpack.c.b16 %v1753, %v1752
    %v1792 = vpack.c.b16 %v1755, %v1754
    %v1793 = vpack.c.b16 %v1757, %v1756
    %v1794 = vpack.c.b16 %v1759, %v1758
    %v1795 = vpack.c.b16 %v1761, %v1760
    %v1796 = vpack.c.b16 %v1763, %v1762
    %v1797 = vpack.c.b16 %v1765, %v1764
    %1830 = vmatprep.subr.bf16.mxu0 0
    %1831 = vmatpush1.bf16.msra.mxu0 %v1766
    %1832 = vmatprep.subr.bf16.mxu0 0
    %1833 = vmatpush1.bf16.msra.mxu0 %v1767
    %1834 = vmatprep.subr.bf16.mxu0 0
    %1835 = vmatpush1.bf16.msra.mxu0 %v1768
    %1836 = vmatprep.subr.bf16.mxu0 0
    %1837 = vmatpush1.bf16.msra.mxu0 %v1769
    %1838 = vmatprep.subr.bf16.mxu0 0
    %1839 = vmatpush1.bf16.msra.mxu0 %v1770
    %1840 = vmatprep.subr.bf16.mxu0 0
    %1841 = vmatpush1.bf16.msra.mxu0 %v1771
    %1842 = vmatprep.subr.bf16.mxu0 0
    %1843 = vmatpush1.bf16.msra.mxu0 %v1772
    %1844 = vmatprep.subr.bf16.mxu0 0
    %1845 = vmatpush1.bf16.msra.mxu0 %v1773
    %1846 = vmatprep.subr.bf16.mxu0 0
    %1847 = vmatpush1.bf16.msra.mxu0 %v1774
    %1848 = vmatprep.subr.bf16.mxu0 0
    %1849 = vmatpush1.bf16.msra.mxu0 %v1775
    %1850 = vmatprep.subr.bf16.mxu0 0
    %1851 = vmatpush1.bf16.msra.mxu0 %v1776
    %1852 = vmatprep.subr.bf16.mxu0 0
    %1853 = vmatpush1.bf16.msra.mxu0 %v1777
    %1854 = vmatprep.subr.bf16.mxu0 0
    %1855 = vmatpush1.bf16.msra.mxu0 %v1778
    %1856 = vmatprep.subr.bf16.mxu0 0
    %1857 = vmatpush1.bf16.msra.mxu0 %v1779
    %1858 = vmatprep.subr.bf16.mxu0 0
    %1859 = vmatpush1.bf16.msra.mxu0 %v1780
    %1860 = vmatprep.subr.bf16.mxu0 0
    %1861 = vmatpush1.bf16.msra.mxu0 %v1781
    %1862 = vmatprep.mubr.bf16.mxu0 %v1564
    %1863 = vmatmul.mubr.bf16.gmra.mrb[0].mxu0 %v1563
    %v1864 = vpop.f32.mrb[0].mxu0
    %v1865 = vadd.f32 %v1636, %v1864
    %v1866 = vpop.f32.mrb[0].mxu0
    %v1867 = vpop.f32.mrb[0].mxu0
    %v1868 = vadd.f32 %v1636, %v1867
    %v1869 = vpop.f32.mrb[0].mxu0
    %1870 = vdwg.mxu0
    %1871 = vmatprep.subr.bf16.mxu0 0
    %1872 = vmatpush1.bf16.msra.mxu0 %v1782
    %1873 = vmatprep.subr.bf16.mxu0 0
    %1874 = vmatpush1.bf16.msra.mxu0 %v1783
    %1875 = vmatprep.subr.bf16.mxu0 0
    %1876 = vmatpush1.bf16.msra.mxu0 %v1784
    %1877 = vmatprep.subr.bf16.mxu0 0
    %1878 = vmatpush1.bf16.msra.mxu0 %v1785
    %1879 = vmatprep.subr.bf16.mxu0 0
    %1880 = vmatpush1.bf16.msra.mxu0 %v1786
    %1881 = vmatprep.subr.bf16.mxu0 0
    %1882 = vmatpush1.bf16.msra.mxu0 %v1787
    %1883 = vmatprep.subr.bf16.mxu0 0
    %1884 = vmatpush1.bf16.msra.mxu0 %v1788
    %1885 = vmatprep.subr.bf16.mxu0 0
    %1886 = vmatpush1.bf16.msra.mxu0 %v1789
    %1887 = vmatprep.subr.bf16.mxu0 0
    %1888 = vmatpush1.bf16.msra.mxu0 %v1790
    %1889 = vmatprep.subr.bf16.mxu0 0
    %1890 = vmatpush1.bf16.msra.mxu0 %v1791
    %1891 = vmatprep.subr.bf16.mxu0 0
    %1892 = vmatpush1.bf16.msra.mxu0 %v1792
    %1893 = vmatprep.subr.bf16.mxu0 0
    %1894 = vmatpush1.bf16.msra.mxu0 %v1793
    %1895 = vmatprep.subr.bf16.mxu0 0
    %1896 = vmatpush1.bf16.msra.mxu0 %v1794
    %1897 = vmatprep.subr.bf16.mxu0 0
    %1898 = vmatpush1.bf16.msra.mxu0 %v1795
    %1899 = vmatprep.subr.bf16.mxu0 0
    %1900 = vmatpush1.bf16.msra.mxu0 %v1796
    %1901 = vmatprep.subr.bf16.mxu0 0
    %1902 = vmatpush1.bf16.msra.mxu0 %v1797
    %1903 = vmatprep.mubr.bf16.mxu0 %v1566
    %1904 = vmatmul.mubr.bf16.gmra.mrb[0].mxu0 %v1565
    %v1905 = vpop.f32.mrb[0].mxu0
    %v1906 = vadd.f32 %v1865, %v1905
    %v1907 = vpop.f32.mrb[0].mxu0
    %v1908 = vpop.f32.mrb[0].mxu0
    %v1909 = vadd.f32 %v1868, %v1908
    %v1910 = vpop.f32.mrb[0].mxu0
    %1911 = vdwg.mxu0
    %1912 = vst [vmem:[#allocation10] sm:$0xff] %v1906
    %1913 = vst [vmem:[#allocation10 + $0x8] sm:$0xff] %v1909
    // Predicated region
    $region46: #{tpu_custom_call.1} parent=1 // pred_check
      _
    $region47: #{tpu_custom_call.1} parent=1 // pred_check_branch
      %1915 = sbr.rel (0) target = $region49
    $region48: #{tpu_custom_call.1} parent=1 // pred_region
      %s1917 = ssub.s32 256, 256
      %1918 = vsyncadd [#allocation4], %s1917
      %s1919 = sshll.u32 [#allocation10], 4
      %s1920 = int_to_ptr.vmem [resolvable:$true] %s1919
      %1925 = dma.vmem_to_hbm [thread:$0]  %s1920, 256, %s7, [#allocation4], 128, 128, 8
    $region49: #{tpu_custom_call.1} parent=1 // pred_fallthru
      _
    // Predicated region
    $region50: #{tpu_custom_call.1} parent=1 // pred_check
      _
    $region51: #{tpu_custom_call.1} parent=1 // pred_check_branch
      %1927 = sbr.rel (0) target = $region53
    $region52: #{tpu_custom_call.1} parent=1 // pred_region
      %1928 = dma.done [#allocation4], 256
    $region53: #{tpu_custom_call.1} parent=1 // pred_fallthru
      _
    %1929 = vsyncpa [#allocation3], 1
    %1930 = vsyncpa [#allocation6], 1
    %1931 = vsyncpa [#allocation9], 1
    %1932 = vsyncpa [#allocation4], 1

// kernel: tpu_custom_call.1
$region0: #{tpu_custom_call.1}
  #allocation0 [shape = 'u32[]', space=smem, size = 0x4, offset = 0x4, fixed_abs, tag = 'smem constant byte address 0x4 - core index']
  #allocation1 [shape = 'u32[144,128]{1,0:T(1,128)}', space=vmem, size = 0x12000, scoped, tag = 'internal scratch']
  %s0 = inlined_call_operand.hbm [shape: f32[16,256], index: 0, kind: input, shape index: {}]
  %s1 = inlined_call_operand.hbm [shape: bf16[256,512], index: 1, kind: input, shape index: {}]
  %s2 = inlined_call_operand.vmem [shape: f32[1,512], index: 2, kind: input, shape index: {}]
  %s3 = inlined_call_operand.hbm [shape: bf16[512,512], index: 3, kind: input, shape index: {}]
  %s4 = inlined_call_operand.vmem [shape: f32[1,512], index: 4, kind: input, shape index: {}]
  %s5 = inlined_call_operand.hbm [shape: bf16[512,128], index: 5, kind: input, shape index: {}]
  %s6 = inlined_call_operand.vmem [shape: f32[1,128], index: 6, kind: input, shape index: {}]
  %s7 = inlined_call_operand.hbm [shape: f32[16,128], index: 7, kind: output, shape index: {}]
  %s8 = sld [smem:[#allocation0]]
  $region54: #{tpu_custom_call.1} parent=0
    _
  %s10 = ssub.s32 1, %s8
  %s11 = scalar_select 0, %s10, %s8
  $region1: #{tpu_custom_call.1} parent=0
    #allocation2 [shape = 'u8[16384]{0}', space=vmem, size = 0x4000, scoped, tag = 'input window, operand 0, single buffered']
    #allocation3 [shape = 's32[1]{0}', space=sflag, size = 0x4, scoped, tag = 'scoped memory for tpu_custom_call.1']
    #allocation4 [shape = 's32[1]{0}', space=sflag, size = 0x4, scoped, tag = 'scoped memory for tpu_custom_call.1']
    #allocation5 [shape = 'u8[262144]{0}', space=vmem, size = 0x40000, scoped, tag = 'input window, operand 1, single buffered']
    #allocation6 [shape = 's32[1]{0}', space=sflag, size = 0x4, scoped, tag = 'scoped memory for tpu_custom_call.1']
    #allocation7 [shape = 'u8[524288]{0}', space=vmem, size = 0x80000, scoped, tag = 'input window, operand 3, single buffered']
    #allocation8 [shape = 'u8[131072]{0}', space=vmem, size = 0x20000, scoped, tag = 'input window, operand 5, single buffered']
    #allocation9 [shape = 's32[1]{0}', space=sflag, size = 0x4, scoped, tag = 'scoped memory for tpu_custom_call.1']
    #allocation10 [shape = 'u8[8192]{0}', space=vmem, size = 0x2000, scoped, tag = 'output window, operand 0, single buffered']
    %12 = vsyncpa [#allocation3], 0
    %13 = vsyncpa [#allocation6], 0
    %14 = vsyncpa [#allocation9], 0
    %15 = vsyncpa [#allocation4], 0
    // Predicated region
    $region2: #{tpu_custom_call.1} parent=1 // pred_check
      _
    $region3: #{tpu_custom_call.1} parent=1 // pred_check_branch
      %17 = sbr.rel (0) target = $region5
    $region4: #{tpu_custom_call.1} parent=1 // pred_region
      %s19 = ssub.s32 512, 512
      %20 = vsyncadd [#allocation3], %s19
      %s21 = sshll.u32 [#allocation2], 4
      %s22 = int_to_ptr.vmem [resolvable:$true] %s21
      %27 = dma.hbm_to_vmem [thread:$0]  %s0, 512, %s22, [#allocation3], 256, 256, 16
    $region5: #{tpu_custom_call.1} parent=1 // pred_fallthru
      _
    // Predicated region
    $region6: #{tpu_custom_call.1} parent=1 // pred_check
      _
    $region7: #{tpu_custom_call.1} parent=1 // pred_check_branch
      %29 = sbr.rel (0) target = $region9
    $region8: #{tpu_custom_call.1} parent=1 // pred_region
      %s31 = ssub.s32 8192, 8192
      %32 = vsyncadd [#allocation6], %s31
      %s33 = sshll.u32 [#allocation5], 4
      %s34 = int_to_ptr.vmem [resolvable:$true] %s33
      %39 = dma.hbm_to_vmem [thread:$0]  %s1, 8192, %s34, [#allocation6], 256, 256, 16
    $region9: #{tpu_custom_call.1} parent=1 // pred_fallthru
      _
    // Predicated region
    $region10: #{tpu_custom_call.1} parent=1 // pred_check
      _
    $region11: #{tpu_custom_call.1} parent=1 // pred_check_branch
      %41 = sbr.rel (0) target = $region13
    $region12: #{tpu_custom_call.1} parent=1 // pred_region
      _
    $region13: #{tpu_custom_call.1} parent=1 // pred_fallthru
      _
    // Predicated region
    $region14: #{tpu_custom_call.1} parent=1 // pred_check
      _
    $region15: #{tpu_custom_call.1} parent=1 // pred_check_branch
      %43 = sbr.rel (0) target = $region17
    $region16: #{tpu_custom_call.1} parent=1 // pred_region
      %s45 = ssub.s32 16384, 16384
      %46 = vsyncadd [#allocation6], %s45
      %s47 = sshll.u32 [#allocation7], 4
      %s48 = int_to_ptr.vmem [resolvable:$true] %s47
      %53 = dma.hbm_to_vmem [thread:$0]  %s3, 16384, %s48, [#allocation6], 256, 256, 16
    $region17: #{tpu_custom_call.1} parent=1 // pred_fallthru
      _
    // Predicated region
    $region18: #{tpu_custom_call.1} parent=1 // pred_check
      _
    $region19: #{tpu_custom_call.1} parent=1 // pred_check_branch
      %55 = sbr.rel (0) target = $region21
    $region20: #{tpu_custom_call.1} parent=1 // pred_region
      _
    $region21: #{tpu_custom_call.1} parent=1 // pred_fallthru
      _
    // Predicated region
    $region22: #{tpu_custom_call.1} parent=1 // pred_check
      _
    $region23: #{tpu_custom_call.1} parent=1 // pred_check_branch
      %57 = sbr.rel (0) target = $region25
    $region24: #{tpu_custom_call.1} parent=1 // pred_region
      %s59 = ssub.s32 4096, 4096
      %60 = vsyncadd [#allocation9], %s59
      %s61 = sshll.u32 [#allocation8], 4
      %s62 = int_to_ptr.vmem [resolvable:$true] %s61
      %67 = dma.hbm_to_vmem [thread:$0]  %s5, 4096, %s62, [#allocation9], 64, 64, 4
    $region25: #{tpu_custom_call.1} parent=1 // pred_fallthru
      _
    // Predicated region
    $region26: #{tpu_custom_call.1} parent=1 // pred_check
      _
    $region27: #{tpu_custom_call.1} parent=1 // pred_check_branch
      %69 = sbr.rel (0) target = $region29
    $region28: #{tpu_custom_call.1} parent=1 // pred_region
      _
    $region29: #{tpu_custom_call.1} parent=1 // pred_fallthru
      _
    // Predicated region
    $region30: #{tpu_custom_call.1} parent=1 // pred_check
      _
    $region31: #{tpu_custom_call.1} parent=1 // pred_check_branch
      %71 = sbr.rel (0) target = $region33
    $region32: #{tpu_custom_call.1} parent=1 // pred_region
      %72 = dma.done [#allocation3], 512
    $region33: #{tpu_custom_call.1} parent=1 // pred_fallthru
      _
    // Predicated region
    $region34: #{tpu_custom_call.1} parent=1 // pred_check
      _
    $region35: #{tpu_custom_call.1} parent=1 // pred_check_branch
      %74 = sbr.rel (0) target = $region37
    $region36: #{tpu_custom_call.1} parent=1 // pred_region
      %75 = dma.done [#allocation6], 8192
    $region37: #{tpu_custom_call.1} parent=1 // pred_fallthru
      _
    // Predicated region
    $region38: #{tpu_custom_call.1} parent=1 // pred_check
      _
    $region39: #{tpu_custom_call.1} parent=1 // pred_check_branch
      %77 = sbr.rel (0) target = $region41
    $region40: #{tpu_custom_call.1} parent=1 // pred_region
      %78 = dma.done [#allocation6], 16384
    $region41: #{tpu_custom_call.1} parent=1 // pred_fallthru
      _
    // Predicated region
    $region42: #{tpu_custom_call.1} parent=1 // pred_check
      _
    $region43: #{tpu_custom_call.1} parent=1 // pred_check_branch
      %80 = sbr.rel (0) target = $region45
    $region44: #{tpu_custom_call.1} parent=1 // pred_region
      %81 = dma.done [#allocation9], 4096
    $region45: #{tpu_custom_call.1} parent=1 // pred_fallthru
      _
    %v83 = vld [vmem:[#allocation2] sm:$0xff]
    %v84 = vld [vmem:[#allocation2 + $0x8] sm:$0xff]
    %v85 = vld [vmem:[#allocation2 + $0x10] sm:$0xff]
    %v86 = vld [vmem:[#allocation2 + $0x18] sm:$0xff]
    %v87 = vpack.c.bf16 %v85, %v83
    %v88 = vpack.c.bf16 %v86, %v84
    %v89 = vld [vmem:[#allocation5] sm:$0xff]
    %v90 = vld [vmem:[#allocation5 + $0x8] sm:$0xff]
    %v91 = vld [vmem:[#allocation5 + $0x10] sm:$0xff]
    %v92 = vld [vmem:[#allocation5 + $0x18] sm:$0xff]
    %v93 = vld [vmem:[#allocation5 + $0x20] sm:$0xff]
    %v94 = vld [vmem:[#allocation5 + $0x28] sm:$0xff]
    %v95 = vld [vmem:[#allocation5 + $0x30] sm:$0xff]
    %v96 = vld [vmem:[#allocation5 + $0x38] sm:$0xff]
    %v97 = vld [vmem:[#allocation5 + $0x40] sm:$0xff]
    %v98 = vld [vmem:[#allocation5 + $0x48] sm:$0xff]
    %v99 = vld [vmem:[#allocation5 + $0x50] sm:$0xff]
    %v100 = vld [vmem:[#allocation5 + $0x58] sm:$0xff]
    %v101 = vld [vmem:[#allocation5 + $0x60] sm:$0xff]
    %v102 = vld [vmem:[#allocation5 + $0x68] sm:$0xff]
    %v103 = vld [vmem:[#allocation5 + $0x70] sm:$0xff]
    %v104 = vld [vmem:[#allocation5 + $0x78] sm:$0xff]
    %v105 = vld [vmem:[#allocation5 + $0x80] sm:$0xff]
    %v106 = vld [vmem:[#allocation5 + $0x88] sm:$0xff]
    %v107 = vld [vmem:[#allocation5 + $0x90] sm:$0xff]
    %v108 = vld [vmem:[#allocation5 + $0x98] sm:$0xff]
    %v109 = vld [vmem:[#allocation5 + $0xa0] sm:$0xff]
    %v110 = vld [vmem:[#allocation5 + $0xa8] sm:$0xff]
    %v111 = vld [vmem:[#allocation5 + $0xb0] sm:$0xff]
    %v112 = vld [vmem:[#allocation5 + $0xb8] sm:$0xff]
    %v113 = vld [vmem:[#allocation5 + $0xc0] sm:$0xff]
    %v114 = vld [vmem:[#allocation5 + $0xc8] sm:$0xff]
    %v115 = vld [vmem:[#allocation5 + $0xd0] sm:$0xff]
    %v116 = vld [vmem:[#allocation5 + $0xd8] sm:$0xff]
    %v117 = vld [vmem:[#allocation5 + $0xe0] sm:$0xff]
    %v118 = vld [vmem:[#allocation5 + $0xe8] sm:$0xff]
    %v119 = vld [vmem:[#allocation5 + $0xf0] sm:$0xff]
    %v120 = vld [vmem:[#allocation5 + $0xf8] sm:$0xff]
    %v121 = vld [vmem:[#allocation5 + $0x100] sm:$0xff]
    %v122 = vld [vmem:[#allocation5 + $0x108] sm:$0xff]
    %v123 = vld [vmem:[#allocation5 + $0x110] sm:$0xff]
    %v124 = vld [vmem:[#allocation5 + $0x118] sm:$0xff]
    %v125 = vld [vmem:[#allocation5 + $0x120] sm:$0xff]
    %v126 = vld [vmem:[#allocation5 + $0x128] sm:$0xff]
    %v127 = vld [vmem:[#allocation5 + $0x130] sm:$0xff]
    %v128 = vld [vmem:[#allocation5 + $0x138] sm:$0xff]
    %v129 = vld [vmem:[#allocation5 + $0x140] sm:$0xff]
    %v130 = vld [vmem:[#allocation5 + $0x148] sm:$0xff]
    %v131 = vld [vmem:[#allocation5 + $0x150] sm:$0xff]
    %v132 = vld [vmem:[#allocation5 + $0x158] sm:$0xff]
    %v133 = vld [vmem:[#allocation5 + $0x160] sm:$0xff]
    %v134 = vld [vmem:[#allocation5 + $0x168] sm:$0xff]
    %v135 = vld [vmem:[#allocation5 + $0x170] sm:$0xff]
    %v136 = vld [vmem:[#allocation5 + $0x178] sm:$0xff]
    %v137 = vld [vmem:[#allocation5 + $0x180] sm:$0xff]
    %v138 = vld [vmem:[#allocation5 + $0x188] sm:$0xff]
    %v139 = vld [vmem:[#allocation5 + $0x190] sm:$0xff]
    %v140 = vld [vmem:[#allocation5 + $0x198] sm:$0xff]
    %v141 = vld [vmem:[#allocation5 + $0x1a0] sm:$0xff]
    %v142 = vld [vmem:[#allocation5 + $0x1a8] sm:$0xff]
    %v143 = vld [vmem:[#allocation5 + $0x1b0] sm:$0xff]
    %v144 = vld [vmem:[#allocation5 + $0x1b8] sm:$0xff]
    %v145 = vld [vmem:[#allocation5 + $0x1c0] sm:$0xff]
    %v146 = vld [vmem:[#allocation5 + $0x1c8] sm:$0xff]
    %v147 = vld [vmem:[#allocation5 + $0x1d0] sm:$0xff]
    %v148 = vld [vmem:[#allocation5 + $0x1d8] sm:$0xff]
    %v149 = vld [vmem:[#allocation5 + $0x1e0] sm:$0xff]
    %v150 = vld [vmem:[#allocation5 + $0x1e8] sm:$0xff]
    %v151 = vld [vmem:[#allocation5 + $0x1f0] sm:$0xff]
    %v152 = vld [vmem:[#allocation5 + $0x1f8] sm:$0xff]
    %v153 = vld [vmem:[%s2] sm:$0xf]
    %v155 = vlaneseq
    %v156 = vshrl.u32 %v155, 7
    %v157 = vsub.s32 0, %v156
    %v158 = vrot.slane %v153, %v157
    %v159 = vlaneseq
    %v160 = vshrl.u32 %v159, 7
    %v161 = vsub.s32 1, %v160
    %v162 = vrot.slane %v153, %v161
    %v163 = vlaneseq
    %v164 = vshrl.u32 %v163, 7
    %v165 = vsub.s32 2, %v164
    %v166 = vrot.slane %v153, %v165
    %v167 = vlaneseq
    %v168 = vshrl.u32 %v167, 7
    %v169 = vsub.s32 3, %v168
    %v170 = vrot.slane %v153, %v169
    %v239 = vunpack.c.l.b16 %v89
    %v240 = vunpack.c.h.b16 %v89
    %v241 = vunpack.c.l.b16 %v90
    %v242 = vunpack.c.h.b16 %v90
    %v243 = vunpack.c.l.b16 %v91
    %v244 = vunpack.c.h.b16 %v91
    %v245 = vunpack.c.l.b16 %v92
    %v246 = vunpack.c.h.b16 %v92
    %v247 = vunpack.c.l.b16 %v93
    %v248 = vunpack.c.h.b16 %v93
    %v249 = vunpack.c.l.b16 %v94
    %v250 = vunpack.c.h.b16 %v94
    %v251 = vunpack.c.l.b16 %v95
    %v252 = vunpack.c.h.b16 %v95
    %v253 = vunpack.c.l.b16 %v96
    %v254 = vunpack.c.h.b16 %v96
    %v255 = vunpack.c.l.b16 %v97
    %v256 = vunpack.c.h.b16 %v97
    %v257 = vunpack.c.l.b16 %v98
    %v258 = vunpack.c.h.b16 %v98
    %v259 = vunpack.c.l.b16 %v99
    %v260 = vunpack.c.h.b16 %v99
    %v261 = vunpack.c.l.b16 %v100
    %v262 = vunpack.c.h.b16 %v100
    %v263 = vunpack.c.l.b16 %v101
    %v264 = vunpack.c.h.b16 %v101
    %v265 = vunpack.c.l.b16 %v102
    %v266 = vunpack.c.h.b16 %v102
    %v267 = vunpack.c.l.b16 %v103
    %v268 = vunpack.c.h.b16 %v103
    %v269 = vunpack.c.l.b16 %v104
    %v270 = vunpack.c.h.b16 %v104
    %v271 = vunpack.c.l.b16 %v105
    %v272 = vunpack.c.h.b16 %v105
    %v273 = vunpack.c.l.b16 %v106
    %v274 = vunpack.c.h.b16 %v106
    %v275 = vunpack.c.l.b16 %v107
    %v276 = vunpack.c.h.b16 %v107
    %v277 = vunpack.c.l.b16 %v108
    %v278 = vunpack.c.h.b16 %v108
    %v279 = vunpack.c.l.b16 %v109
    %v280 = vunpack.c.h.b16 %v109
    %v281 = vunpack.c.l.b16 %v110
    %v282 = vunpack.c.h.b16 %v110
    %v283 = vunpack.c.l.b16 %v111
    %v284 = vunpack.c.h.b16 %v111
    %v285 = vunpack.c.l.b16 %v112
    %v286 = vunpack.c.h.b16 %v112
    %v287 = vunpack.c.l.b16 %v113
    %v288 = vunpack.c.h.b16 %v113
    %v289 = vunpack.c.l.b16 %v114
    %v290 = vunpack.c.h.b16 %v114
    %v291 = vunpack.c.l.b16 %v115
    %v292 = vunpack.c.h.b16 %v115
    %v293 = vunpack.c.l.b16 %v116
    %v294 = vunpack.c.h.b16 %v116
    %v295 = vunpack.c.l.b16 %v117
    %v296 = vunpack.c.h.b16 %v117
    %v297 = vunpack.c.l.b16 %v118
    %v298 = vunpack.c.h.b16 %v118
    %v299 = vunpack.c.l.b16 %v119
    %v300 = vunpack.c.h.b16 %v119
    %v301 = vunpack.c.l.b16 %v120
    %v302 = vunpack.c.h.b16 %v120
    %v303 = vunpack.c.l.b16 %v121
    %v304 = vunpack.c.h.b16 %v121
    %v305 = vunpack.c.l.b16 %v122
    %v306 = vunpack.c.h.b16 %v122
    %v307 = vunpack.c.l.b16 %v123
    %v308 = vunpack.c.h.b16 %v123
    %v309 = vunpack.c.l.b16 %v124
    %v310 = vunpack.c.h.b16 %v124
    %v311 = vunpack.c.l.b16 %v125
    %v312 = vunpack.c.h.b16 %v125
    %v313 = vunpack.c.l.b16 %v126
    %v314 = vunpack.c.h.b16 %v126
    %v315 = vunpack.c.l.b16 %v127
    %v316 = vunpack.c.h.b16 %v127
    %v317 = vunpack.c.l.b16 %v128
    %v318 = vunpack.c.h.b16 %v128
    %v319 = vunpack.c.l.b16 %v129
    %v320 = vunpack.c.h.b16 %v129
    %v321 = vunpack.c.l.b16 %v130
    %v322 = vunpack.c.h.b16 %v130
    %v323 = vunpack.c.l.b16 %v131
    %v324 = vunpack.c.h.b16 %v131
    %v325 = vunpack.c.l.b16 %v132
    %v326 = vunpack.c.h.b16 %v132
    %v327 = vunpack.c.l.b16 %v133
    %v328 = vunpack.c.h.b16 %v133
    %v329 = vunpack.c.l.b16 %v134
    %v330 = vunpack.c.h.b16 %v134
    %v331 = vunpack.c.l.b16 %v135
    %v332 = vunpack.c.h.b16 %v135
    %v333 = vunpack.c.l.b16 %v136
    %v334 = vunpack.c.h.b16 %v136
    %v335 = vunpack.c.l.b16 %v137
    %v336 = vunpack.c.h.b16 %v137
    %v337 = vunpack.c.l.b16 %v138
    %v338 = vunpack.c.h.b16 %v138
    %v339 = vunpack.c.l.b16 %v139
    %v340 = vunpack.c.h.b16 %v139
    %v341 = vunpack.c.l.b16 %v140
    %v342 = vunpack.c.h.b16 %v140
    %v343 = vunpack.c.l.b16 %v141
    %v344 = vunpack.c.h.b16 %v141
    %v345 = vunpack.c.l.b16 %v142
    %v346 = vunpack.c.h.b16 %v142
    %v347 = vunpack.c.l.b16 %v143
    %v348 = vunpack.c.h.b16 %v143
    %v349 = vunpack.c.l.b16 %v144
    %v350 = vunpack.c.h.b16 %v144
    %v351 = vunpack.c.l.b16 %v145
    %v352 = vunpack.c.h.b16 %v145
    %v353 = vunpack.c.l.b16 %v146
    %v354 = vunpack.c.h.b16 %v146
    %v355 = vunpack.c.l.b16 %v147
    %v356 = vunpack.c.h.b16 %v147
    %v357 = vunpack.c.l.b16 %v148
    %v358 = vunpack.c.h.b16 %v148
    %v359 = vunpack.c.l.b16 %v149
    %v360 = vunpack.c.h.b16 %v149
    %v361 = vunpack.c.l.b16 %v150
    %v362 = vunpack.c.h.b16 %v150
    %v363 = vunpack.c.l.b16 %v151
    %v364 = vunpack.c.h.b16 %v151
    %v365 = vunpack.c.l.b16 %v152
    %v366 = vunpack.c.h.b16 %v152
    %v367 = vpack.c.b16 %v243, %v239
    %v368 = vpack.c.b16 %v244, %v240
    %v369 = vpack.c.b16 %v245, %v241
    %v370 = vpack.c.b16 %v246, %v242
    %v371 = vpack.c.b16 %v251, %v247
    %v372 = vpack.c.b16 %v252, %v248
    %v373 = vpack.c.b16 %v253, %v249
    %v374 = vpack.c.b16 %v254, %v250
    %v375 = vpack.c.b16 %v259, %v255
    %v376 = vpack.c.b16 %v260, %v256
    %v377 = vpack.c.b16 %v261, %v257
    %v378 = vpack.c.b16 %v262, %v258
    %v379 = vpack.c.b16 %v267, %v263
    %v380 = vpack.c.b16 %v268, %v264
    %v381 = vpack.c.b16 %v269, %v265
    %v382 = vpack.c.b16 %v270, %v266
    %v383 = vpack.c.b16 %v275, %v271
    %v384 = vpack.c.b16 %v276, %v272
    %v385 = vpack.c.b16 %v277, %v273
    %v386 = vpack.c.b16 %v278, %v274
    %v387 = vpack.c.b16 %v283, %v279
    %v388 = vpack.c.b16 %v284, %v280
    %v389 = vpack.c.b16 %v285, %v281
    %v390 = vpack.c.b16 %v286, %v282
    %v391 = vpack.c.b16 %v291, %v287
    %v392 = vpack.c.b16 %v292, %v288
    %v393 = vpack.c.b16 %v293, %v289
    %v394 = vpack.c.b16 %v294, %v290
    %v395 = vpack.c.b16 %v299, %v295
    %v396 = vpack.c.b16 %v300, %v296
    %v397 = vpack.c.b16 %v301, %v297
    %v398 = vpack.c.b16 %v302, %v298
    %v399 = vpack.c.b16 %v307, %v303
    %v400 = vpack.c.b16 %v308, %v304
    %v401 = vpack.c.b16 %v309, %v305
    %v402 = vpack.c.b16 %v310, %v306
    %v403 = vpack.c.b16 %v315, %v311
    %v404 = vpack.c.b16 %v316, %v312
    %v405 = vpack.c.b16 %v317, %v313
    %v406 = vpack.c.b16 %v318, %v314
    %v407 = vpack.c.b16 %v323, %v319
    %v408 = vpack.c.b16 %v324, %v320
    %v409 = vpack.c.b16 %v325, %v321
    %v410 = vpack.c.b16 %v326, %v322
    %v411 = vpack.c.b16 %v331, %v327
    %v412 = vpack.c.b16 %v332, %v328
    %v413 = vpack.c.b16 %v333, %v329
    %v414 = vpack.c.b16 %v334, %v330
    %v415 = vpack.c.b16 %v339, %v335
    %v416 = vpack.c.b16 %v340, %v336
    %v417 = vpack.c.b16 %v341, %v337
    %v418 = vpack.c.b16 %v342, %v338
    %v419 = vpack.c.b16 %v347, %v343
    %v420 = vpack.c.b16 %v348, %v344
    %v421 = vpack.c.b16 %v349, %v345
    %v422 = vpack.c.b16 %v350, %v346
    %v423 = vpack.c.b16 %v355, %v351
    %v424 = vpack.c.b16 %v356, %v352
    %v425 = vpack.c.b16 %v357, %v353
    %v426 = vpack.c.b16 %v358, %v354
    %v427 = vpack.c.b16 %v363, %v359
    %v428 = vpack.c.b16 %v364, %v360
    %v429 = vpack.c.b16 %v365, %v361
    %v430 = vpack.c.b16 %v366, %v362
    %495 = vmatprep.subr.bf16.mxu0 %v368
    %496 = vmatpush1.bf16.msra.mxu0 %v367
    %497 = vmatprep.subr.bf16.mxu0 %v372
    %498 = vmatpush1.bf16.msra.mxu0 %v371
    %499 = vmatprep.subr.bf16.mxu0 %v376
    %500 = vmatpush1.bf16.msra.mxu0 %v375
    %501 = vmatprep.subr.bf16.mxu0 %v380
    %502 = vmatpush1.bf16.msra.mxu0 %v379
    %503 = vmatprep.subr.bf16.mxu0 %v384
    %504 = vmatpush1.bf16.msra.mxu0 %v383
    %505 = vmatprep.subr.bf16.mxu0 %v388
    %506 = vmatpush1.bf16.msra.mxu0 %v387
    %507 = vmatprep.subr.bf16.mxu0 %v392
    %508 = vmatpush1.bf16.msra.mxu0 %v391
    %509 = vmatprep.subr.bf16.mxu0 %v396
    %510 = vmatpush1.bf16.msra.mxu0 %v395
    %511 = vmatprep.subr.bf16.mxu0 %v400
    %512 = vmatpush1.bf16.msra.mxu0 %v399
    %513 = vmatprep.subr.bf16.mxu0 %v404
    %514 = vmatpush1.bf16.msra.mxu0 %v403
    %515 = vmatprep.subr.bf16.mxu0 %v408
    %516 = vmatpush1.bf16.msra.mxu0 %v407
    %517 = vmatprep.subr.bf16.mxu0 %v412
    %518 = vmatpush1.bf16.msra.mxu0 %v411
    %519 = vmatprep.subr.bf16.mxu0 %v416
    %520 = vmatpush1.bf16.msra.mxu0 %v415
    %521 = vmatprep.subr.bf16.mxu0 %v420
    %522 = vmatpush1.bf16.msra.mxu0 %v419
    %523 = vmatprep.subr.bf16.mxu0 %v424
    %524 = vmatpush1.bf16.msra.mxu0 %v423
    %525 = vmatprep.subr.bf16.mxu0 %v428
    %526 = vmatpush1.bf16.msra.mxu0 %v427
    %527 = vmatprep.mubr.bf16.mxu0 %v88
    %528 = vmatmul.mubr.bf16.gmra.mrb[0].mxu0 %v87
    %v529 = vpop.f32.mrb[0].mxu0
    %v530 = vadd.f32 %v158, %v529
    %v531 = vpop.f32.mrb[0].mxu0
    %v532 = vadd.f32 %v162, %v531
    %v533 = vpop.f32.mrb[0].mxu0
    %v534 = vadd.f32 %v158, %v533
    %v535 = vpop.f32.mrb[0].mxu0
    %v536 = vadd.f32 %v162, %v535
    %537 = vdwg.mxu0
    %538 = vmatprep.subr.bf16.mxu0 %v370
    %539 = vmatpush1.bf16.msra.mxu0 %v369
    %540 = vmatprep.subr.bf16.mxu0 %v374
    %541 = vmatpush1.bf16.msra.mxu0 %v373
    %542 = vmatprep.subr.bf16.mxu0 %v378
    %543 = vmatpush1.bf16.msra.mxu0 %v377
    %544 = vmatprep.subr.bf16.mxu0 %v382
    %545 = vmatpush1.bf16.msra.mxu0 %v381
    %546 = vmatprep.subr.bf16.mxu0 %v386
    %547 = vmatpush1.bf16.msra.mxu0 %v385
    %548 = vmatprep.subr.bf16.mxu0 %v390
    %549 = vmatpush1.bf16.msra.mxu0 %v389
    %550 = vmatprep.subr.bf16.mxu0 %v394
    %551 = vmatpush1.bf16.msra.mxu0 %v393
    %552 = vmatprep.subr.bf16.mxu0 %v398
    %553 = vmatpush1.bf16.msra.mxu0 %v397
    %554 = vmatprep.subr.bf16.mxu0 %v402
    %555 = vmatpush1.bf16.msra.mxu0 %v401
    %556 = vmatprep.subr.bf16.mxu0 %v406
    %557 = vmatpush1.bf16.msra.mxu0 %v405
    %558 = vmatprep.subr.bf16.mxu0 %v410
    %559 = vmatpush1.bf16.msra.mxu0 %v409
    %560 = vmatprep.subr.bf16.mxu0 %v414
    %561 = vmatpush1.bf16.msra.mxu0 %v413
    %562 = vmatprep.subr.bf16.mxu0 %v418
    %563 = vmatpush1.bf16.msra.mxu0 %v417
    %564 = vmatprep.subr.bf16.mxu0 %v422
    %565 = vmatpush1.bf16.msra.mxu0 %v421
    %566 = vmatprep.subr.bf16.mxu0 %v426
    %567 = vmatpush1.bf16.msra.mxu0 %v425
    %568 = vmatprep.subr.bf16.mxu0 %v430
    %569 = vmatpush1.bf16.msra.mxu0 %v429
    %570 = vmatprep.mubr.bf16.mxu0 %v88
    %571 = vmatmul.mubr.bf16.gmra.mrb[0].mxu0 %v87
    %v572 = vpop.f32.mrb[0].mxu0
    %v573 = vadd.f32 %v166, %v572
    %v574 = vpop.f32.mrb[0].mxu0
    %v575 = vadd.f32 %v170, %v574
    %v576 = vpop.f32.mrb[0].mxu0
    %v577 = vadd.f32 %v166, %v576
    %v578 = vpop.f32.mrb[0].mxu0
    %v579 = vadd.f32 %v170, %v578
    %580 = vdwg.mxu0
    %v581 = vmax.f32 %v530, 0.0
    %v582 = vmax.f32 %v532, 0.0
    %v583 = vmax.f32 %v573, 0.0
    %v584 = vmax.f32 %v575, 0.0
    %v585 = vmax.f32 %v534, 0.0
    %v586 = vmax.f32 %v536, 0.0
    %v587 = vmax.f32 %v577, 0.0
    %v588 = vmax.f32 %v579, 0.0
    %v589 = vpack.c.bf16 %v585, %v581
    %v590 = vpack.c.bf16 %v586, %v582
    %v591 = vpack.c.bf16 %v587, %v583
    %v592 = vpack.c.bf16 %v588, %v584
    %v593 = vld [vmem:[#allocation7] sm:$0xff]
    %v594 = vld [vmem:[#allocation7 + $0x8] sm:$0xff]
    %v595 = vld [vmem:[#allocation7 + $0x10] sm:$0xff]
    %v596 = vld [vmem:[#allocation7 + $0x18] sm:$0xff]
    %v597 = vld [vmem:[#allocation7 + $0x20] sm:$0xff]
    %v598 = vld [vmem:[#allocation7 + $0x28] sm:$0xff]
    %v599 = vld [vmem:[#allocation7 + $0x30] sm:$0xff]
    %v600 = vld [vmem:[#allocation7 + $0x38] sm:$0xff]
    %v601 = vld [vmem:[#allocation7 + $0x40] sm:$0xff]
    %v602 = vld [vmem:[#allocation7 + $0x48] sm:$0xff]
    %v603 = vld [vmem:[#allocation7 + $0x50] sm:$0xff]
    %v604 = vld [vmem:[#allocation7 + $0x58] sm:$0xff]
    %v605 = vld [vmem:[#allocation7 + $0x60] sm:$0xff]
    %v606 = vld [vmem:[#allocation7 + $0x68] sm:$0xff]
    %v607 = vld [vmem:[#allocation7 + $0x70] sm:$0xff]
    %v608 = vld [vmem:[#allocation7 + $0x78] sm:$0xff]
    %v609 = vld [vmem:[#allocation7 + $0x80] sm:$0xff]
    %v610 = vld [vmem:[#allocation7 + $0x88] sm:$0xff]
    %v611 = vld [vmem:[#allocation7 + $0x90] sm:$0xff]
    %v612 = vld [vmem:[#allocation7 + $0x98] sm:$0xff]
    %v613 = vld [vmem:[#allocation7 + $0xa0] sm:$0xff]
    %v614 = vld [vmem:[#allocation7 + $0xa8] sm:$0xff]
    %v615 = vld [vmem:[#allocation7 + $0xb0] sm:$0xff]
    %v616 = vld [vmem:[#allocation7 + $0xb8] sm:$0xff]
    %v617 = vld [vmem:[#allocation7 + $0xc0] sm:$0xff]
    %v618 = vld [vmem:[#allocation7 + $0xc8] sm:$0xff]
    %v619 = vld [vmem:[#allocation7 + $0xd0] sm:$0xff]
    %v620 = vld [vmem:[#allocation7 + $0xd8] sm:$0xff]
    %v621 = vld [vmem:[#allocation7 + $0xe0] sm:$0xff]
    %v622 = vld [vmem:[#allocation7 + $0xe8] sm:$0xff]
    %v623 = vld [vmem:[#allocation7 + $0xf0] sm:$0xff]
    %v624 = vld [vmem:[#allocation7 + $0xf8] sm:$0xff]
    %v625 = vld [vmem:[#allocation7 + $0x100] sm:$0xff]
    %v626 = vld [vmem:[#allocation7 + $0x108] sm:$0xff]
    %v627 = vld [vmem:[#allocation7 + $0x110] sm:$0xff]
    %v628 = vld [vmem:[#allocation7 + $0x118] sm:$0xff]
    %v629 = vld [vmem:[#allocation7 + $0x120] sm:$0xff]
    %v630 = vld [vmem:[#allocation7 + $0x128] sm:$0xff]
    %v631 = vld [vmem:[#allocation7 + $0x130] sm:$0xff]
    %v632 = vld [vmem:[#allocation7 + $0x138] sm:$0xff]
    %v633 = vld [vmem:[#allocation7 + $0x140] sm:$0xff]
    %v634 = vld [vmem:[#allocation7 + $0x148] sm:$0xff]
    %v635 = vld [vmem:[#allocation7 + $0x150] sm:$0xff]
    %v636 = vld [vmem:[#allocation7 + $0x158] sm:$0xff]
    %v637 = vld [vmem:[#allocation7 + $0x160] sm:$0xff]
    %v638 = vld [vmem:[#allocation7 + $0x168] sm:$0xff]
    %v639 = vld [vmem:[#allocation7 + $0x170] sm:$0xff]
    %v640 = vld [vmem:[#allocation7 + $0x178] sm:$0xff]
    %v641 = vld [vmem:[#allocation7 + $0x180] sm:$0xff]
    %v642 = vld [vmem:[#allocation7 + $0x188] sm:$0xff]
    %v643 = vld [vmem:[#allocation7 + $0x190] sm:$0xff]
    %v644 = vld [vmem:[#allocation7 + $0x198] sm:$0xff]
    %v645 = vld [vmem:[#allocation7 + $0x1a0] sm:$0xff]
    %v646 = vld [vmem:[#allocation7 + $0x1a8] sm:$0xff]
    %v647 = vld [vmem:[#allocation7 + $0x1b0] sm:$0xff]
    %v648 = vld [vmem:[#allocation7 + $0x1b8] sm:$0xff]
    %v649 = vld [vmem:[#allocation7 + $0x1c0] sm:$0xff]
    %v650 = vld [vmem:[#allocation7 + $0x1c8] sm:$0xff]
    %v651 = vld [vmem:[#allocation7 + $0x1d0] sm:$0xff]
    %v652 = vld [vmem:[#allocation7 + $0x1d8] sm:$0xff]
    %v653 = vld [vmem:[#allocation7 + $0x1e0] sm:$0xff]
    %v654 = vld [vmem:[#allocation7 + $0x1e8] sm:$0xff]
    %v655 = vld [vmem:[#allocation7 + $0x1f0] sm:$0xff]
    %v656 = vld [vmem:[#allocation7 + $0x1f8] sm:$0xff]
    %v657 = vld [vmem:[#allocation7 + $0x200] sm:$0xff]
    %v658 = vld [vmem:[#allocation7 + $0x208] sm:$0xff]
    %v659 = vld [vmem:[#allocation7 + $0x210] sm:$0xff]
    %v660 = vld [vmem:[#allocation7 + $0x218] sm:$0xff]
    %v661 = vld [vmem:[#allocation7 + $0x220] sm:$0xff]
    %v662 = vld [vmem:[#allocation7 + $0x228] sm:$0xff]
    %v663 = vld [vmem:[#allocation7 + $0x230] sm:$0xff]
    %v664 = vld [vmem:[#allocation7 + $0x238] sm:$0xff]
    %v665 = vld [vmem:[#allocation7 + $0x240] sm:$0xff]
    %v666 = vld [vmem:[#allocation7 + $0x248] sm:$0xff]
    %v667 = vld [vmem:[#allocation7 + $0x250] sm:$0xff]
    %v668 = vld [vmem:[#allocation7 + $0x258] sm:$0xff]
    %v669 = vld [vmem:[#allocation7 + $0x260] sm:$0xff]
    %v670 = vld [vmem:[#allocation7 + $0x268] sm:$0xff]
    %v671 = vld [vmem:[#allocation7 + $0x270] sm:$0xff]
    %v672 = vld [vmem:[#allocation7 + $0x278] sm:$0xff]
    %v673 = vld [vmem:[#allocation7 + $0x280] sm:$0xff]
    %v674 = vld [vmem:[#allocation7 + $0x288] sm:$0xff]
    %v675 = vld [vmem:[#allocation7 + $0x290] sm:$0xff]
    %v676 = vld [vmem:[#allocation7 + $0x298] sm:$0xff]
    %v677 = vld [vmem:[#allocation7 + $0x2a0] sm:$0xff]
    %v678 = vld [vmem:[#allocation7 + $0x2a8] sm:$0xff]
    %v679 = vld [vmem:[#allocation7 + $0x2b0] sm:$0xff]
    %v680 = vld [vmem:[#allocation7 + $0x2b8] sm:$0xff]
    %v681 = vld [vmem:[#allocation7 + $0x2c0] sm:$0xff]
    %v682 = vld [vmem:[#allocation7 + $0x2c8] sm:$0xff]
    %v683 = vld [vmem:[#allocation7 + $0x2d0] sm:$0xff]
    %v684 = vld [vmem:[#allocation7 + $0x2d8] sm:$0xff]
    %v685 = vld [vmem:[#allocation7 + $0x2e0] sm:$0xff]
    %v686 = vld [vmem:[#allocation7 + $0x2e8] sm:$0xff]
    %v687 = vld [vmem:[#allocation7 + $0x2f0] sm:$0xff]
    %v688 = vld [vmem:[#allocation7 + $0x2f8] sm:$0xff]
    %v689 = vld [vmem:[#allocation7 + $0x300] sm:$0xff]
    %v690 = vld [vmem:[#allocation7 + $0x308] sm:$0xff]
    %v691 = vld [vmem:[#allocation7 + $0x310] sm:$0xff]
    %v692 = vld [vmem:[#allocation7 + $0x318] sm:$0xff]
    %v693 = vld [vmem:[#allocation7 + $0x320] sm:$0xff]
    %v694 = vld [vmem:[#allocation7 + $0x328] sm:$0xff]
    %v695 = vld [vmem:[#allocation7 + $0x330] sm:$0xff]
    %v696 = vld [vmem:[#allocation7 + $0x338] sm:$0xff]
    %v697 = vld [vmem:[#allocation7 + $0x340] sm:$0xff]
    %v698 = vld [vmem:[#allocation7 + $0x348] sm:$0xff]
    %v699 = vld [vmem:[#allocation7 + $0x350] sm:$0xff]
    %v700 = vld [vmem:[#allocation7 + $0x358] sm:$0xff]
    %v701 = vld [vmem:[#allocation7 + $0x360] sm:$0xff]
    %v702 = vld [vmem:[#allocation7 + $0x368] sm:$0xff]
    %v703 = vld [vmem:[#allocation7 + $0x370] sm:$0xff]
    %v704 = vld [vmem:[#allocation7 + $0x378] sm:$0xff]
    %v705 = vld [vmem:[#allocation7 + $0x380] sm:$0xff]
    %v706 = vld [vmem:[#allocation7 + $0x388] sm:$0xff]
    %v707 = vld [vmem:[#allocation7 + $0x390] sm:$0xff]
    %v708 = vld [vmem:[#allocation7 + $0x398] sm:$0xff]
    %v709 = vld [vmem:[#allocation7 + $0x3a0] sm:$0xff]
    %v710 = vld [vmem:[#allocation7 + $0x3a8] sm:$0xff]
    %v711 = vld [vmem:[#allocation7 + $0x3b0] sm:$0xff]
    %v712 = vld [vmem:[#allocation7 + $0x3b8] sm:$0xff]
    %v713 = vld [vmem:[#allocation7 + $0x3c0] sm:$0xff]
    %v714 = vld [vmem:[#allocation7 + $0x3c8] sm:$0xff]
    %v715 = vld [vmem:[#allocation7 + $0x3d0] sm:$0xff]
    %v716 = vld [vmem:[#allocation7 + $0x3d8] sm:$0xff]
    %v717 = vld [vmem:[#allocation7 + $0x3e0] sm:$0xff]
    %v718 = vld [vmem:[#allocation7 + $0x3e8] sm:$0xff]
    %v719 = vld [vmem:[#allocation7 + $0x3f0] sm:$0xff]
    %v720 = vld [vmem:[#allocation7 + $0x3f8] sm:$0xff]
    %v721 = vld [vmem:[%s4] sm:$0xf]
    %v723 = vlaneseq
    %v724 = vshrl.u32 %v723, 7
    %v725 = vsub.s32 0, %v724
    %v726 = vrot.slane %v721, %v725
    %v727 = vlaneseq
    %v728 = vshrl.u32 %v727, 7
    %v729 = vsub.s32 1, %v728
    %v730 = vrot.slane %v721, %v729
    %v731 = vlaneseq
    %v732 = vshrl.u32 %v731, 7
    %v733 = vsub.s32 2, %v732
    %v734 = vrot.slane %v721, %v733
    %v735 = vlaneseq
    %v736 = vshrl.u32 %v735, 7
    %v737 = vsub.s32 3, %v736
    %v738 = vrot.slane %v721, %v737
    %v871 = vunpack.c.l.b16 %v593
    %v872 = vunpack.c.h.b16 %v593
    %v873 = vunpack.c.l.b16 %v594
    %v874 = vunpack.c.h.b16 %v594
    %v875 = vunpack.c.l.b16 %v595
    %v876 = vunpack.c.h.b16 %v595
    %v877 = vunpack.c.l.b16 %v596
    %v878 = vunpack.c.h.b16 %v596
    %v879 = vunpack.c.l.b16 %v597
    %v880 = vunpack.c.h.b16 %v597
    %v881 = vunpack.c.l.b16 %v598
    %v882 = vunpack.c.h.b16 %v598
    %v883 = vunpack.c.l.b16 %v599
    %v884 = vunpack.c.h.b16 %v599
    %v885 = vunpack.c.l.b16 %v600
    %v886 = vunpack.c.h.b16 %v600
    %v887 = vunpack.c.l.b16 %v601
    %v888 = vunpack.c.h.b16 %v601
    %v889 = vunpack.c.l.b16 %v602
    %v890 = vunpack.c.h.b16 %v602
    %v891 = vunpack.c.l.b16 %v603
    %v892 = vunpack.c.h.b16 %v603
    %v893 = vunpack.c.l.b16 %v604
    %v894 = vunpack.c.h.b16 %v604
    %v895 = vunpack.c.l.b16 %v605
    %v896 = vunpack.c.h.b16 %v605
    %v897 = vunpack.c.l.b16 %v606
    %v898 = vunpack.c.h.b16 %v606
    %v899 = vunpack.c.l.b16 %v607
    %v900 = vunpack.c.h.b16 %v607
    %v901 = vunpack.c.l.b16 %v608
    %v902 = vunpack.c.h.b16 %v608
    %v903 = vunpack.c.l.b16 %v609
    %v904 = vunpack.c.h.b16 %v609
    %v905 = vunpack.c.l.b16 %v610
    %v906 = vunpack.c.h.b16 %v610
    %v907 = vunpack.c.l.b16 %v611
    %v908 = vunpack.c.h.b16 %v611
    %v909 = vunpack.c.l.b16 %v612
    %v910 = vunpack.c.h.b16 %v612
    %v911 = vunpack.c.l.b16 %v613
    %v912 = vunpack.c.h.b16 %v613
    %v913 = vunpack.c.l.b16 %v614
    %v914 = vunpack.c.h.b16 %v614
    %v915 = vunpack.c.l.b16 %v615
    %v916 = vunpack.c.h.b16 %v615
    %v917 = vunpack.c.l.b16 %v616
    %v918 = vunpack.c.h.b16 %v616
    %v919 = vunpack.c.l.b16 %v617
    %v920 = vunpack.c.h.b16 %v617
    %v921 = vunpack.c.l.b16 %v618
    %v922 = vunpack.c.h.b16 %v618
    %v923 = vunpack.c.l.b16 %v619
    %v924 = vunpack.c.h.b16 %v619
    %v925 = vunpack.c.l.b16 %v620
    %v926 = vunpack.c.h.b16 %v620
    %v927 = vunpack.c.l.b16 %v621
    %v928 = vunpack.c.h.b16 %v621
    %v929 = vunpack.c.l.b16 %v622
    %v930 = vunpack.c.h.b16 %v622
    %v931 = vunpack.c.l.b16 %v623
    %v932 = vunpack.c.h.b16 %v623
    %v933 = vunpack.c.l.b16 %v624
    %v934 = vunpack.c.h.b16 %v624
    %v935 = vunpack.c.l.b16 %v625
    %v936 = vunpack.c.h.b16 %v625
    %v937 = vunpack.c.l.b16 %v626
    %v938 = vunpack.c.h.b16 %v626
    %v939 = vunpack.c.l.b16 %v627
    %v940 = vunpack.c.h.b16 %v627
    %v941 = vunpack.c.l.b16 %v628
    %v942 = vunpack.c.h.b16 %v628
    %v943 = vunpack.c.l.b16 %v629
    %v944 = vunpack.c.h.b16 %v629
    %v945 = vunpack.c.l.b16 %v630
    %v946 = vunpack.c.h.b16 %v630
    %v947 = vunpack.c.l.b16 %v631
    %v948 = vunpack.c.h.b16 %v631
    %v949 = vunpack.c.l.b16 %v632
    %v950 = vunpack.c.h.b16 %v632
    %v951 = vunpack.c.l.b16 %v633
    %v952 = vunpack.c.h.b16 %v633
    %v953 = vunpack.c.l.b16 %v634
    %v954 = vunpack.c.h.b16 %v634
    %v955 = vunpack.c.l.b16 %v635
    %v956 = vunpack.c.h.b16 %v635
    %v957 = vunpack.c.l.b16 %v636
    %v958 = vunpack.c.h.b16 %v636
    %v959 = vunpack.c.l.b16 %v637
    %v960 = vunpack.c.h.b16 %v637
    %v961 = vunpack.c.l.b16 %v638
    %v962 = vunpack.c.h.b16 %v638
    %v963 = vunpack.c.l.b16 %v639
    %v964 = vunpack.c.h.b16 %v639
    %v965 = vunpack.c.l.b16 %v640
    %v966 = vunpack.c.h.b16 %v640
    %v967 = vunpack.c.l.b16 %v641
    %v968 = vunpack.c.h.b16 %v641
    %v969 = vunpack.c.l.b16 %v642
    %v970 = vunpack.c.h.b16 %v642
    %v971 = vunpack.c.l.b16 %v643
    %v972 = vunpack.c.h.b16 %v643
    %v973 = vunpack.c.l.b16 %v644
    %v974 = vunpack.c.h.b16 %v644
    %v975 = vunpack.c.l.b16 %v645
    %v976 = vunpack.c.h.b16 %v645
    %v977 = vunpack.c.l.b16 %v646
    %v978 = vunpack.c.h.b16 %v646
    %v979 = vunpack.c.l.b16 %v647
    %v980 = vunpack.c.h.b16 %v647
    %v981 = vunpack.c.l.b16 %v648
    %v982 = vunpack.c.h.b16 %v648
    %v983 = vunpack.c.l.b16 %v649
    %v984 = vunpack.c.h.b16 %v649
    %v985 = vunpack.c.l.b16 %v650
    %v986 = vunpack.c.h.b16 %v650
    %v987 = vunpack.c.l.b16 %v651
    %v988 = vunpack.c.h.b16 %v651
    %v989 = vunpack.c.l.b16 %v652
    %v990 = vunpack.c.h.b16 %v652
    %v991 = vunpack.c.l.b16 %v653
    %v992 = vunpack.c.h.b16 %v653
    %v993 = vunpack.c.l.b16 %v654
    %v994 = vunpack.c.h.b16 %v654
    %v995 = vunpack.c.l.b16 %v655
    %v996 = vunpack.c.h.b16 %v655
    %v997 = vunpack.c.l.b16 %v656
    %v998 = vunpack.c.h.b16 %v656
    %v999 = vunpack.c.l.b16 %v657
    %v1000 = vunpack.c.h.b16 %v657
    %v1001 = vunpack.c.l.b16 %v658
    %v1002 = vunpack.c.h.b16 %v658
    %v1003 = vunpack.c.l.b16 %v659
    %v1004 = vunpack.c.h.b16 %v659
    %v1005 = vunpack.c.l.b16 %v660
    %v1006 = vunpack.c.h.b16 %v660
    %v1007 = vunpack.c.l.b16 %v661
    %v1008 = vunpack.c.h.b16 %v661
    %v1009 = vunpack.c.l.b16 %v662
    %v1010 = vunpack.c.h.b16 %v662
    %v1011 = vunpack.c.l.b16 %v663
    %v1012 = vunpack.c.h.b16 %v663
    %v1013 = vunpack.c.l.b16 %v664
    %v1014 = vunpack.c.h.b16 %v664
    %v1015 = vunpack.c.l.b16 %v665
    %v1016 = vunpack.c.h.b16 %v665
    %v1017 = vunpack.c.l.b16 %v666
    %v1018 = vunpack.c.h.b16 %v666
    %v1019 = vunpack.c.l.b16 %v667
    %v1020 = vunpack.c.h.b16 %v667
    %v1021 = vunpack.c.l.b16 %v668
    %v1022 = vunpack.c.h.b16 %v668
    %v1023 = vunpack.c.l.b16 %v669
    %v1024 = vunpack.c.h.b16 %v669
    %v1025 = vunpack.c.l.b16 %v670
    %v1026 = vunpack.c.h.b16 %v670
    %v1027 = vunpack.c.l.b16 %v671
    %v1028 = vunpack.c.h.b16 %v671
    %v1029 = vunpack.c.l.b16 %v672
    %v1030 = vunpack.c.h.b16 %v672
    %v1031 = vunpack.c.l.b16 %v673
    %v1032 = vunpack.c.h.b16 %v673
    %v1033 = vunpack.c.l.b16 %v674
    %v1034 = vunpack.c.h.b16 %v674
    %v1035 = vunpack.c.l.b16 %v675
    %v1036 = vunpack.c.h.b16 %v675
    %v1037 = vunpack.c.l.b16 %v676
    %v1038 = vunpack.c.h.b16 %v676
    %v1039 = vunpack.c.l.b16 %v677
    %v1040 = vunpack.c.h.b16 %v677
    %v1041 = vunpack.c.l.b16 %v678
    %v1042 = vunpack.c.h.b16 %v678
    %v1043 = vunpack.c.l.b16 %v679
    %v1044 = vunpack.c.h.b16 %v679
    %v1045 = vunpack.c.l.b16 %v680
    %v1046 = vunpack.c.h.b16 %v680
    %v1047 = vunpack.c.l.b16 %v681
    %v1048 = vunpack.c.h.b16 %v681
    %v1049 = vunpack.c.l.b16 %v682
    %v1050 = vunpack.c.h.b16 %v682
    %v1051 = vunpack.c.l.b16 %v683
    %v1052 = vunpack.c.h.b16 %v683
    %v1053 = vunpack.c.l.b16 %v684
    %v1054 = vunpack.c.h.b16 %v684
    %v1055 = vunpack.c.l.b16 %v685
    %v1056 = vunpack.c.h.b16 %v685
    %v1057 = vunpack.c.l.b16 %v686
    %v1058 = vunpack.c.h.b16 %v686
    %v1059 = vunpack.c.l.b16 %v687
    %v1060 = vunpack.c.h.b16 %v687
    %v1061 = vunpack.c.l.b16 %v688
    %v1062 = vunpack.c.h.b16 %v688
    %v1063 = vunpack.c.l.b16 %v689
    %v1064 = vunpack.c.h.b16 %v689
    %v1065 = vunpack.c.l.b16 %v690
    %v1066 = vunpack.c.h.b16 %v690
    %v1067 = vunpack.c.l.b16 %v691
    %v1068 = vunpack.c.h.b16 %v691
    %v1069 = vunpack.c.l.b16 %v692
    %v1070 = vunpack.c.h.b16 %v692
    %v1071 = vunpack.c.l.b16 %v693
    %v1072 = vunpack.c.h.b16 %v693
    %v1073 = vunpack.c.l.b16 %v694
    %v1074 = vunpack.c.h.b16 %v694
    %v1075 = vunpack.c.l.b16 %v695
    %v1076 = vunpack.c.h.b16 %v695
    %v1077 = vunpack.c.l.b16 %v696
    %v1078 = vunpack.c.h.b16 %v696
    %v1079 = vunpack.c.l.b16 %v697
    %v1080 = vunpack.c.h.b16 %v697
    %v1081 = vunpack.c.l.b16 %v698
    %v1082 = vunpack.c.h.b16 %v698
    %v1083 = vunpack.c.l.b16 %v699
    %v1084 = vunpack.c.h.b16 %v699
    %v1085 = vunpack.c.l.b16 %v700
    %v1086 = vunpack.c.h.b16 %v700
    %v1087 = vunpack.c.l.b16 %v701
    %v1088 = vunpack.c.h.b16 %v701
    %v1089 = vunpack.c.l.b16 %v702
    %v1090 = vunpack.c.h.b16 %v702
    %v1091 = vunpack.c.l.b16 %v703
    %v1092 = vunpack.c.h.b16 %v703
    %v1093 = vunpack.c.l.b16 %v704
    %v1094 = vunpack.c.h.b16 %v704
    %v1095 = vunpack.c.l.b16 %v705
    %v1096 = vunpack.c.h.b16 %v705
    %v1097 = vunpack.c.l.b16 %v706
    %v1098 = vunpack.c.h.b16 %v706
    %v1099 = vunpack.c.l.b16 %v707
    %v1100 = vunpack.c.h.b16 %v707
    %v1101 = vunpack.c.l.b16 %v708
    %v1102 = vunpack.c.h.b16 %v708
    %v1103 = vunpack.c.l.b16 %v709
    %v1104 = vunpack.c.h.b16 %v709
    %v1105 = vunpack.c.l.b16 %v710
    %v1106 = vunpack.c.h.b16 %v710
    %v1107 = vunpack.c.l.b16 %v711
    %v1108 = vunpack.c.h.b16 %v711
    %v1109 = vunpack.c.l.b16 %v712
    %v1110 = vunpack.c.h.b16 %v712
    %v1111 = vunpack.c.l.b16 %v713
    %v1112 = vunpack.c.h.b16 %v713
    %v1113 = vunpack.c.l.b16 %v714
    %v1114 = vunpack.c.h.b16 %v714
    %v1115 = vunpack.c.l.b16 %v715
    %v1116 = vunpack.c.h.b16 %v715
    %v1117 = vunpack.c.l.b16 %v716
    %v1118 = vunpack.c.h.b16 %v716
    %v1119 = vunpack.c.l.b16 %v717
    %v1120 = vunpack.c.h.b16 %v717
    %v1121 = vunpack.c.l.b16 %v718
    %v1122 = vunpack.c.h.b16 %v718
    %v1123 = vunpack.c.l.b16 %v719
    %v1124 = vunpack.c.h.b16 %v719
    %v1125 = vunpack.c.l.b16 %v720
    %v1126 = vunpack.c.h.b16 %v720
    %v1127 = vpack.c.b16 %v875, %v871
    %v1128 = vpack.c.b16 %v876, %v872
    %v1129 = vpack.c.b16 %v877, %v873
    %v1130 = vpack.c.b16 %v878, %v874
    %v1131 = vpack.c.b16 %v883, %v879
    %v1132 = vpack.c.b16 %v884, %v880
    %v1133 = vpack.c.b16 %v885, %v881
    %v1134 = vpack.c.b16 %v886, %v882
    %v1135 = vpack.c.b16 %v891, %v887
    %v1136 = vpack.c.b16 %v892, %v888
    %v1137 = vpack.c.b16 %v893, %v889
    %v1138 = vpack.c.b16 %v894, %v890
    %v1139 = vpack.c.b16 %v899, %v895
    %v1140 = vpack.c.b16 %v900, %v896
    %v1141 = vpack.c.b16 %v901, %v897
    %v1142 = vpack.c.b16 %v902, %v898
    %v1143 = vpack.c.b16 %v907, %v903
    %v1144 = vpack.c.b16 %v908, %v904
    %v1145 = vpack.c.b16 %v909, %v905
    %v1146 = vpack.c.b16 %v910, %v906
    %v1147 = vpack.c.b16 %v915, %v911
    %v1148 = vpack.c.b16 %v916, %v912
    %v1149 = vpack.c.b16 %v917, %v913
    %v1150 = vpack.c.b16 %v918, %v914
    %v1151 = vpack.c.b16 %v923, %v919
    %v1152 = vpack.c.b16 %v924, %v920
    %v1153 = vpack.c.b16 %v925, %v921
    %v1154 = vpack.c.b16 %v926, %v922
    %v1155 = vpack.c.b16 %v931, %v927
    %v1156 = vpack.c.b16 %v932, %v928
    %v1157 = vpack.c.b16 %v933, %v929
    %v1158 = vpack.c.b16 %v934, %v930
    %v1159 = vpack.c.b16 %v939, %v935
    %v1160 = vpack.c.b16 %v940, %v936
    %v1161 = vpack.c.b16 %v941, %v937
    %v1162 = vpack.c.b16 %v942, %v938
    %v1163 = vpack.c.b16 %v947, %v943
    %v1164 = vpack.c.b16 %v948, %v944
    %v1165 = vpack.c.b16 %v949, %v945
    %v1166 = vpack.c.b16 %v950, %v946
    %v1167 = vpack.c.b16 %v955, %v951
    %v1168 = vpack.c.b16 %v956, %v952
    %v1169 = vpack.c.b16 %v957, %v953
    %v1170 = vpack.c.b16 %v958, %v954
    %v1171 = vpack.c.b16 %v963, %v959
    %v1172 = vpack.c.b16 %v964, %v960
    %v1173 = vpack.c.b16 %v965, %v961
    %v1174 = vpack.c.b16 %v966, %v962
    %v1175 = vpack.c.b16 %v971, %v967
    %v1176 = vpack.c.b16 %v972, %v968
    %v1177 = vpack.c.b16 %v973, %v969
    %v1178 = vpack.c.b16 %v974, %v970
    %v1179 = vpack.c.b16 %v979, %v975
    %v1180 = vpack.c.b16 %v980, %v976
    %v1181 = vpack.c.b16 %v981, %v977
    %v1182 = vpack.c.b16 %v982, %v978
    %v1183 = vpack.c.b16 %v987, %v983
    %v1184 = vpack.c.b16 %v988, %v984
    %v1185 = vpack.c.b16 %v989, %v985
    %v1186 = vpack.c.b16 %v990, %v986
    %v1187 = vpack.c.b16 %v995, %v991
    %v1188 = vpack.c.b16 %v996, %v992
    %v1189 = vpack.c.b16 %v997, %v993
    %v1190 = vpack.c.b16 %v998, %v994
    %v1191 = vpack.c.b16 %v1003, %v999
    %v1192 = vpack.c.b16 %v1004, %v1000
    %v1193 = vpack.c.b16 %v1005, %v1001
    %v1194 = vpack.c.b16 %v1006, %v1002
    %v1195 = vpack.c.b16 %v1011, %v1007
    %v1196 = vpack.c.b16 %v1012, %v1008
    %v1197 = vpack.c.b16 %v1013, %v1009
    %v1198 = vpack.c.b16 %v1014, %v1010
    %v1199 = vpack.c.b16 %v1019, %v1015
    %v1200 = vpack.c.b16 %v1020, %v1016
    %v1201 = vpack.c.b16 %v1021, %v1017
    %v1202 = vpack.c.b16 %v1022, %v1018
    %v1203 = vpack.c.b16 %v1027, %v1023
    %v1204 = vpack.c.b16 %v1028, %v1024
    %v1205 = vpack.c.b16 %v1029, %v1025
    %v1206 = vpack.c.b16 %v1030, %v1026
    %v1207 = vpack.c.b16 %v1035, %v1031
    %v1208 = vpack.c.b16 %v1036, %v1032
    %v1209 = vpack.c.b16 %v1037, %v1033
    %v1210 = vpack.c.b16 %v1038, %v1034
    %v1211 = vpack.c.b16 %v1043, %v1039
    %v1212 = vpack.c.b16 %v1044, %v1040
    %v1213 = vpack.c.b16 %v1045, %v1041
    %v1214 = vpack.c.b16 %v1046, %v1042
    %v1215 = vpack.c.b16 %v1051, %v1047
    %v1216 = vpack.c.b16 %v1052, %v1048
    %v1217 = vpack.c.b16 %v1053, %v1049
    %v1218 = vpack.c.b16 %v1054, %v1050
    %v1219 = vpack.c.b16 %v1059, %v1055
    %v1220 = vpack.c.b16 %v1060, %v1056
    %v1221 = vpack.c.b16 %v1061, %v1057
    %v1222 = vpack.c.b16 %v1062, %v1058
    %v1223 = vpack.c.b16 %v1067, %v1063
    %v1224 = vpack.c.b16 %v1068, %v1064
    %v1225 = vpack.c.b16 %v1069, %v1065
    %v1226 = vpack.c.b16 %v1070, %v1066
    %v1227 = vpack.c.b16 %v1075, %v1071
    %v1228 = vpack.c.b16 %v1076, %v1072
    %v1229 = vpack.c.b16 %v1077, %v1073
    %v1230 = vpack.c.b16 %v1078, %v1074
    %v1231 = vpack.c.b16 %v1083, %v1079
    %v1232 = vpack.c.b16 %v1084, %v1080
    %v1233 = vpack.c.b16 %v1085, %v1081
    %v1234 = vpack.c.b16 %v1086, %v1082
    %v1235 = vpack.c.b16 %v1091, %v1087
    %v1236 = vpack.c.b16 %v1092, %v1088
    %v1237 = vpack.c.b16 %v1093, %v1089
    %v1238 = vpack.c.b16 %v1094, %v1090
    %v1239 = vpack.c.b16 %v1099, %v1095
    %v1240 = vpack.c.b16 %v1100, %v1096
    %v1241 = vpack.c.b16 %v1101, %v1097
    %v1242 = vpack.c.b16 %v1102, %v1098
    %v1243 = vpack.c.b16 %v1107, %v1103
    %v1244 = vpack.c.b16 %v1108, %v1104
    %v1245 = vpack.c.b16 %v1109, %v1105
    %v1246 = vpack.c.b16 %v1110, %v1106
    %v1247 = vpack.c.b16 %v1115, %v1111
    %v1248 = vpack.c.b16 %v1116, %v1112
    %v1249 = vpack.c.b16 %v1117, %v1113
    %v1250 = vpack.c.b16 %v1118, %v1114
    %v1251 = vpack.c.b16 %v1123, %v1119
    %v1252 = vpack.c.b16 %v1124, %v1120
    %v1253 = vpack.c.b16 %v1125, %v1121
    %v1254 = vpack.c.b16 %v1126, %v1122
    %1383 = vmatprep.subr.bf16.mxu0 %v1128
    %1384 = vmatpush1.bf16.msra.mxu0 %v1127
    %1385 = vmatprep.subr.bf16.mxu0 %v1132
    %1386 = vmatpush1.bf16.msra.mxu0 %v1131
    %1387 = vmatprep.subr.bf16.mxu0 %v1136
    %1388 = vmatpush1.bf16.msra.mxu0 %v1135
    %1389 = vmatprep.subr.bf16.mxu0 %v1140
    %1390 = vmatpush1.bf16.msra.mxu0 %v1139
    %1391 = vmatprep.subr.bf16.mxu0 %v1144
    %1392 = vmatpush1.bf16.msra.mxu0 %v1143
    %1393 = vmatprep.subr.bf16.mxu0 %v1148
    %1394 = vmatpush1.bf16.msra.mxu0 %v1147
    %1395 = vmatprep.subr.bf16.mxu0 %v1152
    %1396 = vmatpush1.bf16.msra.mxu0 %v1151
    %1397 = vmatprep.subr.bf16.mxu0 %v1156
    %1398 = vmatpush1.bf16.msra.mxu0 %v1155
    %1399 = vmatprep.subr.bf16.mxu0 %v1160
    %1400 = vmatpush1.bf16.msra.mxu0 %v1159
    %1401 = vmatprep.subr.bf16.mxu0 %v1164
    %1402 = vmatpush1.bf16.msra.mxu0 %v1163
    %1403 = vmatprep.subr.bf16.mxu0 %v1168
    %1404 = vmatpush1.bf16.msra.mxu0 %v1167
    %1405 = vmatprep.subr.bf16.mxu0 %v1172
    %1406 = vmatpush1.bf16.msra.mxu0 %v1171
    %1407 = vmatprep.subr.bf16.mxu0 %v1176
    %1408 = vmatpush1.bf16.msra.mxu0 %v1175
    %1409 = vmatprep.subr.bf16.mxu0 %v1180
    %1410 = vmatpush1.bf16.msra.mxu0 %v1179
    %1411 = vmatprep.subr.bf16.mxu0 %v1184
    %1412 = vmatpush1.bf16.msra.mxu0 %v1183
    %1413 = vmatprep.subr.bf16.mxu0 %v1188
    %1414 = vmatpush1.bf16.msra.mxu0 %v1187
    %1415 = vmatprep.mubr.bf16.mxu0 %v590
    %1416 = vmatmul.mubr.bf16.gmra.mrb[0].mxu0 %v589
    %v1417 = vpop.f32.mrb[0].mxu0
    %v1418 = vadd.f32 %v726, %v1417
    %v1419 = vpop.f32.mrb[0].mxu0
    %v1420 = vadd.f32 %v730, %v1419
    %v1421 = vpop.f32.mrb[0].mxu0
    %v1422 = vadd.f32 %v726, %v1421
    %v1423 = vpop.f32.mrb[0].mxu0
    %v1424 = vadd.f32 %v730, %v1423
    %1425 = vdwg.mxu0
    %1426 = vmatprep.subr.bf16.mxu0 %v1192
    %1427 = vmatpush1.bf16.msra.mxu0 %v1191
    %1428 = vmatprep.subr.bf16.mxu0 %v1196
    %1429 = vmatpush1.bf16.msra.mxu0 %v1195
    %1430 = vmatprep.subr.bf16.mxu0 %v1200
    %1431 = vmatpush1.bf16.msra.mxu0 %v1199
    %1432 = vmatprep.subr.bf16.mxu0 %v1204
    %1433 = vmatpush1.bf16.msra.mxu0 %v1203
    %1434 = vmatprep.subr.bf16.mxu0 %v1208
    %1435 = vmatpush1.bf16.msra.mxu0 %v1207
    %1436 = vmatprep.subr.bf16.mxu0 %v1212
    %1437 = vmatpush1.bf16.msra.mxu0 %v1211
    %1438 = vmatprep.subr.bf16.mxu0 %v1216
    %1439 = vmatpush1.bf16.msra.mxu0 %v1215
    %1440 = vmatprep.subr.bf16.mxu0 %v1220
    %1441 = vmatpush1.bf16.msra.mxu0 %v1219
    %1442 = vmatprep.subr.bf16.mxu0 %v1224
    %1443 = vmatpush1.bf16.msra.mxu0 %v1223
    %1444 = vmatprep.subr.bf16.mxu0 %v1228
    %1445 = vmatpush1.bf16.msra.mxu0 %v1227
    %1446 = vmatprep.subr.bf16.mxu0 %v1232
    %1447 = vmatpush1.bf16.msra.mxu0 %v1231
    %1448 = vmatprep.subr.bf16.mxu0 %v1236
    %1449 = vmatpush1.bf16.msra.mxu0 %v1235
    %1450 = vmatprep.subr.bf16.mxu0 %v1240
    %1451 = vmatpush1.bf16.msra.mxu0 %v1239
    %1452 = vmatprep.subr.bf16.mxu0 %v1244
    %1453 = vmatpush1.bf16.msra.mxu0 %v1243
    %1454 = vmatprep.subr.bf16.mxu0 %v1248
    %1455 = vmatpush1.bf16.msra.mxu0 %v1247
    %1456 = vmatprep.subr.bf16.mxu0 %v1252
    %1457 = vmatpush1.bf16.msra.mxu0 %v1251
    %1458 = vmatprep.mubr.bf16.mxu0 %v592
    %1459 = vmatmul.mubr.bf16.gmra.mrb[0].mxu0 %v591
    %v1460 = vpop.f32.mrb[0].mxu0
    %v1461 = vadd.f32 %v1418, %v1460
    %v1462 = vpop.f32.mrb[0].mxu0
    %v1463 = vadd.f32 %v1420, %v1462
    %v1464 = vpop.f32.mrb[0].mxu0
    %v1465 = vadd.f32 %v1422, %v1464
    %v1466 = vpop.f32.mrb[0].mxu0
    %v1467 = vadd.f32 %v1424, %v1466
    %1468 = vdwg.mxu0
    %1469 = vmatprep.subr.bf16.mxu0 %v1130
    %1470 = vmatpush1.bf16.msra.mxu0 %v1129
    %1471 = vmatprep.subr.bf16.mxu0 %v1134
    %1472 = vmatpush1.bf16.msra.mxu0 %v1133
    %1473 = vmatprep.subr.bf16.mxu0 %v1138
    %1474 = vmatpush1.bf16.msra.mxu0 %v1137
    %1475 = vmatprep.subr.bf16.mxu0 %v1142
    %1476 = vmatpush1.bf16.msra.mxu0 %v1141
    %1477 = vmatprep.subr.bf16.mxu0 %v1146
    %1478 = vmatpush1.bf16.msra.mxu0 %v1145
    %1479 = vmatprep.subr.bf16.mxu0 %v1150
    %1480 = vmatpush1.bf16.msra.mxu0 %v1149
    %1481 = vmatprep.subr.bf16.mxu0 %v1154
    %1482 = vmatpush1.bf16.msra.mxu0 %v1153
    %1483 = vmatprep.subr.bf16.mxu0 %v1158
    %1484 = vmatpush1.bf16.msra.mxu0 %v1157
    %1485 = vmatprep.subr.bf16.mxu0 %v1162
    %1486 = vmatpush1.bf16.msra.mxu0 %v1161
    %1487 = vmatprep.subr.bf16.mxu0 %v1166
    %1488 = vmatpush1.bf16.msra.mxu0 %v1165
    %1489 = vmatprep.subr.bf16.mxu0 %v1170
    %1490 = vmatpush1.bf16.msra.mxu0 %v1169
    %1491 = vmatprep.subr.bf16.mxu0 %v1174
    %1492 = vmatpush1.bf16.msra.mxu0 %v1173
    %1493 = vmatprep.subr.bf16.mxu0 %v1178
    %1494 = vmatpush1.bf16.msra.mxu0 %v1177
    %1495 = vmatprep.subr.bf16.mxu0 %v1182
    %1496 = vmatpush1.bf16.msra.mxu0 %v1181
    %1497 = vmatprep.subr.bf16.mxu0 %v1186
    %1498 = vmatpush1.bf16.msra.mxu0 %v1185
    %1499 = vmatprep.subr.bf16.mxu0 %v1190
    %1500 = vmatpush1.bf16.msra.mxu0 %v1189
    %1501 = vmatprep.mubr.bf16.mxu0 %v590
    %1502 = vmatmul.mubr.bf16.gmra.mrb[0].mxu0 %v589
    %v1503 = vpop.f32.mrb[0].mxu0
    %v1504 = vadd.f32 %v734, %v1503
    %v1505 = vpop.f32.mrb[0].mxu0
    %v1506 = vadd.f32 %v738, %v1505
    %v1507 = vpop.f32.mrb[0].mxu0
    %v1508 = vadd.f32 %v734, %v1507
    %v1509 = vpop.f32.mrb[0].mxu0
    %v1510 = vadd.f32 %v738, %v1509
    %1511 = vdwg.mxu0
    %1512 = vmatprep.subr.bf16.mxu0 %v1194
    %1513 = vmatpush1.bf16.msra.mxu0 %v1193
    %1514 = vmatprep.subr.bf16.mxu0 %v1198
    %1515 = vmatpush1.bf16.msra.mxu0 %v1197
    %1516 = vmatprep.subr.bf16.mxu0 %v1202
    %1517 = vmatpush1.bf16.msra.mxu0 %v1201
    %1518 = vmatprep.subr.bf16.mxu0 %v1206
    %1519 = vmatpush1.bf16.msra.mxu0 %v1205
    %1520 = vmatprep.subr.bf16.mxu0 %v1210
    %1521 = vmatpush1.bf16.msra.mxu0 %v1209
    %1522 = vmatprep.subr.bf16.mxu0 %v1214
    %1523 = vmatpush1.bf16.msra.mxu0 %v1213
    %1524 = vmatprep.subr.bf16.mxu0 %v1218
    %1525 = vmatpush1.bf16.msra.mxu0 %v1217
    %1526 = vmatprep.subr.bf16.mxu0 %v1222
    %1527 = vmatpush1.bf16.msra.mxu0 %v1221
    %1528 = vmatprep.subr.bf16.mxu0 %v1226
    %1529 = vmatpush1.bf16.msra.mxu0 %v1225
    %1530 = vmatprep.subr.bf16.mxu0 %v1230
    %1531 = vmatpush1.bf16.msra.mxu0 %v1229
    %1532 = vmatprep.subr.bf16.mxu0 %v1234
    %1533 = vmatpush1.bf16.msra.mxu0 %v1233
    %1534 = vmatprep.subr.bf16.mxu0 %v1238
    %1535 = vmatpush1.bf16.msra.mxu0 %v1237
    %1536 = vmatprep.subr.bf16.mxu0 %v1242
    %1537 = vmatpush1.bf16.msra.mxu0 %v1241
    %1538 = vmatprep.subr.bf16.mxu0 %v1246
    %1539 = vmatpush1.bf16.msra.mxu0 %v1245
    %1540 = vmatprep.subr.bf16.mxu0 %v1250
    %1541 = vmatpush1.bf16.msra.mxu0 %v1249
    %1542 = vmatprep.subr.bf16.mxu0 %v1254
    %1543 = vmatpush1.bf16.msra.mxu0 %v1253
    %1544 = vmatprep.mubr.bf16.mxu0 %v592
    %1545 = vmatmul.mubr.bf16.gmra.mrb[0].mxu0 %v591
    %v1546 = vpop.f32.mrb[0].mxu0
    %v1547 = vadd.f32 %v1504, %v1546
    %v1548 = vpop.f32.mrb[0].mxu0
    %v1549 = vadd.f32 %v1506, %v1548
    %v1550 = vpop.f32.mrb[0].mxu0
    %v1551 = vadd.f32 %v1508, %v1550
    %v1552 = vpop.f32.mrb[0].mxu0
    %v1553 = vadd.f32 %v1510, %v1552
    %1554 = vdwg.mxu0
    %v1555 = vmax.f32 %v1461, 0.0
    %v1556 = vmax.f32 %v1463, 0.0
    %v1557 = vmax.f32 %v1547, 0.0
    %v1558 = vmax.f32 %v1549, 0.0
    %v1559 = vmax.f32 %v1465, 0.0
    %v1560 = vmax.f32 %v1467, 0.0
    %v1561 = vmax.f32 %v1551, 0.0
    %v1562 = vmax.f32 %v1553, 0.0
    %v1563 = vpack.c.bf16 %v1559, %v1555
    %v1564 = vpack.c.bf16 %v1560, %v1556
    %v1565 = vpack.c.bf16 %v1561, %v1557
    %v1566 = vpack.c.bf16 %v1562, %v1558
    %v1567 = vld [vmem:[#allocation8] sm:$0xf]
    %v1568 = vld [vmem:[#allocation8 + $0x4] sm:$0xf]
    %v1569 = vld [vmem:[#allocation8 + $0x8] sm:$0xf]
    %v1570 = vld [vmem:[#allocation8 + $0xc] sm:$0xf]
    %v1571 = vld [vmem:[#allocation8 + $0x10] sm:$0xf]
    %v1572 = vld [vmem:[#allocation8 + $0x14] sm:$0xf]
    %v1573 = vld [vmem:[#allocation8 + $0x18] sm:$0xf]
    %v1574 = vld [vmem:[#allocation8 + $0x1c] sm:$0xf]
    %v1575 = vld [vmem:[#allocation8 + $0x20] sm:$0xf]
    %v1576 = vld [vmem:[#allocation8 + $0x24] sm:$0xf]
    %v1577 = vld [vmem:[#allocation8 + $0x28] sm:$0xf]
    %v1578 = vld [vmem:[#allocation8 + $0x2c] sm:$0xf]
    %v1579 = vld [vmem:[#allocation8 + $0x30] sm:$0xf]
    %v1580 = vld [vmem:[#allocation8 + $0x34] sm:$0xf]
    %v1581 = vld [vmem:[#allocation8 + $0x38] sm:$0xf]
    %v1582 = vld [vmem:[#allocation8 + $0x3c] sm:$0xf]
    %v1583 = vld [vmem:[#allocation8 + $0x40] sm:$0xf]
    %v1584 = vld [vmem:[#allocation8 + $0x44] sm:$0xf]
    %v1585 = vld [vmem:[#allocation8 + $0x48] sm:$0xf]
    %v1586 = vld [vmem:[#allocation8 + $0x4c] sm:$0xf]
    %v1587 = vld [vmem:[#allocation8 + $0x50] sm:$0xf]
    %v1588 = vld [vmem:[#allocation8 + $0x54] sm:$0xf]
    %v1589 = vld [vmem:[#allocation8 + $0x58] sm:$0xf]
    %v1590 = vld [vmem:[#allocation8 + $0x5c] sm:$0xf]
    %v1591 = vld [vmem:[#allocation8 + $0x60] sm:$0xf]
    %v1592 = vld [vmem:[#allocation8 + $0x64] sm:$0xf]
    %v1593 = vld [vmem:[#allocation8 + $0x68] sm:$0xf]
    %v1594 = vld [vmem:[#allocation8 + $0x6c] sm:$0xf]
    %v1595 = vld [vmem:[#allocation8 + $0x70] sm:$0xf]
    %v1596 = vld [vmem:[#allocation8 + $0x74] sm:$0xf]
    %v1597 = vld [vmem:[#allocation8 + $0x78] sm:$0xf]
    %v1598 = vld [vmem:[#allocation8 + $0x7c] sm:$0xf]
    %v1599 = vld [vmem:[#allocation8 + $0x80] sm:$0xf]
    %v1600 = vld [vmem:[#allocation8 + $0x84] sm:$0xf]
    %v1601 = vld [vmem:[#allocation8 + $0x88] sm:$0xf]
    %v1602 = vld [vmem:[#allocation8 + $0x8c] sm:$0xf]
    %v1603 = vld [vmem:[#allocation8 + $0x90] sm:$0xf]
    %v1604 = vld [vmem:[#allocation8 + $0x94] sm:$0xf]
    %v1605 = vld [vmem:[#allocation8 + $0x98] sm:$0xf]
    %v1606 = vld [vmem:[#allocation8 + $0x9c] sm:$0xf]
    %v1607 = vld [vmem:[#allocation8 + $0xa0] sm:$0xf]
    %v1608 = vld [vmem:[#allocation8 + $0xa4] sm:$0xf]
    %v1609 = vld [vmem:[#allocation8 + $0xa8] sm:$0xf]
    %v1610 = vld [vmem:[#allocation8 + $0xac] sm:$0xf]
    %v1611 = vld [vmem:[#allocation8 + $0xb0] sm:$0xf]
    %v1612 = vld [vmem:[#allocation8 + $0xb4] sm:$0xf]
    %v1613 = vld [vmem:[#allocation8 + $0xb8] sm:$0xf]
    %v1614 = vld [vmem:[#allocation8 + $0xbc] sm:$0xf]
    %v1615 = vld [vmem:[#allocation8 + $0xc0] sm:$0xf]
    %v1616 = vld [vmem:[#allocation8 + $0xc4] sm:$0xf]
    %v1617 = vld [vmem:[#allocation8 + $0xc8] sm:$0xf]
    %v1618 = vld [vmem:[#allocation8 + $0xcc] sm:$0xf]
    %v1619 = vld [vmem:[#allocation8 + $0xd0] sm:$0xf]
    %v1620 = vld [vmem:[#allocation8 + $0xd4] sm:$0xf]
    %v1621 = vld [vmem:[#allocation8 + $0xd8] sm:$0xf]
    %v1622 = vld [vmem:[#allocation8 + $0xdc] sm:$0xf]
    %v1623 = vld [vmem:[#allocation8 + $0xe0] sm:$0xf]
    %v1624 = vld [vmem:[#allocation8 + $0xe4] sm:$0xf]
    %v1625 = vld [vmem:[#allocation8 + $0xe8] sm:$0xf]
    %v1626 = vld [vmem:[#allocation8 + $0xec] sm:$0xf]
    %v1627 = vld [vmem:[#allocation8 + $0xf0] sm:$0xf]
    %v1628 = vld [vmem:[#allocation8 + $0xf4] sm:$0xf]
    %v1629 = vld [vmem:[#allocation8 + $0xf8] sm:$0xf]
    %v1630 = vld [vmem:[#allocation8 + $0xfc] sm:$0xf]
    %v1631 = vld [vmem:[%s6] sm:$0x1]
    %v1633 = vlaneseq
    %v1634 = vshrl.u32 %v1633, 7
    %v1635 = vsub.s32 0, %v1634
    %v1636 = vrot.slane %v1631, %v1635
    %v1702 = vunpack.c.l.b16 %v1567
    %v1703 = vunpack.c.l.b16 %v1568
    %v1704 = vunpack.c.l.b16 %v1569
    %v1705 = vunpack.c.l.b16 %v1570
    %v1706 = vunpack.c.l.b16 %v1571
    %v1707 = vunpack.c.l.b16 %v1572
    %v1708 = vunpack.c.l.b16 %v1573
    %v1709 = vunpack.c.l.b16 %v1574
    %v1710 = vunpack.c.l.b16 %v1575
    %v1711 = vunpack.c.l.b16 %v1576
    %v1712 = vunpack.c.l.b16 %v1577
    %v1713 = vunpack.c.l.b16 %v1578
    %v1714 = vunpack.c.l.b16 %v1579
    %v1715 = vunpack.c.l.b16 %v1580
    %v1716 = vunpack.c.l.b16 %v1581
    %v1717 = vunpack.c.l.b16 %v1582
    %v1718 = vunpack.c.l.b16 %v1583
    %v1719 = vunpack.c.l.b16 %v1584
    %v1720 = vunpack.c.l.b16 %v1585
    %v1721 = vunpack.c.l.b16 %v1586
    %v1722 = vunpack.c.l.b16 %v1587
    %v1723 = vunpack.c.l.b16 %v1588
    %v1724 = vunpack.c.l.b16 %v1589
    %v1725 = vunpack.c.l.b16 %v1590
    %v1726 = vunpack.c.l.b16 %v1591
    %v1727 = vunpack.c.l.b16 %v1592
    %v1728 = vunpack.c.l.b16 %v1593
    %v1729 = vunpack.c.l.b16 %v1594
    %v1730 = vunpack.c.l.b16 %v1595
    %v1731 = vunpack.c.l.b16 %v1596
    %v1732 = vunpack.c.l.b16 %v1597
    %v1733 = vunpack.c.l.b16 %v1598
    %v1734 = vunpack.c.l.b16 %v1599
    %v1735 = vunpack.c.l.b16 %v1600
    %v1736 = vunpack.c.l.b16 %v1601
    %v1737 = vunpack.c.l.b16 %v1602
    %v1738 = vunpack.c.l.b16 %v1603
    %v1739 = vunpack.c.l.b16 %v1604
    %v1740 = vunpack.c.l.b16 %v1605
    %v1741 = vunpack.c.l.b16 %v1606
    %v1742 = vunpack.c.l.b16 %v1607
    %v1743 = vunpack.c.l.b16 %v1608
    %v1744 = vunpack.c.l.b16 %v1609
    %v1745 = vunpack.c.l.b16 %v1610
    %v1746 = vunpack.c.l.b16 %v1611
    %v1747 = vunpack.c.l.b16 %v1612
    %v1748 = vunpack.c.l.b16 %v1613
    %v1749 = vunpack.c.l.b16 %v1614
    %v1750 = vunpack.c.l.b16 %v1615
    %v1751 = vunpack.c.l.b16 %v1616
    %v1752 = vunpack.c.l.b16 %v1617
    %v1753 = vunpack.c.l.b16 %v1618
    %v1754 = vunpack.c.l.b16 %v1619
    %v1755 = vunpack.c.l.b16 %v1620
    %v1756 = vunpack.c.l.b16 %v1621
    %v1757 = vunpack.c.l.b16 %v1622
    %v1758 = vunpack.c.l.b16 %v1623
    %v1759 = vunpack.c.l.b16 %v1624
    %v1760 = vunpack.c.l.b16 %v1625
    %v1761 = vunpack.c.l.b16 %v1626
    %v1762 = vunpack.c.l.b16 %v1627
    %v1763 = vunpack.c.l.b16 %v1628
    %v1764 = vunpack.c.l.b16 %v1629
    %v1765 = vunpack.c.l.b16 %v1630
    %v1766 = vpack.c.b16 %v1703, %v1702
    %v1767 = vpack.c.b16 %v1705, %v1704
    %v1768 = vpack.c.b16 %v1707, %v1706
    %v1769 = vpack.c.b16 %v1709, %v1708
    %v1770 = vpack.c.b16 %v1711, %v1710
    %v1771 = vpack.c.b16 %v1713, %v1712
    %v1772 = vpack.c.b16 %v1715, %v1714
    %v1773 = vpack.c.b16 %v1717, %v1716
    %v1774 = vpack.c.b16 %v1719, %v1718
    %v1775 = vpack.c.b16 %v1721, %v1720
    %v1776 = vpack.c.b16 %v1723, %v1722
    %v1777 = vpack.c.b16 %v1725, %v1724
    %v1778 = vpack.c.b16 %v1727, %v1726
    %v1779 = vpack.c.b16 %v1729, %v1728
    %v1780 = vpack.c.b16 %v1731, %v1730
    %v1781 = vpack.c.b16 %v1733, %v1732
    %v1782 = vpack.c.b16 %v1735, %v1734
    %v1783 = vpack.c.b16 %v1737, %v1736
    %v1784 = vpack.c.b16 %v1739, %v1738
    %v1785 = vpack.c.b16 %v1741, %v1740
    %v1786 = vpack.c.b16 %v1743, %v1742
    %v1787 = vpack.c.b16 %v1745, %v1744
    %v1788 = vpack.c.b16 %v1747, %v1746
    %v1789 = vpack.c.b16 %v1749, %v1748
    %v1790 = vpack.c.b16 %v1751, %v1750
    %v1791 = vpack.c.b16 %v1753, %v1752
    %v1792 = vpack.c.b16 %v1755, %v1754
    %v1793 = vpack.c.b16 %v1757, %v1756
    %v1794 = vpack.c.b16 %v1759, %v1758
    %v1795 = vpack.c.b16 %v1761, %v1760
    %v1796 = vpack.c.b16 %v1763, %v1762
    %v1797 = vpack.c.b16 %v1765, %v1764
    %1830 = vmatprep.subr.bf16.mxu0 0
    %1831 = vmatpush1.bf16.msra.mxu0 %v1766
    %1832 = vmatprep.subr.bf16.mxu0 0
    %1833 = vmatpush1.bf16.msra.mxu0 %v1767
    %1834 = vmatprep.subr.bf16.mxu0 0
    %1835 = vmatpush1.bf16.msra.mxu0 %v1768
    %1836 = vmatprep.subr.bf16.mxu0 0
    %1837 = vmatpush1.bf16.msra.mxu0 %v1769
    %1838 = vmatprep.subr.bf16.mxu0 0
    %1839 = vmatpush1.bf16.msra.mxu0 %v1770
    %1840 = vmatprep.subr.bf16.mxu0 0
    %1841 = vmatpush1.bf16.msra.mxu0 %v1771
    %1842 = vmatprep.subr.bf16.mxu0 0
    %1843 = vmatpush1.bf16.msra.mxu0 %v1772
    %1844 = vmatprep.subr.bf16.mxu0 0
    %1845 = vmatpush1.bf16.msra.mxu0 %v1773
    %1846 = vmatprep.subr.bf16.mxu0 0
    %1847 = vmatpush1.bf16.msra.mxu0 %v1774
    %1848 = vmatprep.subr.bf16.mxu0 0
    %1849 = vmatpush1.bf16.msra.mxu0 %v1775
    %1850 = vmatprep.subr.bf16.mxu0 0
    %1851 = vmatpush1.bf16.msra.mxu0 %v1776
    %1852 = vmatprep.subr.bf16.mxu0 0
    %1853 = vmatpush1.bf16.msra.mxu0 %v1777
    %1854 = vmatprep.subr.bf16.mxu0 0
    %1855 = vmatpush1.bf16.msra.mxu0 %v1778
    %1856 = vmatprep.subr.bf16.mxu0 0
    %1857 = vmatpush1.bf16.msra.mxu0 %v1779
    %1858 = vmatprep.subr.bf16.mxu0 0
    %1859 = vmatpush1.bf16.msra.mxu0 %v1780
    %1860 = vmatprep.subr.bf16.mxu0 0
    %1861 = vmatpush1.bf16.msra.mxu0 %v1781
    %1862 = vmatprep.mubr.bf16.mxu0 %v1564
    %1863 = vmatmul.mubr.bf16.gmra.mrb[0].mxu0 %v1563
    %v1864 = vpop.f32.mrb[0].mxu0
    %v1865 = vadd.f32 %v1636, %v1864
    %v1866 = vpop.f32.mrb[0].mxu0
    %v1867 = vpop.f32.mrb[0].mxu0
    %v1868 = vadd.f32 %v1636, %v1867
    %v1869 = vpop.f32.mrb[0].mxu0
    %1870 = vdwg.mxu0
    %1871 = vmatprep.subr.bf16.mxu0 0
    %1872 = vmatpush1.bf16.msra.mxu0 %v1782
    %1873 = vmatprep.subr.bf16.mxu0 0
    %1874 = vmatpush1.bf16.msra.mxu0 %v1783
    %1875 = vmatprep.subr.bf16.mxu0 0
    %1876 = vmatpush1.bf16.msra.mxu0 %v1784
    %1877 = vmatprep.subr.bf16.mxu0 0
    %1878 = vmatpush1.bf16.msra.mxu0 %v1785
    %1879 = vmatprep.subr.bf16.mxu0 0
    %1880 = vmatpush1.bf16.msra.mxu0 %v1786
    %1881 = vmatprep.subr.bf16.mxu0 0
    %1882 = vmatpush1.bf16.msra.mxu0 %v1787
    %1883 = vmatprep.subr.bf16.mxu0 0
    %1884 = vmatpush1.bf16.msra.mxu0 %v1788
    %1885 = vmatprep.subr.bf16.mxu0 0
    %1886 = vmatpush1.bf16.msra.mxu0 %v1789
    %1887 = vmatprep.subr.bf16.mxu0 0
    %1888 = vmatpush1.bf16.msra.mxu0 %v1790
    %1889 = vmatprep.subr.bf16.mxu0 0
    %1890 = vmatpush1.bf16.msra.mxu0 %v1791
    %1891 = vmatprep.subr.bf16.mxu0 0
    %1892 = vmatpush1.bf16.msra.mxu0 %v1792
    %1893 = vmatprep.subr.bf16.mxu0 0
    %1894 = vmatpush1.bf16.msra.mxu0 %v1793
    %1895 = vmatprep.subr.bf16.mxu0 0
    %1896 = vmatpush1.bf16.msra.mxu0 %v1794
    %1897 = vmatprep.subr.bf16.mxu0 0
    %1898 = vmatpush1.bf16.msra.mxu0 %v1795
    %1899 = vmatprep.subr.bf16.mxu0 0
    %1900 = vmatpush1.bf16.msra.mxu0 %v1796
    %1901 = vmatprep.subr.bf16.mxu0 0
    %1902 = vmatpush1.bf16.msra.mxu0 %v1797
    %1903 = vmatprep.mubr.bf16.mxu0 %v1566
    %1904 = vmatmul.mubr.bf16.gmra.mrb[0].mxu0 %v1565
    %v1905 = vpop.f32.mrb[0].mxu0
    %v1906 = vadd.f32 %v1865, %v1905
    %v1907 = vpop.f32.mrb[0].mxu0
    %v1908 = vpop.f32.mrb[0].mxu0
    %v1909 = vadd.f32 %v1868, %v1908
    %v1910 = vpop.f32.mrb[0].mxu0
    %1911 = vdwg.mxu0
    %1912 = vst [vmem:[#allocation10] sm:$0xff] %v1906
    %1913 = vst [vmem:[#allocation10 + $0x8] sm:$0xff] %v1909
    // Predicated region
    $region46: #{tpu_custom_call.1} parent=1 // pred_check
      _
    $region47: #{tpu_custom_call.1} parent=1 // pred_check_branch
      %1915 = sbr.rel (0) target = $region49
    $region48: #{tpu_custom_call.1} parent=1 // pred_region
      %s1917 = ssub.s32 256, 256
      %1918 = vsyncadd [#allocation4], %s1917
      %s1919 = sshll.u32 [#allocation10], 4
      %s1920 = int_to_ptr.vmem [resolvable:$true] %s1919
      %1925 = dma.vmem_to_hbm [thread:$0]  %s1920, 256, %s7, [#allocation4], 128, 128, 8
    $region49: #{tpu_custom_call.1} parent=1 // pred_fallthru
      _
    // Predicated region
    $region50: #{tpu_custom_call.1} parent=1 // pred_check
      _
    $region51: #{tpu_custom_call.1} parent=1 // pred_check_branch
      %1927 = sbr.rel (0) target = $region53
    $region52: #{tpu_custom_call.1} parent=1 // pred_region
      %1928 = dma.done [#allocation4], 256
    $region53: #{tpu_custom_call.1} parent=1 // pred_fallthru
      _
    %1929 = vsyncpa [#allocation3], 1
    %1930 = vsyncpa [#allocation6], 1
    %1931 = vsyncpa [#allocation9], 1
    %1932 = vsyncpa [#allocation4], 1

</llo_original>
